<compile_context>
chip_gen: v7x
topology: tpu7x:2x2x1
jax: 0.10.0
libtpu: 0.0.40
codegen_flags: <defaults>
</compile_context>

<pallas_src>
import functools

import jax
import jax.numpy as jnp
from jax import lax
from jax.experimental import pallas as pl
from jax.experimental.pallas import tpu as pltpu


def _round_up(x, m):
    return (x + m - 1) // m * m


def _pad_gate_cols(w, h, hp):
    """Zero-pad each of the 4 PyTorch gate blocks (i,f,g,o) along the last axis."""
    if h == hp:
        return w
    pads = [(0, 0)] * (w.ndim - 1) + [(0, hp - h)]
    parts = [jnp.pad(w[..., k * h:(k + 1) * h], pads) for k in range(4)]
    return jnp.concatenate(parts, axis=-1)


def _pick_time_block(t, cap=16):
    """Time-block size; T is padded up to a multiple of it (masked in-kernel)."""
    if t <= cap:
        return t
    n_blocks = -(-t // cap)          # cdiv
    return -(-t // n_blocks)         # cdiv -> minimal padding waste


def _pick_batch_block(b, num_tensorcores):
    """Split the batch across TensorCores only when there are >1 (v7x)."""
    if num_tensorcores >= 2 and b % 2 == 0 and (b // 2) % 8 == 0:
        return b // 2
    # TODO(synk): on v7x, pad B to a multiple of 16 (and unpad the output) when
    # the sublane-alignment check fails so the second TensorCore never idles.
    return b


def _pick_unroll(t_block, bb, hp):
    """Bounded unroll: full only when one step's live set fits the vreg file."""
    # gates [Bb,4Hp] f32 + h/c/acc [Bb,Hp] f32 -> bytes / 4 KiB vregs.
    per_step_vregs = max(1, (28 * bb * hp) // 4096)
    if per_step_vregs <= 16:
        return t_block
    if per_step_vregs <= 48:
        return min(t_block, 4)
    return min(t_block, 2)


def _vmem_limit_bytes(tb, bb, c, hp, w_itemsize):
    """Explicit scoped-VMEM limit from the actual buffer footprint (+ headroom)."""
    f32 = 4
    x_buf = 2 * tb * bb * c * w_itemsize          # double-buffered x block
    wih_buf = 2 * c * 4 * hp * w_itemsize         # double-buffered W_ih^T
    whh_buf = 2 * hp * 4 * hp * w_itemsize        # double-buffered W_hh^T
    bias_buf = 2 * 4 * hp * f32
    out_buf = 2 * bb * f32
    scratch = 3 * bb * hp * f32                   # h, c, sum_t h
    total = x_buf + wih_buf + whh_buf + bias_buf + out_buf + scratch
    return int(min(100 * 1024 * 1024, max(2 * total + (2 << 20), 8 * 1024 * 1024)))


def _sigmoid(x):
    # sigmoid via tanh: one EUP op per gate instead of exp + divide.
    return 0.5 * jnp.tanh(0.5 * x) + 0.5


def _lstm_kernel(x_ref, wih_ref, whh_ref, bias_ref, out_ref,
                 h_ref, c_ref, acc_ref,
                 *, hp, t_block, t_total, target_ch, needs_mask, unroll):
    """One grid step == one (batch block, time block).

    x_ref    : [Tb, Bb, C]   time-major input block (projection fused in-kernel)
    wih_ref  : [C,  4Hp]     W_ih^T, per-gate zero-padded
    whh_ref  : [Hp, 4Hp]     W_hh^T, per-gate zero-padded
    bias_ref : [1,  4Hp] f32 b_ih + b_hh, per-gate zero-padded
    out_ref  : [Bb, 1]   f32 mean over time of h[:, target_ch]
    h_ref, c_ref, acc_ref : [Bb, Hp] f32 VMEM scratch (recurrent state + sum_t h)
    """
    t_idx = pl.program_id(1)

    @pl.when(t_idx == 0)
    def _init():
        h_ref[...] = jnp.zeros_like(h_ref)
        c_ref[...] = jnp.zeros_like(c_ref)
        acc_ref[...] = jnp.zeros_like(acc_ref)

    wih = wih_ref[...]                                  # [C, 4Hp]
    whh = whh_ref[...]                                  # [Hp, 4Hp]
    bias = bias_ref[...]                                # [1, 4Hp]

    def step(tt, carry):
        h, c, acc = carry
        # Fused input projection: independent of the recurrence carry, so the
        # scheduler overlaps it with the serial h @ W_hh^T chain.
        gx = jnp.dot(x_ref[tt], wih, preferred_element_type=jnp.float32) + bias
        gates = gx + jnp.dot(h.astype(whh.dtype), whh,
                             preferred_element_type=jnp.float32)
        # Lane-aligned gate slices (hp is a multiple of 128).
        i_g = _sigmoid(gates[:, 0 * hp:1 * hp])
        f_g = _sigmoid(gates[:, 1 * hp:2 * hp])
        g_g = jnp.tanh(gates[:, 2 * hp:3 * hp])
        o_g = _sigmoid(gates[:, 3 * hp:4 * hp])
        c_new = f_g * c + i_g * g_g
        h_new = o_g * jnp.tanh(c_new)
        acc_new = acc + h_new                           # full-width VPU add
        if needs_mask:                                  # only traced when T % Tb != 0
            valid = (t_idx * t_block + tt) < t_total
            h_new = jnp.where(valid, h_new, h)
            c_new = jnp.where(valid, c_new, c)
            acc_new = jnp.where(valid, acc_new, acc)
        return h_new, c_new, acc_new

    h_f, c_f, acc_f = lax.fori_loop(
        0, t_block, step, (h_ref[...], c_ref[...], acc_ref[...]), unroll=unroll)

    h_ref[...] = h_f
    c_ref[...] = c_f
    acc_ref[...] = acc_f

    @pl.when(t_idx == pl.num_programs(1) - 1)
    def _finalize():
        # Target channel extracted once per batch block (not once per step).
        out_ref[...] = acc_ref[:, target_ch:target_ch + 1] * (1.0 / t_total)


def lstm_wrapper_forward(x, w_ih, w_hh, b_ih, b_hh, *, target_ch=0,
                         mxu_dtype=jnp.float32, num_tensorcores=1):
    """x: [B, T, C] f32.  Returns [B] = mean_t(LSTM(x)[:, :, target_ch]).

    mxu_dtype: matmul-operand dtype.  f32 by default (portable, exact);
               use jnp.bfloat16 on real TPU HW for MXU throughput at scale.
    num_tensorcores: 2 on v7x to split the batch grid axis across cores;
               1 on v5e/v6e (single TC) to avoid wasted grid steps.
    """
    B, T, C = x.shape
    four_h = w_ih.shape[0]
    H = four_h // 4
    Hp = _round_up(H, 128)                               # lane-aligned gates

    # Per-gate zero-padded, pre-transposed weights / fused bias.
    wih_t = _pad_gate_cols(jnp.transpose(w_ih).astype(jnp.float32), H, Hp)   # [C, 4Hp]
    whh_t = _pad_gate_cols(jnp.transpose(w_hh).astype(jnp.float32), H, Hp)   # [H, 4Hp]
    whh_t = jnp.pad(whh_t, ((0, Hp - H), (0, 0)))                            # [Hp, 4Hp]
    bias = _pad_gate_cols((b_ih + b_hh).astype(jnp.float32)[None, :], H, Hp)  # [1, 4Hp]

    wih_t = wih_t.astype(mxu_dtype)
    whh_t = whh_t.astype(mxu_dtype)

    Tb = _pick_time_block(T)
    Tp = _round_up(T, Tb)
    Bb = _pick_batch_block(B, num_tensorcores)
    nt = Tp // Tb
    nb = B // Bb

    # Time-major x (zero-padded along T if needed).  The input projection is
    # fused into the kernel, so no [T, B, 4Hp] gx tensor ever touches HBM.
    x_tm = jnp.transpose(x, (1, 0, 2)).astype(mxu_dtype)                      # [Tp, B, C]
    if Tp != T:
        x_tm = jnp.pad(x_tm, ((0, Tp - T), (0, 0), (0, 0)))

    unroll = _pick_unroll(Tb, Bb, Hp)
    kernel = functools.partial(
        _lstm_kernel, hp=Hp, t_block=Tb, t_total=T, target_ch=target_ch,
        needs_mask=(Tp != T), unroll=unroll)

    vmem_bytes = _vmem_limit_bytes(Tb, Bb, C, Hp, jnp.dtype(mxu_dtype).itemsize)

    # NOTE: the time axis must stay the innermost, "arbitrary" grid axis — the
    # scratch-carried h/c/acc state depends on all its steps for one batch
    # block running back-to-back between init (t==0) and finalize (t==last).
    out = pl.pallas_call(
        kernel,
        out_shape=jax.ShapeDtypeStruct((B, 1), jnp.float32),
        grid_spec=pltpu.PrefetchScalarGridSpec(
            num_scalar_prefetch=0,
            grid=(nb, nt),
            in_specs=[
                pl.BlockSpec((Tb, Bb, C), lambda b, t: (t, b, 0)),     # x (time-major)
                pl.BlockSpec((C, 4 * Hp), lambda b, t: (0, 0)),        # W_ih^T (resident)
                pl.BlockSpec((Hp, 4 * Hp), lambda b, t: (0, 0)),       # W_hh^T (resident)
                pl.BlockSpec((1, 4 * Hp), lambda b, t: (0, 0)),        # fused bias
            ],
            out_specs=pl.BlockSpec((Bb, 1), lambda b, t: (b, 0)),
            scratch_shapes=[
                pltpu.VMEM((Bb, Hp), jnp.float32),   # h
                pltpu.VMEM((Bb, Hp), jnp.float32),   # c
                pltpu.VMEM((Bb, Hp), jnp.float32),   # sum_t h
            ],
        ),
        compiler_params=pltpu.CompilerParams(
            dimension_semantics=("parallel", "arbitrary"),   # batch ||, time serial
            vmem_limit_bytes=vmem_bytes),
    )(x_tm, wih_t, whh_t, bias)

    return out[:, 0]                                         # [B]


def _reference_forward(x, w_ih, w_hh, b_ih, b_hh, target_ch=0):
    """Pure-JAX f32 reference (PyTorch LSTM semantics, gate order i,f,g,o)."""
    B, T, C = x.shape
    H = w_hh.shape[1]

    def step(carry, x_t):
        h, c = carry
        gates = x_t @ w_ih.T + h @ w_hh.T + b_ih + b_hh
        i = jax.nn.sigmoid(gates[:, 0 * H:1 * H])
        f = jax.nn.sigmoid(gates[:, 1 * H:2 * H])
        g = jnp.tanh(gates[:, 2 * H:3 * H])
        o = jax.nn.sigmoid(gates[:, 3 * H:4 * H])
        c = f * c + i * g
        h = o * jnp.tanh(c)
        return (h, c), h

    h0 = jnp.zeros((B, H), jnp.float32)
    c0 = jnp.zeros((B, H), jnp.float32)
    _, hs = jax.lax.scan(step, (h0, c0), jnp.transpose(x, (1, 0, 2)))
    out = jnp.transpose(hs, (1, 0, 2))                      # [B, T, H]
    return out[:, :, target_ch].mean(axis=1)


if __name__ == "__main__":
    B, T, C, H = 8, 8, 16, 32
    target_ch = 0

    key = jax.random.PRNGKey(0)
    k_x, k_wih, k_whh, k_bih, k_bhh = jax.random.split(key, 5)

    scale = 1.0 / jnp.sqrt(H)
    x = jax.random.normal(k_x, (B, T, C), jnp.float32)
    w_ih = jax.random.uniform(k_wih, (4 * H, C), jnp.float32, -scale, scale)
    w_hh = jax.random.uniform(k_whh, (4 * H, H), jnp.float32, -scale, scale)
    b_ih = jax.random.uniform(k_bih, (4 * H,), jnp.float32, -scale, scale)
    b_hh = jax.random.uniform(k_bhh, (4 * H,), jnp.float32, -scale, scale)

    out = lstm_wrapper_forward(x, w_ih, w_hh, b_ih, b_hh, target_ch=target_ch)
    out = jax.block_until_ready(out)

    ref = _reference_forward(x, w_ih, w_hh, b_ih, b_hh, target_ch=target_ch)
    assert out.shape == (B,)
    # f32 matmul operands + f32 accumulation -> tight agreement with the f32 ref.
    assert jnp.allclose(out, ref, atol=1e-3, rtol=1e-3), (out, ref)

    print("KERNEL_OK")
</pallas_src>

<mosaic_0001>
module attributes {stable_mosaic.version = 11 : i64} {
  func.func @_lstm_kernel(%arg0: i32, %arg1: i32, %arg2: memref<8x8x16xf32, #tpu.memory_space<vmem>>, %arg3: memref<16x512xf32, #tpu.memory_space<vmem>>, %arg4: memref<128x512xf32, #tpu.memory_space<vmem>>, %arg5: memref<1x512xf32, #tpu.memory_space<vmem>>, %arg6: memref<8x1xf32, #tpu.memory_space<vmem>>, %arg7: memref<8x128xf32, #tpu.memory_space<vmem>>, %arg8: memref<8x128xf32, #tpu.memory_space<vmem>>, %arg9: memref<8x128xf32, #tpu.memory_space<vmem>>) attributes {dimension_semantics = [#tpu.dimension_semantics<parallel>, #tpu.dimension_semantics<arbitrary>], iteration_bounds = array<i64: 1, 1>, scalar_prefetch = 0 : i64, scratch_operands = 3 : i64, tpu.core_type = #tpu.core_type<tc>, window_params = [{transform_indices = @transform_0, window_bounds = array<i64: 8, 8, 16>}, {pipeline_mode = #tpu.pipeline_mode<synchronous>, transform_indices = @transform_1, window_bounds = array<i64: 16, 512>}, {pipeline_mode = #tpu.pipeline_mode<synchronous>, transform_indices = @transform_2, window_bounds = array<i64: 128, 512>}, {pipeline_mode = #tpu.pipeline_mode<synchronous>, transform_indices = @transform_3, window_bounds = array<i64: 1, 512>}, {transform_indices = @transform_4, window_bounds = array<i64: 8, 1>}]} {
    %c0_i32 = arith.constant 0 : i32
    %0 = arith.cmpi eq, %arg1, %c0_i32 : i32
    %1 = arith.extui %0 : i1 to i32
    %c0_i32_0 = arith.constant 0 : i32
    %2 = arith.cmpi ne, %1, %c0_i32_0 : i32
    scf.if %2 {
      %cst_124 = arith.constant 0.000000e+00 : f32
      %335 = vector.broadcast %cst_124 : f32 to vector<8x128xf32>
      %c0_125 = arith.constant 0 : index
      %c0_126 = arith.constant 0 : index
      %336 = vector.load %arg7[%c0_125, %c0_126] : memref<8x128xf32, #tpu.memory_space<vmem>>, vector<8x128xf32>
      tpu.vector_store %arg7[%c0_125, %c0_126], %335 {strides = array<i32>} : memref<8x128xf32, #tpu.memory_space<vmem>>, vector<8x128xf32>,
      %cst_127 = arith.constant 0.000000e+00 : f32
      %337 = vector.broadcast %cst_127 : f32 to vector<8x128xf32>
      %c0_128 = arith.constant 0 : index
      %c0_129 = arith.constant 0 : index
      %338 = vector.load %arg8[%c0_128, %c0_129] : memref<8x128xf32, #tpu.memory_space<vmem>>, vector<8x128xf32>
      tpu.vector_store %arg8[%c0_128, %c0_129], %337 {strides = array<i32>} : memref<8x128xf32, #tpu.memory_space<vmem>>, vector<8x128xf32>,
      %cst_130 = arith.constant 0.000000e+00 : f32
      %339 = vector.broadcast %cst_130 : f32 to vector<8x128xf32>
      %c0_131 = arith.constant 0 : index
      %c0_132 = arith.constant 0 : index
      %340 = vector.load %arg9[%c0_131, %c0_132] : memref<8x128xf32, #tpu.memory_space<vmem>>, vector<8x128xf32>
      tpu.vector_store %arg9[%c0_131, %c0_132], %339 {strides = array<i32>} : memref<8x128xf32, #tpu.memory_space<vmem>>, vector<8x128xf32>,
    } else {
    }
    %c0 = arith.constant 0 : index
    %c0_1 = arith.constant 0 : index
    %3 = vector.load %arg3[%c0, %c0_1] : memref<16x512xf32, #tpu.memory_space<vmem>>, vector<16x512xf32>
    %c0_2 = arith.constant 0 : index
    %c0_3 = arith.constant 0 : index
    %4 = vector.load %arg4[%c0_2, %c0_3] : memref<128x512xf32, #tpu.memory_space<vmem>>, vector<128x512xf32>
    %c0_4 = arith.constant 0 : index
    %c0_5 = arith.constant 0 : index
    %5 = vector.load %arg5[%c0_4, %c0_5] : memref<1x512xf32, #tpu.memory_space<vmem>>, vector<1x512xf32>
    %c0_6 = arith.constant 0 : index
    %c0_7 = arith.constant 0 : index
    %6 = vector.load %arg7[%c0_6, %c0_7] : memref<8x128xf32, #tpu.memory_space<vmem>>, vector<8x128xf32>
    %c0_8 = arith.constant 0 : index
    %c0_9 = arith.constant 0 : index
    %7 = vector.load %arg8[%c0_8, %c0_9] : memref<8x128xf32, #tpu.memory_space<vmem>>, vector<8x128xf32>
    %c0_10 = arith.constant 0 : index
    %c0_11 = arith.constant 0 : index
    %8 = vector.load %arg9[%c0_10, %c0_11] : memref<8x128xf32, #tpu.memory_space<vmem>>, vector<8x128xf32>
    %c0_i32_12 = arith.constant 0 : i32
    %9 = arith.index_cast %c0_i32_12 : i32 to index
    %c0_13 = arith.constant 0 : index
    %c0_14 = arith.constant 0 : index
    %10 = vector.load %arg2[%9, %c0_13, %c0_14] : memref<8x8x16xf32, #tpu.memory_space<vmem>>, vector<1x8x16xf32>
    %11 = vector.shape_cast %10 : vector<1x8x16xf32> to vector<8x16xf32>
    %cst = arith.constant dense<0.000000e+00> : vector<8x512xf32>
    %12 = tpu.matmul %11, %3, %cst {dimension_numbers = #tpu.dot_dimension_numbers<[1], [0], [0], [1], [0, 0, 1, 1], [], []>} : vector<8x16xf32>, vector<16x512xf32>, vector<8x512xf32> -> vector<8x512xf32>
    %13 = vector.broadcast %5 : vector<1x512xf32> to vector<8x512xf32>
    %14 = arith.addf %12, %13 : vector<8x512xf32>
    %cst_15 = arith.constant dense<0.000000e+00> : vector<8x512xf32>
    %15 = tpu.matmul %6, %4, %cst_15 {dimension_numbers = #tpu.dot_dimension_numbers<[1], [0], [0], [1], [0, 0, 1, 1], [], []>} : vector<8x128xf32>, vector<128x512xf32>, vector<8x512xf32> -> vector<8x512xf32>
    %16 = arith.addf %14, %15 : vector<8x512xf32>
    %17 = vector.extract_strided_slice %16 {offsets = [0, 0], sizes = [8, 128], strides = [1, 1]} : vector<8x512xf32> to vector<8x128xf32>
    %cst_16 = arith.constant 5.000000e-01 : f32
    %18 = vector.broadcast %cst_16 : f32 to vector<8x128xf32>
    %19 = arith.mulf %18, %17 : vector<8x128xf32>
    %20 = math.tanh %19 : vector<8x128xf32>
    %cst_17 = arith.constant 5.000000e-01 : f32
    %21 = vector.broadcast %cst_17 : f32 to vector<8x128xf32>
    %22 = arith.mulf %21, %20 : vector<8x128xf32>
    %cst_18 = arith.constant 5.000000e-01 : f32
    %23 = vector.broadcast %cst_18 : f32 to vector<8x128xf32>
    %24 = arith.addf %22, %23 : vector<8x128xf32>
    %25 = vector.extract_strided_slice %16 {offsets = [0, 128], sizes = [8, 128], strides = [1, 1]} : vector<8x512xf32> to vector<8x128xf32>
    %cst_19 = arith.constant 5.000000e-01 : f32
    %26 = vector.broadcast %cst_19 : f32 to vector<8x128xf32>
    %27 = arith.mulf %26, %25 : vector<8x128xf32>
    %28 = math.tanh %27 : vector<8x128xf32>
    %cst_20 = arith.constant 5.000000e-01 : f32
    %29 = vector.broadcast %cst_20 : f32 to vector<8x128xf32>
    %30 = arith.mulf %29, %28 : vector<8x128xf32>
    %cst_21 = arith.constant 5.000000e-01 : f32
    %31 = vector.broadcast %cst_21 : f32 to vector<8x128xf32>
    %32 = arith.addf %30, %31 : vector<8x128xf32>
    %33 = vector.extract_strided_slice %16 {offsets = [0, 256], sizes = [8, 128], strides = [1, 1]} : vector<8x512xf32> to vector<8x128xf32>
    %34 = math.tanh %33 : vector<8x128xf32>
    %35 = vector.extract_strided_slice %16 {offsets = [0, 384], sizes = [8, 128], strides = [1, 1]} : vector<8x512xf32> to vector<8x128xf32>
    %cst_22 = arith.constant 5.000000e-01 : f32
    %36 = vector.broadcast %cst_22 : f32 to vector<8x128xf32>
    %37 = arith.mulf %36, %35 : vector<8x128xf32>
    %38 = math.tanh %37 : vector<8x128xf32>
    %cst_23 = arith.constant 5.000000e-01 : f32
    %39 = vector.broadcast %cst_23 : f32 to vector<8x128xf32>
    %40 = arith.mulf %39, %38 : vector<8x128xf32>
    %cst_24 = arith.constant 5.000000e-01 : f32
    %41 = vector.broadcast %cst_24 : f32 to vector<8x128xf32>
    %42 = arith.addf %40, %41 : vector<8x128xf32>
    %43 = arith.mulf %32, %7 : vector<8x128xf32>
    %44 = arith.mulf %24, %34 : vector<8x128xf32>
    %45 = arith.addf %43, %44 : vector<8x128xf32>
    %46 = math.tanh %45 : vector<8x128xf32>
    %47 = arith.mulf %42, %46 : vector<8x128xf32>
    %48 = arith.addf %8, %47 : vector<8x128xf32>
    %c1_i32 = arith.constant 1 : i32
    %49 = arith.index_cast %c1_i32 : i32 to index
    %c0_25 = arith.constant 0 : index
    %c0_26 = arith.constant 0 : index
    %50 = vector.load %arg2[%49, %c0_25, %c0_26] : memref<8x8x16xf32, #tpu.memory_space<vmem>>, vector<1x8x16xf32>
    %51 = vector.shape_cast %50 : vector<1x8x16xf32> to vector<8x16xf32>
    %cst_27 = arith.constant dense<0.000000e+00> : vector<8x512xf32>
    %52 = tpu.matmul %51, %3, %cst_27 {dimension_numbers = #tpu.dot_dimension_numbers<[1], [0], [0], [1], [0, 0, 1, 1], [], []>} : vector<8x16xf32>, vector<16x512xf32>, vector<8x512xf32> -> vector<8x512xf32>
    %53 = vector.broadcast %5 : vector<1x512xf32> to vector<8x512xf32>
    %54 = arith.addf %52, %53 : vector<8x512xf32>
    %cst_28 = arith.constant dense<0.000000e+00> : vector<8x512xf32>
    %55 = tpu.matmul %47, %4, %cst_28 {dimension_numbers = #tpu.dot_dimension_numbers<[1], [0], [0], [1], [0, 0, 1, 1], [], []>} : vector<8x128xf32>, vector<128x512xf32>, vector<8x512xf32> -> vector<8x512xf32>
    %56 = arith.addf %54, %55 : vector<8x512xf32>
    %57 = vector.extract_strided_slice %56 {offsets = [0, 0], sizes = [8, 128], strides = [1, 1]} : vector<8x512xf32> to vector<8x128xf32>
    %cst_29 = arith.constant 5.000000e-01 : f32
    %58 = vector.broadcast %cst_29 : f32 to vector<8x128xf32>
    %59 = arith.mulf %58, %57 : vector<8x128xf32>
    %60 = math.tanh %59 : vector<8x128xf32>
    %cst_30 = arith.constant 5.000000e-01 : f32
    %61 = vector.broadcast %cst_30 : f32 to vector<8x128xf32>
    %62 = arith.mulf %61, %60 : vector<8x128xf32>
    %cst_31 = arith.constant 5.000000e-01 : f32
    %63 = vector.broadcast %cst_31 : f32 to vector<8x128xf32>
    %64 = arith.addf %62, %63 : vector<8x128xf32>
    %65 = vector.extract_strided_slice %56 {offsets = [0, 128], sizes = [8, 128], strides = [1, 1]} : vector<8x512xf32> to vector<8x128xf32>
    %cst_32 = arith.constant 5.000000e-01 : f32
    %66 = vector.broadcast %cst_32 : f32 to vector<8x128xf32>
    %67 = arith.mulf %66, %65 : vector<8x128xf32>
    %68 = math.tanh %67 : vector<8x128xf32>
    %cst_33 = arith.constant 5.000000e-01 : f32
    %69 = vector.broadcast %cst_33 : f32 to vector<8x128xf32>
    %70 = arith.mulf %69, %68 : vector<8x128xf32>
    %cst_34 = arith.constant 5.000000e-01 : f32
    %71 = vector.broadcast %cst_34 : f32 to vector<8x128xf32>
    %72 = arith.addf %70, %71 : vector<8x128xf32>
    %73 = vector.extract_strided_slice %56 {offsets = [0, 256], sizes = [8, 128], strides = [1, 1]} : vector<8x512xf32> to vector<8x128xf32>
    %74 = math.tanh %73 : vector<8x128xf32>
    %75 = vector.extract_strided_slice %56 {offsets = [0, 384], sizes = [8, 128], strides = [1, 1]} : vector<8x512xf32> to vector<8x128xf32>
    %cst_35 = arith.constant 5.000000e-01 : f32
    %76 = vector.broadcast %cst_35 : f32 to vector<8x128xf32>
    %77 = arith.mulf %76, %75 : vector<8x128xf32>
    %78 = math.tanh %77 : vector<8x128xf32>
    %cst_36 = arith.constant 5.000000e-01 : f32
    %79 = vector.broadcast %cst_36 : f32 to vector<8x128xf32>
    %80 = arith.mulf %79, %78 : vector<8x128xf32>
    %cst_37 = arith.constant 5.000000e-01 : f32
    %81 = vector.broadcast %cst_37 : f32 to vector<8x128xf32>
    %82 = arith.addf %80, %81 : vector<8x128xf32>
    %83 = arith.mulf %72, %45 : vector<8x128xf32>
    %84 = arith.mulf %64, %74 : vector<8x128xf32>
    %85 = arith.addf %83, %84 : vector<8x128xf32>
    %86 = math.tanh %85 : vector<8x128xf32>
    %87 = arith.mulf %82, %86 : vector<8x128xf32>
    %88 = arith.addf %48, %87 : vector<8x128xf32>
    %c2_i32 = arith.constant 2 : i32
    %89 = arith.index_cast %c2_i32 : i32 to index
    %c0_38 = arith.constant 0 : index
    %c0_39 = arith.constant 0 : index
    %90 = vector.load %arg2[%89, %c0_38, %c0_39] : memref<8x8x16xf32, #tpu.memory_space<vmem>>, vector<1x8x16xf32>
    %91 = vector.shape_cast %90 : vector<1x8x16xf32> to vector<8x16xf32>
    %cst_40 = arith.constant dense<0.000000e+00> : vector<8x512xf32>
    %92 = tpu.matmul %91, %3, %cst_40 {dimension_numbers = #tpu.dot_dimension_numbers<[1], [0], [0], [1], [0, 0, 1, 1], [], []>} : vector<8x16xf32>, vector<16x512xf32>, vector<8x512xf32> -> vector<8x512xf32>
    %93 = vector.broadcast %5 : vector<1x512xf32> to vector<8x512xf32>
    %94 = arith.addf %92, %93 : vector<8x512xf32>
    %cst_41 = arith.constant dense<0.000000e+00> : vector<8x512xf32>
    %95 = tpu.matmul %87, %4, %cst_41 {dimension_numbers = #tpu.dot_dimension_numbers<[1], [0], [0], [1], [0, 0, 1, 1], [], []>} : vector<8x128xf32>, vector<128x512xf32>, vector<8x512xf32> -> vector<8x512xf32>
    %96 = arith.addf %94, %95 : vector<8x512xf32>
    %97 = vector.extract_strided_slice %96 {offsets = [0, 0], sizes = [8, 128], strides = [1, 1]} : vector<8x512xf32> to vector<8x128xf32>
    %cst_42 = arith.constant 5.000000e-01 : f32
    %98 = vector.broadcast %cst_42 : f32 to vector<8x128xf32>
    %99 = arith.mulf %98, %97 : vector<8x128xf32>
    %100 = math.tanh %99 : vector<8x128xf32>
    %cst_43 = arith.constant 5.000000e-01 : f32
    %101 = vector.broadcast %cst_43 : f32 to vector<8x128xf32>
    %102 = arith.mulf %101, %100 : vector<8x128xf32>
    %cst_44 = arith.constant 5.000000e-01 : f32
    %103 = vector.broadcast %cst_44 : f32 to vector<8x128xf32>
    %104 = arith.addf %102, %103 : vector<8x128xf32>
    %105 = vector.extract_strided_slice %96 {offsets = [0, 128], sizes = [8, 128], strides = [1, 1]} : vector<8x512xf32> to vector<8x128xf32>
    %cst_45 = arith.constant 5.000000e-01 : f32
    %106 = vector.broadcast %cst_45 : f32 to vector<8x128xf32>
    %107 = arith.mulf %106, %105 : vector<8x128xf32>
    %108 = math.tanh %107 : vector<8x128xf32>
    %cst_46 = arith.constant 5.000000e-01 : f32
    %109 = vector.broadcast %cst_46 : f32 to vector<8x128xf32>
    %110 = arith.mulf %109, %108 : vector<8x128xf32>
    %cst_47 = arith.constant 5.000000e-01 : f32
    %111 = vector.broadcast %cst_47 : f32 to vector<8x128xf32>
    %112 = arith.addf %110, %111 : vector<8x128xf32>
    %113 = vector.extract_strided_slice %96 {offsets = [0, 256], sizes = [8, 128], strides = [1, 1]} : vector<8x512xf32> to vector<8x128xf32>
    %114 = math.tanh %113 : vector<8x128xf32>
    %115 = vector.extract_strided_slice %96 {offsets = [0, 384], sizes = [8, 128], strides = [1, 1]} : vector<8x512xf32> to vector<8x128xf32>
    %cst_48 = arith.constant 5.000000e-01 : f32
    %116 = vector.broadcast %cst_48 : f32 to vector<8x128xf32>
    %117 = arith.mulf %116, %115 : vector<8x128xf32>
    %118 = math.tanh %117 : vector<8x128xf32>
    %cst_49 = arith.constant 5.000000e-01 : f32
    %119 = vector.broadcast %cst_49 : f32 to vector<8x128xf32>
    %120 = arith.mulf %119, %118 : vector<8x128xf32>
    %cst_50 = arith.constant 5.000000e-01 : f32
    %121 = vector.broadcast %cst_50 : f32 to vector<8x128xf32>
    %122 = arith.addf %120, %121 : vector<8x128xf32>
    %123 = arith.mulf %112, %85 : vector<8x128xf32>
    %124 = arith.mulf %104, %114 : vector<8x128xf32>
    %125 = arith.addf %123, %124 : vector<8x128xf32>
    %126 = math.tanh %125 : vector<8x128xf32>
    %127 = arith.mulf %122, %126 : vector<8x128xf32>
    %128 = arith.addf %88, %127 : vector<8x128xf32>
    %c3_i32 = arith.constant 3 : i32
    %129 = arith.index_cast %c3_i32 : i32 to index
    %c0_51 = arith.constant 0 : index
    %c0_52 = arith.constant 0 : index
    %130 = vector.load %arg2[%129, %c0_51, %c0_52] : memref<8x8x16xf32, #tpu.memory_space<vmem>>, vector<1x8x16xf32>
    %131 = vector.shape_cast %130 : vector<1x8x16xf32> to vector<8x16xf32>
    %cst_53 = arith.constant dense<0.000000e+00> : vector<8x512xf32>
    %132 = tpu.matmul %131, %3, %cst_53 {dimension_numbers = #tpu.dot_dimension_numbers<[1], [0], [0], [1], [0, 0, 1, 1], [], []>} : vector<8x16xf32>, vector<16x512xf32>, vector<8x512xf32> -> vector<8x512xf32>
    %133 = vector.broadcast %5 : vector<1x512xf32> to vector<8x512xf32>
    %134 = arith.addf %132, %133 : vector<8x512xf32>
    %cst_54 = arith.constant dense<0.000000e+00> : vector<8x512xf32>
    %135 = tpu.matmul %127, %4, %cst_54 {dimension_numbers = #tpu.dot_dimension_numbers<[1], [0], [0], [1], [0, 0, 1, 1], [], []>} : vector<8x128xf32>, vector<128x512xf32>, vector<8x512xf32> -> vector<8x512xf32>
    %136 = arith.addf %134, %135 : vector<8x512xf32>
    %137 = vector.extract_strided_slice %136 {offsets = [0, 0], sizes = [8, 128], strides = [1, 1]} : vector<8x512xf32> to vector<8x128xf32>
    %cst_55 = arith.constant 5.000000e-01 : f32
    %138 = vector.broadcast %cst_55 : f32 to vector<8x128xf32>
    %139 = arith.mulf %138, %137 : vector<8x128xf32>
    %140 = math.tanh %139 : vector<8x128xf32>
    %cst_56 = arith.constant 5.000000e-01 : f32
    %141 = vector.broadcast %cst_56 : f32 to vector<8x128xf32>
    %142 = arith.mulf %141, %140 : vector<8x128xf32>
    %cst_57 = arith.constant 5.000000e-01 : f32
    %143 = vector.broadcast %cst_57 : f32 to vector<8x128xf32>
    %144 = arith.addf %142, %143 : vector<8x128xf32>
    %145 = vector.extract_strided_slice %136 {offsets = [0, 128], sizes = [8, 128], strides = [1, 1]} : vector<8x512xf32> to vector<8x128xf32>
    %cst_58 = arith.constant 5.000000e-01 : f32
    %146 = vector.broadcast %cst_58 : f32 to vector<8x128xf32>
    %147 = arith.mulf %146, %145 : vector<8x128xf32>
    %148 = math.tanh %147 : vector<8x128xf32>
    %cst_59 = arith.constant 5.000000e-01 : f32
    %149 = vector.broadcast %cst_59 : f32 to vector<8x128xf32>
    %150 = arith.mulf %149, %148 : vector<8x128xf32>
    %cst_60 = arith.constant 5.000000e-01 : f32
    %151 = vector.broadcast %cst_60 : f32 to vector<8x128xf32>
    %152 = arith.addf %150, %151 : vector<8x128xf32>
    %153 = vector.extract_strided_slice %136 {offsets = [0, 256], sizes = [8, 128], strides = [1, 1]} : vector<8x512xf32> to vector<8x128xf32>
    %154 = math.tanh %153 : vector<8x128xf32>
    %155 = vector.extract_strided_slice %136 {offsets = [0, 384], sizes = [8, 128], strides = [1, 1]} : vector<8x512xf32> to vector<8x128xf32>
    %cst_61 = arith.constant 5.000000e-01 : f32
    %156 = vector.broadcast %cst_61 : f32 to vector<8x128xf32>
    %157 = arith.mulf %156, %155 : vector<8x128xf32>
    %158 = math.tanh %157 : vector<8x128xf32>
    %cst_62 = arith.constant 5.000000e-01 : f32
    %159 = vector.broadcast %cst_62 : f32 to vector<8x128xf32>
    %160 = arith.mulf %159, %158 : vector<8x128xf32>
    %cst_63 = arith.constant 5.000000e-01 : f32
    %161 = vector.broadcast %cst_63 : f32 to vector<8x128xf32>
    %162 = arith.addf %160, %161 : vector<8x128xf32>
    %163 = arith.mulf %152, %125 : vector<8x128xf32>
    %164 = arith.mulf %144, %154 : vector<8x128xf32>
    %165 = arith.addf %163, %164 : vector<8x128xf32>
    %166 = math.tanh %165 : vector<8x128xf32>
    %167 = arith.mulf %162, %166 : vector<8x128xf32>
    %168 = arith.addf %128, %167 : vector<8x128xf32>
    %c4_i32 = arith.constant 4 : i32
    %169 = arith.index_cast %c4_i32 : i32 to index
    %c0_64 = arith.constant 0 : index
    %c0_65 = arith.constant 0 : index
    %170 = vector.load %arg2[%169, %c0_64, %c0_65] : memref<8x8x16xf32, #tpu.memory_space<vmem>>, vector<1x8x16xf32>
    %171 = vector.shape_cast %170 : vector<1x8x16xf32> to vector<8x16xf32>
    %cst_66 = arith.constant dense<0.000000e+00> : vector<8x512xf32>
    %172 = tpu.matmul %171, %3, %cst_66 {dimension_numbers = #tpu.dot_dimension_numbers<[1], [0], [0], [1], [0, 0, 1, 1], [], []>} : vector<8x16xf32>, vector<16x512xf32>, vector<8x512xf32> -> vector<8x512xf32>
    %173 = vector.broadcast %5 : vector<1x512xf32> to vector<8x512xf32>
    %174 = arith.addf %172, %173 : vector<8x512xf32>
    %cst_67 = arith.constant dense<0.000000e+00> : vector<8x512xf32>
    %175 = tpu.matmul %167, %4, %cst_67 {dimension_numbers = #tpu.dot_dimension_numbers<[1], [0], [0], [1], [0, 0, 1, 1], [], []>} : vector<8x128xf32>, vector<128x512xf32>, vector<8x512xf32> -> vector<8x512xf32>
    %176 = arith.addf %174, %175 : vector<8x512xf32>
    %177 = vector.extract_strided_slice %176 {offsets = [0, 0], sizes = [8, 128], strides = [1, 1]} : vector<8x512xf32> to vector<8x128xf32>
    %cst_68 = arith.constant 5.000000e-01 : f32
    %178 = vector.broadcast %cst_68 : f32 to vector<8x128xf32>
    %179 = arith.mulf %178, %177 : vector<8x128xf32>
    %180 = math.tanh %179 : vector<8x128xf32>
    %cst_69 = arith.constant 5.000000e-01 : f32
    %181 = vector.broadcast %cst_69 : f32 to vector<8x128xf32>
    %182 = arith.mulf %181, %180 : vector<8x128xf32>
    %cst_70 = arith.constant 5.000000e-01 : f32
    %183 = vector.broadcast %cst_70 : f32 to vector<8x128xf32>
    %184 = arith.addf %182, %183 : vector<8x128xf32>
    %185 = vector.extract_strided_slice %176 {offsets = [0, 128], sizes = [8, 128], strides = [1, 1]} : vector<8x512xf32> to vector<8x128xf32>
    %cst_71 = arith.constant 5.000000e-01 : f32
    %186 = vector.broadcast %cst_71 : f32 to vector<8x128xf32>
    %187 = arith.mulf %186, %185 : vector<8x128xf32>
    %188 = math.tanh %187 : vector<8x128xf32>
    %cst_72 = arith.constant 5.000000e-01 : f32
    %189 = vector.broadcast %cst_72 : f32 to vector<8x128xf32>
    %190 = arith.mulf %189, %188 : vector<8x128xf32>
    %cst_73 = arith.constant 5.000000e-01 : f32
    %191 = vector.broadcast %cst_73 : f32 to vector<8x128xf32>
    %192 = arith.addf %190, %191 : vector<8x128xf32>
    %193 = vector.extract_strided_slice %176 {offsets = [0, 256], sizes = [8, 128], strides = [1, 1]} : vector<8x512xf32> to vector<8x128xf32>
    %194 = math.tanh %193 : vector<8x128xf32>
    %195 = vector.extract_strided_slice %176 {offsets = [0, 384], sizes = [8, 128], strides = [1, 1]} : vector<8x512xf32> to vector<8x128xf32>
    %cst_74 = arith.constant 5.000000e-01 : f32
    %196 = vector.broadcast %cst_74 : f32 to vector<8x128xf32>
    %197 = arith.mulf %196, %195 : vector<8x128xf32>
    %198 = math.tanh %197 : vector<8x128xf32>
    %cst_75 = arith.constant 5.000000e-01 : f32
    %199 = vector.broadcast %cst_75 : f32 to vector<8x128xf32>
    %200 = arith.mulf %199, %198 : vector<8x128xf32>
    %cst_76 = arith.constant 5.000000e-01 : f32
    %201 = vector.broadcast %cst_76 : f32 to vector<8x128xf32>
    %202 = arith.addf %200, %201 : vector<8x128xf32>
    %203 = arith.mulf %192, %165 : vector<8x128xf32>
    %204 = arith.mulf %184, %194 : vector<8x128xf32>
    %205 = arith.addf %203, %204 : vector<8x128xf32>
    %206 = math.tanh %205 : vector<8x128xf32>
    %207 = arith.mulf %202, %206 : vector<8x128xf32>
    %208 = arith.addf %168, %207 : vector<8x128xf32>
    %c5_i32 = arith.constant 5 : i32
    %209 = arith.index_cast %c5_i32 : i32 to index
    %c0_77 = arith.constant 0 : index
    %c0_78 = arith.constant 0 : index
    %210 = vector.load %arg2[%209, %c0_77, %c0_78] : memref<8x8x16xf32, #tpu.memory_space<vmem>>, vector<1x8x16xf32>
    %211 = vector.shape_cast %210 : vector<1x8x16xf32> to vector<8x16xf32>
    %cst_79 = arith.constant dense<0.000000e+00> : vector<8x512xf32>
    %212 = tpu.matmul %211, %3, %cst_79 {dimension_numbers = #tpu.dot_dimension_numbers<[1], [0], [0], [1], [0, 0, 1, 1], [], []>} : vector<8x16xf32>, vector<16x512xf32>, vector<8x512xf32> -> vector<8x512xf32>
    %213 = vector.broadcast %5 : vector<1x512xf32> to vector<8x512xf32>
    %214 = arith.addf %212, %213 : vector<8x512xf32>
    %cst_80 = arith.constant dense<0.000000e+00> : vector<8x512xf32>
    %215 = tpu.matmul %207, %4, %cst_80 {dimension_numbers = #tpu.dot_dimension_numbers<[1], [0], [0], [1], [0, 0, 1, 1], [], []>} : vector<8x128xf32>, vector<128x512xf32>, vector<8x512xf32> -> vector<8x512xf32>
    %216 = arith.addf %214, %215 : vector<8x512xf32>
    %217 = vector.extract_strided_slice %216 {offsets = [0, 0], sizes = [8, 128], strides = [1, 1]} : vector<8x512xf32> to vector<8x128xf32>
    %cst_81 = arith.constant 5.000000e-01 : f32
    %218 = vector.broadcast %cst_81 : f32 to vector<8x128xf32>
    %219 = arith.mulf %218, %217 : vector<8x128xf32>
    %220 = math.tanh %219 : vector<8x128xf32>
    %cst_82 = arith.constant 5.000000e-01 : f32
    %221 = vector.broadcast %cst_82 : f32 to vector<8x128xf32>
    %222 = arith.mulf %221, %220 : vector<8x128xf32>
    %cst_83 = arith.constant 5.000000e-01 : f32
    %223 = vector.broadcast %cst_83 : f32 to vector<8x128xf32>
    %224 = arith.addf %222, %223 : vector<8x128xf32>
    %225 = vector.extract_strided_slice %216 {offsets = [0, 128], sizes = [8, 128], strides = [1, 1]} : vector<8x512xf32> to vector<8x128xf32>
    %cst_84 = arith.constant 5.000000e-01 : f32
    %226 = vector.broadcast %cst_84 : f32 to vector<8x128xf32>
    %227 = arith.mulf %226, %225 : vector<8x128xf32>
    %228 = math.tanh %227 : vector<8x128xf32>
    %cst_85 = arith.constant 5.000000e-01 : f32
    %229 = vector.broadcast %cst_85 : f32 to vector<8x128xf32>
    %230 = arith.mulf %229, %228 : vector<8x128xf32>
    %cst_86 = arith.constant 5.000000e-01 : f32
    %231 = vector.broadcast %cst_86 : f32 to vector<8x128xf32>
    %232 = arith.addf %230, %231 : vector<8x128xf32>
    %233 = vector.extract_strided_slice %216 {offsets = [0, 256], sizes = [8, 128], strides = [1, 1]} : vector<8x512xf32> to vector<8x128xf32>
    %234 = math.tanh %233 : vector<8x128xf32>
    %235 = vector.extract_strided_slice %216 {offsets = [0, 384], sizes = [8, 128], strides = [1, 1]} : vector<8x512xf32> to vector<8x128xf32>
    %cst_87 = arith.constant 5.000000e-01 : f32
    %236 = vector.broadcast %cst_87 : f32 to vector<8x128xf32>
    %237 = arith.mulf %236, %235 : vector<8x128xf32>
    %238 = math.tanh %237 : vector<8x128xf32>
    %cst_88 = arith.constant 5.000000e-01 : f32
    %239 = vector.broadcast %cst_88 : f32 to vector<8x128xf32>
    %240 = arith.mulf %239, %238 : vector<8x128xf32>
    %cst_89 = arith.constant 5.000000e-01 : f32
    %241 = vector.broadcast %cst_89 : f32 to vector<8x128xf32>
    %242 = arith.addf %240, %241 : vector<8x128xf32>
    %243 = arith.mulf %232, %205 : vector<8x128xf32>
    %244 = arith.mulf %224, %234 : vector<8x128xf32>
    %245 = arith.addf %243, %244 : vector<8x128xf32>
    %246 = math.tanh %245 : vector<8x128xf32>
    %247 = arith.mulf %242, %246 : vector<8x128xf32>
    %248 = arith.addf %208, %247 : vector<8x128xf32>
    %c6_i32 = arith.constant 6 : i32
    %249 = arith.index_cast %c6_i32 : i32 to index
    %c0_90 = arith.constant 0 : index
    %c0_91 = arith.constant 0 : index
    %250 = vector.load %arg2[%249, %c0_90, %c0_91] : memref<8x8x16xf32, #tpu.memory_space<vmem>>, vector<1x8x16xf32>
    %251 = vector.shape_cast %250 : vector<1x8x16xf32> to vector<8x16xf32>
    %cst_92 = arith.constant dense<0.000000e+00> : vector<8x512xf32>
    %252 = tpu.matmul %251, %3, %cst_92 {dimension_numbers = #tpu.dot_dimension_numbers<[1], [0], [0], [1], [0, 0, 1, 1], [], []>} : vector<8x16xf32>, vector<16x512xf32>, vector<8x512xf32> -> vector<8x512xf32>
    %253 = vector.broadcast %5 : vector<1x512xf32> to vector<8x512xf32>
    %254 = arith.addf %252, %253 : vector<8x512xf32>
    %cst_93 = arith.constant dense<0.000000e+00> : vector<8x512xf32>
    %255 = tpu.matmul %247, %4, %cst_93 {dimension_numbers = #tpu.dot_dimension_numbers<[1], [0], [0], [1], [0, 0, 1, 1], [], []>} : vector<8x128xf32>, vector<128x512xf32>, vector<8x512xf32> -> vector<8x512xf32>
    %256 = arith.addf %254, %255 : vector<8x512xf32>
    %257 = vector.extract_strided_slice %256 {offsets = [0, 0], sizes = [8, 128], strides = [1, 1]} : vector<8x512xf32> to vector<8x128xf32>
    %cst_94 = arith.constant 5.000000e-01 : f32
    %258 = vector.broadcast %cst_94 : f32 to vector<8x128xf32>
    %259 = arith.mulf %258, %257 : vector<8x128xf32>
    %260 = math.tanh %259 : vector<8x128xf32>
    %cst_95 = arith.constant 5.000000e-01 : f32
    %261 = vector.broadcast %cst_95 : f32 to vector<8x128xf32>
    %262 = arith.mulf %261, %260 : vector<8x128xf32>
    %cst_96 = arith.constant 5.000000e-01 : f32
    %263 = vector.broadcast %cst_96 : f32 to vector<8x128xf32>
    %264 = arith.addf %262, %263 : vector<8x128xf32>
    %265 = vector.extract_strided_slice %256 {offsets = [0, 128], sizes = [8, 128], strides = [1, 1]} : vector<8x512xf32> to vector<8x128xf32>
    %cst_97 = arith.constant 5.000000e-01 : f32
    %266 = vector.broadcast %cst_97 : f32 to vector<8x128xf32>
    %267 = arith.mulf %266, %265 : vector<8x128xf32>
    %268 = math.tanh %267 : vector<8x128xf32>
    %cst_98 = arith.constant 5.000000e-01 : f32
    %269 = vector.broadcast %cst_98 : f32 to vector<8x128xf32>
    %270 = arith.mulf %269, %268 : vector<8x128xf32>
    %cst_99 = arith.constant 5.000000e-01 : f32
    %271 = vector.broadcast %cst_99 : f32 to vector<8x128xf32>
    %272 = arith.addf %270, %271 : vector<8x128xf32>
    %273 = vector.extract_strided_slice %256 {offsets = [0, 256], sizes = [8, 128], strides = [1, 1]} : vector<8x512xf32> to vector<8x128xf32>
    %274 = math.tanh %273 : vector<8x128xf32>
    %275 = vector.extract_strided_slice %256 {offsets = [0, 384], sizes = [8, 128], strides = [1, 1]} : vector<8x512xf32> to vector<8x128xf32>
    %cst_100 = arith.constant 5.000000e-01 : f32
    %276 = vector.broadcast %cst_100 : f32 to vector<8x128xf32>
    %277 = arith.mulf %276, %275 : vector<8x128xf32>
    %278 = math.tanh %277 : vector<8x128xf32>
    %cst_101 = arith.constant 5.000000e-01 : f32
    %279 = vector.broadcast %cst_101 : f32 to vector<8x128xf32>
    %280 = arith.mulf %279, %278 : vector<8x128xf32>
    %cst_102 = arith.constant 5.000000e-01 : f32
    %281 = vector.broadcast %cst_102 : f32 to vector<8x128xf32>
    %282 = arith.addf %280, %281 : vector<8x128xf32>
    %283 = arith.mulf %272, %245 : vector<8x128xf32>
    %284 = arith.mulf %264, %274 : vector<8x128xf32>
    %285 = arith.addf %283, %284 : vector<8x128xf32>
    %286 = math.tanh %285 : vector<8x128xf32>
    %287 = arith.mulf %282, %286 : vector<8x128xf32>
    %288 = arith.addf %248, %287 : vector<8x128xf32>
    %c7_i32 = arith.constant 7 : i32
    %289 = arith.index_cast %c7_i32 : i32 to index
    %c0_103 = arith.constant 0 : index
    %c0_104 = arith.constant 0 : index
    %290 = vector.load %arg2[%289, %c0_103, %c0_104] : memref<8x8x16xf32, #tpu.memory_space<vmem>>, vector<1x8x16xf32>
    %291 = vector.shape_cast %290 : vector<1x8x16xf32> to vector<8x16xf32>
    %cst_105 = arith.constant dense<0.000000e+00> : vector<8x512xf32>
    %292 = tpu.matmul %291, %3, %cst_105 {dimension_numbers = #tpu.dot_dimension_numbers<[1], [0], [0], [1], [0, 0, 1, 1], [], []>} : vector<8x16xf32>, vector<16x512xf32>, vector<8x512xf32> -> vector<8x512xf32>
    %293 = vector.broadcast %5 : vector<1x512xf32> to vector<8x512xf32>
    %294 = arith.addf %292, %293 : vector<8x512xf32>
    %cst_106 = arith.constant dense<0.000000e+00> : vector<8x512xf32>
    %295 = tpu.matmul %287, %4, %cst_106 {dimension_numbers = #tpu.dot_dimension_numbers<[1], [0], [0], [1], [0, 0, 1, 1], [], []>} : vector<8x128xf32>, vector<128x512xf32>, vector<8x512xf32> -> vector<8x512xf32>
    %296 = arith.addf %294, %295 : vector<8x512xf32>
    %297 = vector.extract_strided_slice %296 {offsets = [0, 0], sizes = [8, 128], strides = [1, 1]} : vector<8x512xf32> to vector<8x128xf32>
    %cst_107 = arith.constant 5.000000e-01 : f32
    %298 = vector.broadcast %cst_107 : f32 to vector<8x128xf32>
    %299 = arith.mulf %298, %297 : vector<8x128xf32>
    %300 = math.tanh %299 : vector<8x128xf32>
    %cst_108 = arith.constant 5.000000e-01 : f32
    %301 = vector.broadcast %cst_108 : f32 to vector<8x128xf32>
    %302 = arith.mulf %301, %300 : vector<8x128xf32>
    %cst_109 = arith.constant 5.000000e-01 : f32
    %303 = vector.broadcast %cst_109 : f32 to vector<8x128xf32>
    %304 = arith.addf %302, %303 : vector<8x128xf32>
    %305 = vector.extract_strided_slice %296 {offsets = [0, 128], sizes = [8, 128], strides = [1, 1]} : vector<8x512xf32> to vector<8x128xf32>
    %cst_110 = arith.constant 5.000000e-01 : f32
    %306 = vector.broadcast %cst_110 : f32 to vector<8x128xf32>
    %307 = arith.mulf %306, %305 : vector<8x128xf32>
    %308 = math.tanh %307 : vector<8x128xf32>
    %cst_111 = arith.constant 5.000000e-01 : f32
    %309 = vector.broadcast %cst_111 : f32 to vector<8x128xf32>
    %310 = arith.mulf %309, %308 : vector<8x128xf32>
    %cst_112 = arith.constant 5.000000e-01 : f32
    %311 = vector.broadcast %cst_112 : f32 to vector<8x128xf32>
    %312 = arith.addf %310, %311 : vector<8x128xf32>
    %313 = vector.extract_strided_slice %296 {offsets = [0, 256], sizes = [8, 128], strides = [1, 1]} : vector<8x512xf32> to vector<8x128xf32>
    %314 = math.tanh %313 : vector<8x128xf32>
    %315 = vector.extract_strided_slice %296 {offsets = [0, 384], sizes = [8, 128], strides = [1, 1]} : vector<8x512xf32> to vector<8x128xf32>
    %cst_113 = arith.constant 5.000000e-01 : f32
    %316 = vector.broadcast %cst_113 : f32 to vector<8x128xf32>
    %317 = arith.mulf %316, %315 : vector<8x128xf32>
    %318 = math.tanh %317 : vector<8x128xf32>
    %cst_114 = arith.constant 5.000000e-01 : f32
    %319 = vector.broadcast %cst_114 : f32 to vector<8x128xf32>
    %320 = arith.mulf %319, %318 : vector<8x128xf32>
    %cst_115 = arith.constant 5.000000e-01 : f32
    %321 = vector.broadcast %cst_115 : f32 to vector<8x128xf32>
    %322 = arith.addf %320, %321 : vector<8x128xf32>
    %323 = arith.mulf %312, %285 : vector<8x128xf32>
    %324 = arith.mulf %304, %314 : vector<8x128xf32>
    %325 = arith.addf %323, %324 : vector<8x128xf32>
    %326 = math.tanh %325 : vector<8x128xf32>
    %327 = arith.mulf %322, %326 : vector<8x128xf32>
    %328 = arith.addf %288, %327 : vector<8x128xf32>
    %c8_i32 = arith.constant 8 : i32
    %c0_116 = arith.constant 0 : index
    %c0_117 = arith.constant 0 : index
    %329 = vector.load %arg7[%c0_116, %c0_117] : memref<8x128xf32, #tpu.memory_space<vmem>>, vector<8x128xf32>
    tpu.vector_store %arg7[%c0_116, %c0_117], %327 {strides = array<i32>} : memref<8x128xf32, #tpu.memory_space<vmem>>, vector<8x128xf32>,
    %c0_118 = arith.constant 0 : index
    %c0_119 = arith.constant 0 : index
    %330 = vector.load %arg8[%c0_118, %c0_119] : memref<8x128xf32, #tpu.memory_space<vmem>>, vector<8x128xf32>
    tpu.vector_store %arg8[%c0_118, %c0_119], %325 {strides = array<i32>} : memref<8x128xf32, #tpu.memory_space<vmem>>, vector<8x128xf32>,
    %c0_120 = arith.constant 0 : index
    %c0_121 = arith.constant 0 : index
    %331 = vector.load %arg9[%c0_120, %c0_121] : memref<8x128xf32, #tpu.memory_space<vmem>>, vector<8x128xf32>
    tpu.vector_store %arg9[%c0_120, %c0_121], %328 {strides = array<i32>} : memref<8x128xf32, #tpu.memory_space<vmem>>, vector<8x128xf32>,
    %c0_i32_122 = arith.constant 0 : i32
    %332 = arith.cmpi eq, %arg1, %c0_i32_122 : i32
    %333 = arith.extui %332 : i1 to i32
    %c0_i32_123 = arith.constant 0 : i32
    %334 = arith.cmpi ne, %333, %c0_i32_123 : i32
    scf.if %334 {
      %c0_124 = arith.constant 0 : index
      %c0_125 = arith.constant 0 : index
      %335 = vector.load %arg9[%c0_124, %c0_125] : memref<8x128xf32, #tpu.memory_space<vmem>>, vector<8x1xf32>
      %cst_126 = arith.constant 1.250000e-01 : f32
      %336 = vector.broadcast %cst_126 : f32 to vector<8x1xf32>
      %337 = arith.mulf %335, %336 : vector<8x1xf32>
      %c0_127 = arith.constant 0 : index
      %c0_128 = arith.constant 0 : index
      %338 = vector.load %arg6[%c0_127, %c0_128] : memref<8x1xf32, #tpu.memory_space<vmem>>, vector<8x1xf32>
      tpu.vector_store %arg6[%c0_127, %c0_128], %337 {strides = array<i32>} : memref<8x1xf32, #tpu.memory_space<vmem>>, vector<8x1xf32>,
    } else {
    }
    return
  }
  func.func @transform_0(%arg0: i32, %arg1: i32) -> (i32, i32, i32) {
    %c0_i32 = arith.constant 0 : i32
    %c0_i32_0 = arith.constant 0 : i32
    return %arg1, %arg0, %c0_i32 : i32, i32, i32
  }
  func.func @transform_1(%arg0: i32, %arg1: i32) -> (i32, i32) {
    %c0_i32 = arith.constant 0 : i32
    %c0_i32_0 = arith.constant 0 : i32
    %c0_i32_1 = arith.constant 0 : i32
    return %c0_i32, %c0_i32_0 : i32, i32
  }
  func.func @transform_2(%arg0: i32, %arg1: i32) -> (i32, i32) {
    %c0_i32 = arith.constant 0 : i32
    %c0_i32_0 = arith.constant 0 : i32
    %c0_i32_1 = arith.constant 0 : i32
    return %c0_i32, %c0_i32_0 : i32, i32
  }
  func.func @transform_3(%arg0: i32, %arg1: i32) -> (i32, i32) {
    %c0_i32 = arith.constant 0 : i32
    %c0_i32_0 = arith.constant 0 : i32
    %c0_i32_1 = arith.constant 0 : i32
    return %c0_i32, %c0_i32_0 : i32, i32
  }
  func.func @transform_4(%arg0: i32, %arg1: i32) -> (i32, i32) {
    %c0_i32 = arith.constant 0 : i32
    %c0_i32_0 = arith.constant 0 : i32
    return %arg0, %c0_i32 : i32, i32
  }
}

</mosaic_0001>

<llo_original>
// kernel: tpu_custom_call.1
$region0: #{tpu_custom_call.1}
  #allocation0 [shape = 'u32[]', space=smem, size = 0x4, offset = 0x4, fixed_abs, tag = 'smem constant byte address 0x4 - core index']
  #allocation1 [shape = 'u32[144,128]{1,0:T(1,128)}', space=vmem, size = 0x12000, scoped, tag = 'internal scratch']
  #allocation2 [shape = 'f32[8,128]{1,0:T(8,128)}', space=vmem, size = 0x1000, scoped, tag = 'scratch operand']
  #allocation3 [shape = 'f32[8,128]{1,0:T(8,128)}', space=vmem, size = 0x1000, scoped, tag = 'scratch operand']
  #allocation4 [shape = 'f32[8,128]{1,0:T(8,128)}', space=vmem, size = 0x1000, scoped, tag = 'scratch operand']
  %s0 = inlined_call_operand.hbm [shape: f32[8,8,16], index: 0, kind: input, shape index: {}]
  %s1 = inlined_call_operand.hbm [shape: f32[16,512], index: 1, kind: input, shape index: {}]
  %s2 = inlined_call_operand.hbm [shape: f32[128,512], index: 2, kind: input, shape index: {}]
  %s3 = inlined_call_operand.vmem [shape: f32[1,512], index: 3, kind: input, shape index: {}]
  %s4 = inlined_call_operand.vmem [shape: f32[8,1], index: 4, kind: output, shape index: {}]
  %s5 = sld [smem:[#allocation0]]
  $region46: #{tpu_custom_call.1} parent=0
    _
  %s7 = ssub.s32 1, %s5
  %s8 = scalar_select 0, %s7, %s5
  $region1: #{tpu_custom_call.1} parent=0
    #allocation5 [shape = 'u8[32768]{0}', space=vmem, size = 0x8000, scoped, tag = 'input window, operand 0, single buffered']
    #allocation6 [shape = 's32[1]{0}', space=sflag, size = 0x4, scoped, tag = 'scoped memory for tpu_custom_call.1']
    #allocation7 [shape = 'u8[32768]{0}', space=vmem, size = 0x8000, scoped, tag = 'input window, operand 1, single buffered']
    #allocation8 [shape = 's32[1]{0}', space=sflag, size = 0x4, scoped, tag = 'scoped memory for tpu_custom_call.1']
    #allocation9 [shape = 'u8[262144]{0}', space=vmem, size = 0x40000, scoped, tag = 'input window, operand 2, single buffered']
    %9 = vsyncpa [#allocation6], 0
    %10 = vsyncpa [#allocation8], 0
    // Predicated region
    $region2: #{tpu_custom_call.1} parent=1 // pred_check
      _
    $region3: #{tpu_custom_call.1} parent=1 // pred_check_branch
      %12 = sbr.rel (0) target = $region5
    $region4: #{tpu_custom_call.1} parent=1 // pred_region
      %s14 = ssub.s32 1024, 1024
      %15 = vsyncadd [#allocation6], %s14
      %s16 = sshll.u32 [#allocation5], 4
      %s17 = int_to_ptr.vmem [resolvable:$true] %s16
      %22 = dma.hbm_to_vmem [thread:$0]  %s0, 1024, %s17, [#allocation6], 128, 128, 8
    $region5: #{tpu_custom_call.1} parent=1 // pred_fallthru
      _
    // Predicated region
    $region6: #{tpu_custom_call.1} parent=1 // pred_check
      _
    $region7: #{tpu_custom_call.1} parent=1 // pred_check_branch
      %24 = sbr.rel (0) target = $region9
    $region8: #{tpu_custom_call.1} parent=1 // pred_region
      %s26 = ssub.s32 1024, 1024
      %27 = vsyncadd [#allocation8], %s26
      %s28 = sshll.u32 [#allocation7], 4
      %s29 = int_to_ptr.vmem [resolvable:$true] %s28
      %34 = dma.hbm_to_vmem [thread:$0]  %s1, 1024, %s29, [#allocation8], 512, 512, 32
    $region9: #{tpu_custom_call.1} parent=1 // pred_fallthru
      _
    // Predicated region
    $region10: #{tpu_custom_call.1} parent=1 // pred_check
      _
    $region11: #{tpu_custom_call.1} parent=1 // pred_check_branch
      %36 = sbr.rel (0) target = $region13
    $region12: #{tpu_custom_call.1} parent=1 // pred_region
      %s38 = ssub.s32 8192, 8192
      %39 = vsyncadd [#allocation8], %s38
      %s40 = sshll.u32 [#allocation9], 4
      %s41 = int_to_ptr.vmem [resolvable:$true] %s40
      %46 = dma.hbm_to_vmem [thread:$0]  %s2, 8192, %s41, [#allocation8], 512, 512, 32
    $region13: #{tpu_custom_call.1} parent=1 // pred_fallthru
      _
    // Predicated region
    $region14: #{tpu_custom_call.1} parent=1 // pred_check
      _
    $region15: #{tpu_custom_call.1} parent=1 // pred_check_branch
      %48 = sbr.rel (0) target = $region17
    $region16: #{tpu_custom_call.1} parent=1 // pred_region
      _
    $region17: #{tpu_custom_call.1} parent=1 // pred_fallthru
      _
    // Predicated region
    $region18: #{tpu_custom_call.1} parent=1 // pred_check
      _
    $region19: #{tpu_custom_call.1} parent=1 // pred_check_branch
      %50 = sbr.rel (0) target = $region21
    $region20: #{tpu_custom_call.1} parent=1 // pred_region
      %51 = dma.done [#allocation6], 1024
    $region21: #{tpu_custom_call.1} parent=1 // pred_fallthru
      _
    // Predicated region
    $region22: #{tpu_custom_call.1} parent=1 // pred_check
      _
    $region23: #{tpu_custom_call.1} parent=1 // pred_check_branch
      %53 = sbr.rel (0) target = $region25
    $region24: #{tpu_custom_call.1} parent=1 // pred_region
      %54 = dma.done [#allocation8], 1024
    $region25: #{tpu_custom_call.1} parent=1 // pred_fallthru
      _
    // Predicated region
    $region26: #{tpu_custom_call.1} parent=1 // pred_check
      _
    $region27: #{tpu_custom_call.1} parent=1 // pred_check_branch
      %56 = sbr.rel (0) target = $region29
    $region28: #{tpu_custom_call.1} parent=1 // pred_region
      %57 = dma.done [#allocation8], 8192
    $region29: #{tpu_custom_call.1} parent=1 // pred_fallthru
      _
    %p58 = scmp.eq.s32.totalorder 0, 0
    // Predicated region
    $region30: #{tpu_custom_call.1} parent=1 // pred_check
      %p59 = pneg %p58
    $region31: #{tpu_custom_call.1} parent=1 // pred_check_branch
      %61 = sbr.rel (%p59) target = $region33
    $region32: #{tpu_custom_call.1} parent=1 // pred_region
      %62 = vst [vmem:[#allocation2] sm:$0xff] 0.0
      %63 = vst [vmem:[#allocation3] sm:$0xff] 0.0
      %64 = vst [vmem:[#allocation4] sm:$0xff] 0.0
    $region33: #{tpu_custom_call.1} parent=1 // pred_fallthru
      _
    %v65 = vld [vmem:[#allocation7] sm:$0xff]
    %v66 = vld [vmem:[#allocation7 + $0x8] sm:$0xff]
    %v67 = vld [vmem:[#allocation7 + $0x10] sm:$0xff]
    %v68 = vld [vmem:[#allocation7 + $0x18] sm:$0xff]
    %v69 = vld [vmem:[#allocation7 + $0x20] sm:$0xff]
    %v70 = vld [vmem:[#allocation7 + $0x28] sm:$0xff]
    %v71 = vld [vmem:[#allocation7 + $0x30] sm:$0xff]
    %v72 = vld [vmem:[#allocation7 + $0x38] sm:$0xff]
    %v73 = vld [vmem:[#allocation9] sm:$0xff]
    %v74 = vld [vmem:[#allocation9 + $0x8] sm:$0xff]
    %v75 = vld [vmem:[#allocation9 + $0x10] sm:$0xff]
    %v76 = vld [vmem:[#allocation9 + $0x18] sm:$0xff]
    %v77 = vld [vmem:[#allocation9 + $0x20] sm:$0xff]
    %v78 = vld [vmem:[#allocation9 + $0x28] sm:$0xff]
    %v79 = vld [vmem:[#allocation9 + $0x30] sm:$0xff]
    %v80 = vld [vmem:[#allocation9 + $0x38] sm:$0xff]
    %v81 = vld [vmem:[#allocation9 + $0x40] sm:$0xff]
    %v82 = vld [vmem:[#allocation9 + $0x48] sm:$0xff]
    %v83 = vld [vmem:[#allocation9 + $0x50] sm:$0xff]
    %v84 = vld [vmem:[#allocation9 + $0x58] sm:$0xff]
    %v85 = vld [vmem:[#allocation9 + $0x60] sm:$0xff]
    %v86 = vld [vmem:[#allocation9 + $0x68] sm:$0xff]
    %v87 = vld [vmem:[#allocation9 + $0x70] sm:$0xff]
    %v88 = vld [vmem:[#allocation9 + $0x78] sm:$0xff]
    %v89 = vld [vmem:[#allocation9 + $0x80] sm:$0xff]
    %v90 = vld [vmem:[#allocation9 + $0x88] sm:$0xff]
    %v91 = vld [vmem:[#allocation9 + $0x90] sm:$0xff]
    %v92 = vld [vmem:[#allocation9 + $0x98] sm:$0xff]
    %v93 = vld [vmem:[#allocation9 + $0xa0] sm:$0xff]
    %v94 = vld [vmem:[#allocation9 + $0xa8] sm:$0xff]
    %v95 = vld [vmem:[#allocation9 + $0xb0] sm:$0xff]
    %v96 = vld [vmem:[#allocation9 + $0xb8] sm:$0xff]
    %v97 = vld [vmem:[#allocation9 + $0xc0] sm:$0xff]
    %v98 = vld [vmem:[#allocation9 + $0xc8] sm:$0xff]
    %v99 = vld [vmem:[#allocation9 + $0xd0] sm:$0xff]
    %v100 = vld [vmem:[#allocation9 + $0xd8] sm:$0xff]
    %v101 = vld [vmem:[#allocation9 + $0xe0] sm:$0xff]
    %v102 = vld [vmem:[#allocation9 + $0xe8] sm:$0xff]
    %v103 = vld [vmem:[#allocation9 + $0xf0] sm:$0xff]
    %v104 = vld [vmem:[#allocation9 + $0xf8] sm:$0xff]
    %v105 = vld [vmem:[#allocation9 + $0x100] sm:$0xff]
    %v106 = vld [vmem:[#allocation9 + $0x108] sm:$0xff]
    %v107 = vld [vmem:[#allocation9 + $0x110] sm:$0xff]
    %v108 = vld [vmem:[#allocation9 + $0x118] sm:$0xff]
    %v109 = vld [vmem:[#allocation9 + $0x120] sm:$0xff]
    %v110 = vld [vmem:[#allocation9 + $0x128] sm:$0xff]
    %v111 = vld [vmem:[#allocation9 + $0x130] sm:$0xff]
    %v112 = vld [vmem:[#allocation9 + $0x138] sm:$0xff]
    %v113 = vld [vmem:[#allocation9 + $0x140] sm:$0xff]
    %v114 = vld [vmem:[#allocation9 + $0x148] sm:$0xff]
    %v115 = vld [vmem:[#allocation9 + $0x150] sm:$0xff]
    %v116 = vld [vmem:[#allocation9 + $0x158] sm:$0xff]
    %v117 = vld [vmem:[#allocation9 + $0x160] sm:$0xff]
    %v118 = vld [vmem:[#allocation9 + $0x168] sm:$0xff]
    %v119 = vld [vmem:[#allocation9 + $0x170] sm:$0xff]
    %v120 = vld [vmem:[#allocation9 + $0x178] sm:$0xff]
    %v121 = vld [vmem:[#allocation9 + $0x180] sm:$0xff]
    %v122 = vld [vmem:[#allocation9 + $0x188] sm:$0xff]
    %v123 = vld [vmem:[#allocation9 + $0x190] sm:$0xff]
    %v124 = vld [vmem:[#allocation9 + $0x198] sm:$0xff]
    %v125 = vld [vmem:[#allocation9 + $0x1a0] sm:$0xff]
    %v126 = vld [vmem:[#allocation9 + $0x1a8] sm:$0xff]
    %v127 = vld [vmem:[#allocation9 + $0x1b0] sm:$0xff]
    %v128 = vld [vmem:[#allocation9 + $0x1b8] sm:$0xff]
    %v129 = vld [vmem:[#allocation9 + $0x1c0] sm:$0xff]
    %v130 = vld [vmem:[#allocation9 + $0x1c8] sm:$0xff]
    %v131 = vld [vmem:[#allocation9 + $0x1d0] sm:$0xff]
    %v132 = vld [vmem:[#allocation9 + $0x1d8] sm:$0xff]
    %v133 = vld [vmem:[#allocation9 + $0x1e0] sm:$0xff]
    %v134 = vld [vmem:[#allocation9 + $0x1e8] sm:$0xff]
    %v135 = vld [vmem:[#allocation9 + $0x1f0] sm:$0xff]
    %v136 = vld [vmem:[#allocation9 + $0x1f8] sm:$0xff]
    %v137 = vld [vmem:[%s3] sm:$0xf]
    %v138 = vld [vmem:[#allocation2] sm:$0xff]
    %v139 = vld [vmem:[#allocation3] sm:$0xff]
    %v140 = vld [vmem:[#allocation4] sm:$0xff]
    %v141 = vld [vmem:[#allocation5] sm:$0xff]
    %v143 = vlaneseq
    %v144 = vshrl.u32 %v143, 7
    %v145 = vsub.s32 0, %v144
    %v146 = vrot.slane %v137, %v145
    %v147 = vlaneseq
    %v148 = vshrl.u32 %v147, 7
    %v149 = vsub.s32 1, %v148
    %v150 = vrot.slane %v137, %v149
    %v151 = vlaneseq
    %v152 = vshrl.u32 %v151, 7
    %v153 = vsub.s32 2, %v152
    %v154 = vrot.slane %v137, %v153
    %v155 = vlaneseq
    %v156 = vshrl.u32 %v155, 7
    %v157 = vsub.s32 3, %v156
    %v158 = vrot.slane %v137, %v157
    %vm163 = vcmask 130048
    %v165 = vsel %vm163, %v141, 0
    %167 = vmatprep.subr.mxu0 %v66
    %168 = vmatpush1.msra.mxu0 %v65
    %169 = vmatprep.subr.mxu0 %v70
    %170 = vmatpush1.msra.mxu0 %v69
    %171 = vmatprep.subr.mxu0 0.0
    %172 = vmatpush1.msra.mxu0 0.0
    %173 = vmatprep.subr.mxu0 0.0
    %174 = vmatpush1.msra.mxu0 0.0
    %175 = vmatprep.subr.mxu0 0.0
    %176 = vmatpush1.msra.mxu0 0.0
    %177 = vmatprep.subr.mxu0 0.0
    %178 = vmatpush1.msra.mxu0 0.0
    %179 = vmatprep.subr.mxu0 0.0
    %180 = vmatpush1.msra.mxu0 0.0
    %181 = vmatprep.subr.mxu0 0.0
    %182 = vmatpush1.msra.mxu0 0.0
    %183 = vmatprep.subr.mxu0 0.0
    %184 = vmatpush1.msra.mxu0 0.0
    %185 = vmatprep.subr.mxu0 0.0
    %186 = vmatpush1.msra.mxu0 0.0
    %187 = vmatprep.subr.mxu0 0.0
    %188 = vmatpush1.msra.mxu0 0.0
    %189 = vmatprep.subr.mxu0 0.0
    %190 = vmatpush1.msra.mxu0 0.0
    %191 = vmatprep.subr.mxu0 0.0
    %192 = vmatpush1.msra.mxu0 0.0
    %193 = vmatprep.subr.mxu0 0.0
    %194 = vmatpush1.msra.mxu0 0.0
    %195 = vmatprep.subr.mxu0 0.0
    %196 = vmatpush1.msra.mxu0 0.0
    %197 = vmatprep.subr.mxu0 0.0
    %198 = vmatpush1.msra.mxu0 0.0
    %199 = vmatprep.subr.mxu0 0.0
    %200 = vmatpush1.msra.mxu0 0.0
    %201 = vmatprep.subr.mxu0 0.0
    %202 = vmatpush1.msra.mxu0 0.0
    %203 = vmatprep.subr.mxu0 0.0
    %204 = vmatpush1.msra.mxu0 0.0
    %205 = vmatprep.subr.mxu0 0.0
    %206 = vmatpush1.msra.mxu0 0.0
    %207 = vmatprep.subr.mxu0 0.0
    %208 = vmatpush1.msra.mxu0 0.0
    %209 = vmatprep.subr.mxu0 0.0
    %210 = vmatpush1.msra.mxu0 0.0
    %211 = vmatprep.subr.mxu0 0.0
    %212 = vmatpush1.msra.mxu0 0.0
    %213 = vmatprep.subr.mxu0 0.0
    %214 = vmatpush1.msra.mxu0 0.0
    %215 = vmatprep.subr.mxu0 0.0
    %216 = vmatpush1.msra.mxu0 0.0
    %217 = vmatprep.subr.mxu0 0.0
    %218 = vmatpush1.msra.mxu0 0.0
    %219 = vmatprep.subr.mxu0 0.0
    %220 = vmatpush1.msra.mxu0 0.0
    %221 = vmatprep.subr.mxu0 0.0
    %222 = vmatpush1.msra.mxu0 0.0
    %223 = vmatprep.subr.mxu0 0.0
    %224 = vmatpush1.msra.mxu0 0.0
    %225 = vmatprep.subr.mxu0 0.0
    %226 = vmatpush1.msra.mxu0 0.0
    %227 = vmatprep.subr.mxu0 0.0
    %228 = vmatpush1.msra.mxu0 0.0
    %229 = vmatprep.subr.mxu0 0.0
    %230 = vmatpush1.msra.mxu0 0.0
    %231 = vmatprep.mubr.f32.mxu0 0.0
    %232 = vmatmul.mubr.f32.gmra.mrb[0].mxu0 %v165
    %v233 = vpop.f32.mrb[0].mxu0
    %v234 = vadd.f32 %v146, %v233
    %v235 = vpop.f32.mrb[0].mxu0
    %v236 = vadd.f32 %v150, %v235
    %237 = vdwg.mxu0
    %238 = vmatprep.subr.mxu0 %v68
    %239 = vmatpush1.msra.mxu0 %v67
    %240 = vmatprep.subr.mxu0 %v72
    %241 = vmatpush1.msra.mxu0 %v71
    %242 = vmatprep.subr.mxu0 0.0
    %243 = vmatpush1.msra.mxu0 0.0
    %244 = vmatprep.subr.mxu0 0.0
    %245 = vmatpush1.msra.mxu0 0.0
    %246 = vmatprep.subr.mxu0 0.0
    %247 = vmatpush1.msra.mxu0 0.0
    %248 = vmatprep.subr.mxu0 0.0
    %249 = vmatpush1.msra.mxu0 0.0
    %250 = vmatprep.subr.mxu0 0.0
    %251 = vmatpush1.msra.mxu0 0.0
    %252 = vmatprep.subr.mxu0 0.0
    %253 = vmatpush1.msra.mxu0 0.0
    %254 = vmatprep.subr.mxu0 0.0
    %255 = vmatpush1.msra.mxu0 0.0
    %256 = vmatprep.subr.mxu0 0.0
    %257 = vmatpush1.msra.mxu0 0.0
    %258 = vmatprep.subr.mxu0 0.0
    %259 = vmatpush1.msra.mxu0 0.0
    %260 = vmatprep.subr.mxu0 0.0
    %261 = vmatpush1.msra.mxu0 0.0
    %262 = vmatprep.subr.mxu0 0.0
    %263 = vmatpush1.msra.mxu0 0.0
    %264 = vmatprep.subr.mxu0 0.0
    %265 = vmatpush1.msra.mxu0 0.0
    %266 = vmatprep.subr.mxu0 0.0
    %267 = vmatpush1.msra.mxu0 0.0
    %268 = vmatprep.subr.mxu0 0.0
    %269 = vmatpush1.msra.mxu0 0.0
    %270 = vmatprep.subr.mxu0 0.0
    %271 = vmatpush1.msra.mxu0 0.0
    %272 = vmatprep.subr.mxu0 0.0
    %273 = vmatpush1.msra.mxu0 0.0
    %274 = vmatprep.subr.mxu0 0.0
    %275 = vmatpush1.msra.mxu0 0.0
    %276 = vmatprep.subr.mxu0 0.0
    %277 = vmatpush1.msra.mxu0 0.0
    %278 = vmatprep.subr.mxu0 0.0
    %279 = vmatpush1.msra.mxu0 0.0
    %280 = vmatprep.subr.mxu0 0.0
    %281 = vmatpush1.msra.mxu0 0.0
    %282 = vmatprep.subr.mxu0 0.0
    %283 = vmatpush1.msra.mxu0 0.0
    %284 = vmatprep.subr.mxu0 0.0
    %285 = vmatpush1.msra.mxu0 0.0
    %286 = vmatprep.subr.mxu0 0.0
    %287 = vmatpush1.msra.mxu0 0.0
    %288 = vmatprep.subr.mxu0 0.0
    %289 = vmatpush1.msra.mxu0 0.0
    %290 = vmatprep.subr.mxu0 0.0
    %291 = vmatpush1.msra.mxu0 0.0
    %292 = vmatprep.subr.mxu0 0.0
    %293 = vmatpush1.msra.mxu0 0.0
    %294 = vmatprep.subr.mxu0 0.0
    %295 = vmatpush1.msra.mxu0 0.0
    %296 = vmatprep.subr.mxu0 0.0
    %297 = vmatpush1.msra.mxu0 0.0
    %298 = vmatprep.subr.mxu0 0.0
    %299 = vmatpush1.msra.mxu0 0.0
    %300 = vmatprep.subr.mxu0 0.0
    %301 = vmatpush1.msra.mxu0 0.0
    %302 = vmatprep.mubr.f32.mxu0 0.0
    %303 = vmatmul.mubr.f32.gmra.mrb[0].mxu0 %v165
    %v304 = vpop.f32.mrb[0].mxu0
    %v305 = vadd.f32 %v154, %v304
    %v306 = vpop.f32.mrb[0].mxu0
    %v307 = vadd.f32 %v158, %v306
    %308 = vdwg.mxu0
    %309 = vmatprep.subr.mxu0 %v74
    %310 = vmatpush1.msra.mxu0 %v73
    %311 = vmatprep.subr.mxu0 %v78
    %312 = vmatpush1.msra.mxu0 %v77
    %313 = vmatprep.subr.mxu0 %v82
    %314 = vmatpush1.msra.mxu0 %v81
    %315 = vmatprep.subr.mxu0 %v86
    %316 = vmatpush1.msra.mxu0 %v85
    %317 = vmatprep.subr.mxu0 %v90
    %318 = vmatpush1.msra.mxu0 %v89
    %319 = vmatprep.subr.mxu0 %v94
    %320 = vmatpush1.msra.mxu0 %v93
    %321 = vmatprep.subr.mxu0 %v98
    %322 = vmatpush1.msra.mxu0 %v97
    %323 = vmatprep.subr.mxu0 %v102
    %324 = vmatpush1.msra.mxu0 %v101
    %325 = vmatprep.subr.mxu0 %v106
    %326 = vmatpush1.msra.mxu0 %v105
    %327 = vmatprep.subr.mxu0 %v110
    %328 = vmatpush1.msra.mxu0 %v109
    %329 = vmatprep.subr.mxu0 %v114
    %330 = vmatpush1.msra.mxu0 %v113
    %331 = vmatprep.subr.mxu0 %v118
    %332 = vmatpush1.msra.mxu0 %v117
    %333 = vmatprep.subr.mxu0 %v122
    %334 = vmatpush1.msra.mxu0 %v121
    %335 = vmatprep.subr.mxu0 %v126
    %336 = vmatpush1.msra.mxu0 %v125
    %337 = vmatprep.subr.mxu0 %v130
    %338 = vmatpush1.msra.mxu0 %v129
    %339 = vmatprep.subr.mxu0 %v134
    %340 = vmatpush1.msra.mxu0 %v133
    %341 = vmatprep.subr.mxu0 0.0
    %342 = vmatpush1.msra.mxu0 0.0
    %343 = vmatprep.subr.mxu0 0.0
    %344 = vmatpush1.msra.mxu0 0.0
    %345 = vmatprep.subr.mxu0 0.0
    %346 = vmatpush1.msra.mxu0 0.0
    %347 = vmatprep.subr.mxu0 0.0
    %348 = vmatpush1.msra.mxu0 0.0
    %349 = vmatprep.subr.mxu0 0.0
    %350 = vmatpush1.msra.mxu0 0.0
    %351 = vmatprep.subr.mxu0 0.0
    %352 = vmatpush1.msra.mxu0 0.0
    %353 = vmatprep.subr.mxu0 0.0
    %354 = vmatpush1.msra.mxu0 0.0
    %355 = vmatprep.subr.mxu0 0.0
    %356 = vmatpush1.msra.mxu0 0.0
    %357 = vmatprep.subr.mxu0 0.0
    %358 = vmatpush1.msra.mxu0 0.0
    %359 = vmatprep.subr.mxu0 0.0
    %360 = vmatpush1.msra.mxu0 0.0
    %361 = vmatprep.subr.mxu0 0.0
    %362 = vmatpush1.msra.mxu0 0.0
    %363 = vmatprep.subr.mxu0 0.0
    %364 = vmatpush1.msra.mxu0 0.0
    %365 = vmatprep.subr.mxu0 0.0
    %366 = vmatpush1.msra.mxu0 0.0
    %367 = vmatprep.subr.mxu0 0.0
    %368 = vmatpush1.msra.mxu0 0.0
    %369 = vmatprep.subr.mxu0 0.0
    %370 = vmatpush1.msra.mxu0 0.0
    %371 = vmatprep.subr.mxu0 0.0
    %372 = vmatpush1.msra.mxu0 0.0
    %373 = vmatprep.mubr.f32.mxu0 0.0
    %374 = vmatmul.mubr.f32.gmra.mrb[0].mxu0 %v138
    %v375 = vpop.f32.mrb[0].mxu0
    %v376 = vadd.f32 0.0, %v375
    %v377 = vpop.f32.mrb[0].mxu0
    %v378 = vadd.f32 0.0, %v377
    %379 = vdwg.mxu0
    %380 = vmatprep.subr.mxu0 %v76
    %381 = vmatpush1.msra.mxu0 %v75
    %382 = vmatprep.subr.mxu0 %v80
    %383 = vmatpush1.msra.mxu0 %v79
    %384 = vmatprep.subr.mxu0 %v84
    %385 = vmatpush1.msra.mxu0 %v83
    %386 = vmatprep.subr.mxu0 %v88
    %387 = vmatpush1.msra.mxu0 %v87
    %388 = vmatprep.subr.mxu0 %v92
    %389 = vmatpush1.msra.mxu0 %v91
    %390 = vmatprep.subr.mxu0 %v96
    %391 = vmatpush1.msra.mxu0 %v95
    %392 = vmatprep.subr.mxu0 %v100
    %393 = vmatpush1.msra.mxu0 %v99
    %394 = vmatprep.subr.mxu0 %v104
    %395 = vmatpush1.msra.mxu0 %v103
    %396 = vmatprep.subr.mxu0 %v108
    %397 = vmatpush1.msra.mxu0 %v107
    %398 = vmatprep.subr.mxu0 %v112
    %399 = vmatpush1.msra.mxu0 %v111
    %400 = vmatprep.subr.mxu0 %v116
    %401 = vmatpush1.msra.mxu0 %v115
    %402 = vmatprep.subr.mxu0 %v120
    %403 = vmatpush1.msra.mxu0 %v119
    %404 = vmatprep.subr.mxu0 %v124
    %405 = vmatpush1.msra.mxu0 %v123
    %406 = vmatprep.subr.mxu0 %v128
    %407 = vmatpush1.msra.mxu0 %v127
    %408 = vmatprep.subr.mxu0 %v132
    %409 = vmatpush1.msra.mxu0 %v131
    %410 = vmatprep.subr.mxu0 %v136
    %411 = vmatpush1.msra.mxu0 %v135
    %412 = vmatprep.subr.mxu0 0.0
    %413 = vmatpush1.msra.mxu0 0.0
    %414 = vmatprep.subr.mxu0 0.0
    %415 = vmatpush1.msra.mxu0 0.0
    %416 = vmatprep.subr.mxu0 0.0
    %417 = vmatpush1.msra.mxu0 0.0
    %418 = vmatprep.subr.mxu0 0.0
    %419 = vmatpush1.msra.mxu0 0.0
    %420 = vmatprep.subr.mxu0 0.0
    %421 = vmatpush1.msra.mxu0 0.0
    %422 = vmatprep.subr.mxu0 0.0
    %423 = vmatpush1.msra.mxu0 0.0
    %424 = vmatprep.subr.mxu0 0.0
    %425 = vmatpush1.msra.mxu0 0.0
    %426 = vmatprep.subr.mxu0 0.0
    %427 = vmatpush1.msra.mxu0 0.0
    %428 = vmatprep.subr.mxu0 0.0
    %429 = vmatpush1.msra.mxu0 0.0
    %430 = vmatprep.subr.mxu0 0.0
    %431 = vmatpush1.msra.mxu0 0.0
    %432 = vmatprep.subr.mxu0 0.0
    %433 = vmatpush1.msra.mxu0 0.0
    %434 = vmatprep.subr.mxu0 0.0
    %435 = vmatpush1.msra.mxu0 0.0
    %436 = vmatprep.subr.mxu0 0.0
    %437 = vmatpush1.msra.mxu0 0.0
    %438 = vmatprep.subr.mxu0 0.0
    %439 = vmatpush1.msra.mxu0 0.0
    %440 = vmatprep.subr.mxu0 0.0
    %441 = vmatpush1.msra.mxu0 0.0
    %442 = vmatprep.subr.mxu0 0.0
    %443 = vmatpush1.msra.mxu0 0.0
    %444 = vmatprep.mubr.f32.mxu0 0.0
    %445 = vmatmul.mubr.f32.gmra.mrb[0].mxu0 %v138
    %v446 = vpop.f32.mrb[0].mxu0
    %v447 = vadd.f32 0.0, %v446
    %v448 = vpop.f32.mrb[0].mxu0
    %v449 = vadd.f32 0.0, %v448
    %450 = vdwg.mxu0
    %v451 = vadd.f32 %v234, %v376
    %v452 = vadd.f32 %v236, %v378
    %v453 = vadd.f32 %v305, %v447
    %v454 = vadd.f32 %v307, %v449
    %v455 = vmul.f32 %v451, 0.5
    %v456 = vtanh.pop %v455
    %v457 = vmul.f32 %v456, 0.5
    %v458 = vadd.f32 %v457, 0.5
    %v459 = vmul.f32 %v452, 0.5
    %v460 = vtanh.pop %v459
    %v461 = vmul.f32 %v460, 0.5
    %v462 = vadd.f32 %v461, 0.5
    %v463 = vtanh.pop %v453
    %v464 = vmul.f32 %v454, 0.5
    %v465 = vtanh.pop %v464
    %v466 = vmul.f32 %v465, 0.5
    %v467 = vadd.f32 %v466, 0.5
    %v468 = vmul.f32 %v462, %v139
    %v469 = vmul.f32 %v458, %v463
    %v470 = vadd.f32 %v468, %v469
    %v471 = vtanh.pop %v470
    %v472 = vmul.f32 %v467, %v471
    %v473 = vadd.f32 %v140, %v472
    %s474 = scalar_lea.vmem [#allocation5], 8
    %v475 = vld [vmem:[%s474] sm:$0xff]
    %v477 = vsel %vm163, %v475, 0
    %479 = vmatprep.subr.mxu0 %v66
    %480 = vmatpush1.msra.mxu0 %v65
    %481 = vmatprep.subr.mxu0 %v70
    %482 = vmatpush1.msra.mxu0 %v69
    %483 = vmatprep.subr.mxu0 0.0
    %484 = vmatpush1.msra.mxu0 0.0
    %485 = vmatprep.subr.mxu0 0.0
    %486 = vmatpush1.msra.mxu0 0.0
    %487 = vmatprep.subr.mxu0 0.0
    %488 = vmatpush1.msra.mxu0 0.0
    %489 = vmatprep.subr.mxu0 0.0
    %490 = vmatpush1.msra.mxu0 0.0
    %491 = vmatprep.subr.mxu0 0.0
    %492 = vmatpush1.msra.mxu0 0.0
    %493 = vmatprep.subr.mxu0 0.0
    %494 = vmatpush1.msra.mxu0 0.0
    %495 = vmatprep.subr.mxu0 0.0
    %496 = vmatpush1.msra.mxu0 0.0
    %497 = vmatprep.subr.mxu0 0.0
    %498 = vmatpush1.msra.mxu0 0.0
    %499 = vmatprep.subr.mxu0 0.0
    %500 = vmatpush1.msra.mxu0 0.0
    %501 = vmatprep.subr.mxu0 0.0
    %502 = vmatpush1.msra.mxu0 0.0
    %503 = vmatprep.subr.mxu0 0.0
    %504 = vmatpush1.msra.mxu0 0.0
    %505 = vmatprep.subr.mxu0 0.0
    %506 = vmatpush1.msra.mxu0 0.0
    %507 = vmatprep.subr.mxu0 0.0
    %508 = vmatpush1.msra.mxu0 0.0
    %509 = vmatprep.subr.mxu0 0.0
    %510 = vmatpush1.msra.mxu0 0.0
    %511 = vmatprep.subr.mxu0 0.0
    %512 = vmatpush1.msra.mxu0 0.0
    %513 = vmatprep.subr.mxu0 0.0
    %514 = vmatpush1.msra.mxu0 0.0
    %515 = vmatprep.subr.mxu0 0.0
    %516 = vmatpush1.msra.mxu0 0.0
    %517 = vmatprep.subr.mxu0 0.0
    %518 = vmatpush1.msra.mxu0 0.0
    %519 = vmatprep.subr.mxu0 0.0
    %520 = vmatpush1.msra.mxu0 0.0
    %521 = vmatprep.subr.mxu0 0.0
    %522 = vmatpush1.msra.mxu0 0.0
    %523 = vmatprep.subr.mxu0 0.0
    %524 = vmatpush1.msra.mxu0 0.0
    %525 = vmatprep.subr.mxu0 0.0
    %526 = vmatpush1.msra.mxu0 0.0
    %527 = vmatprep.subr.mxu0 0.0
    %528 = vmatpush1.msra.mxu0 0.0
    %529 = vmatprep.subr.mxu0 0.0
    %530 = vmatpush1.msra.mxu0 0.0
    %531 = vmatprep.subr.mxu0 0.0
    %532 = vmatpush1.msra.mxu0 0.0
    %533 = vmatprep.subr.mxu0 0.0
    %534 = vmatpush1.msra.mxu0 0.0
    %535 = vmatprep.subr.mxu0 0.0
    %536 = vmatpush1.msra.mxu0 0.0
    %537 = vmatprep.subr.mxu0 0.0
    %538 = vmatpush1.msra.mxu0 0.0
    %539 = vmatprep.subr.mxu0 0.0
    %540 = vmatpush1.msra.mxu0 0.0
    %541 = vmatprep.subr.mxu0 0.0
    %542 = vmatpush1.msra.mxu0 0.0
    %543 = vmatprep.mubr.f32.mxu0 0.0
    %544 = vmatmul.mubr.f32.gmra.mrb[0].mxu0 %v477
    %v545 = vpop.f32.mrb[0].mxu0
    %v546 = vadd.f32 %v146, %v545
    %v547 = vpop.f32.mrb[0].mxu0
    %v548 = vadd.f32 %v150, %v547
    %549 = vdwg.mxu0
    %550 = vmatprep.subr.mxu0 %v68
    %551 = vmatpush1.msra.mxu0 %v67
    %552 = vmatprep.subr.mxu0 %v72
    %553 = vmatpush1.msra.mxu0 %v71
    %554 = vmatprep.subr.mxu0 0.0
    %555 = vmatpush1.msra.mxu0 0.0
    %556 = vmatprep.subr.mxu0 0.0
    %557 = vmatpush1.msra.mxu0 0.0
    %558 = vmatprep.subr.mxu0 0.0
    %559 = vmatpush1.msra.mxu0 0.0
    %560 = vmatprep.subr.mxu0 0.0
    %561 = vmatpush1.msra.mxu0 0.0
    %562 = vmatprep.subr.mxu0 0.0
    %563 = vmatpush1.msra.mxu0 0.0
    %564 = vmatprep.subr.mxu0 0.0
    %565 = vmatpush1.msra.mxu0 0.0
    %566 = vmatprep.subr.mxu0 0.0
    %567 = vmatpush1.msra.mxu0 0.0
    %568 = vmatprep.subr.mxu0 0.0
    %569 = vmatpush1.msra.mxu0 0.0
    %570 = vmatprep.subr.mxu0 0.0
    %571 = vmatpush1.msra.mxu0 0.0
    %572 = vmatprep.subr.mxu0 0.0
    %573 = vmatpush1.msra.mxu0 0.0
    %574 = vmatprep.subr.mxu0 0.0
    %575 = vmatpush1.msra.mxu0 0.0
    %576 = vmatprep.subr.mxu0 0.0
    %577 = vmatpush1.msra.mxu0 0.0
    %578 = vmatprep.subr.mxu0 0.0
    %579 = vmatpush1.msra.mxu0 0.0
    %580 = vmatprep.subr.mxu0 0.0
    %581 = vmatpush1.msra.mxu0 0.0
    %582 = vmatprep.subr.mxu0 0.0
    %583 = vmatpush1.msra.mxu0 0.0
    %584 = vmatprep.subr.mxu0 0.0
    %585 = vmatpush1.msra.mxu0 0.0
    %586 = vmatprep.subr.mxu0 0.0
    %587 = vmatpush1.msra.mxu0 0.0
    %588 = vmatprep.subr.mxu0 0.0
    %589 = vmatpush1.msra.mxu0 0.0
    %590 = vmatprep.subr.mxu0 0.0
    %591 = vmatpush1.msra.mxu0 0.0
    %592 = vmatprep.subr.mxu0 0.0
    %593 = vmatpush1.msra.mxu0 0.0
    %594 = vmatprep.subr.mxu0 0.0
    %595 = vmatpush1.msra.mxu0 0.0
    %596 = vmatprep.subr.mxu0 0.0
    %597 = vmatpush1.msra.mxu0 0.0
    %598 = vmatprep.subr.mxu0 0.0
    %599 = vmatpush1.msra.mxu0 0.0
    %600 = vmatprep.subr.mxu0 0.0
    %601 = vmatpush1.msra.mxu0 0.0
    %602 = vmatprep.subr.mxu0 0.0
    %603 = vmatpush1.msra.mxu0 0.0
    %604 = vmatprep.subr.mxu0 0.0
    %605 = vmatpush1.msra.mxu0 0.0
    %606 = vmatprep.subr.mxu0 0.0
    %607 = vmatpush1.msra.mxu0 0.0
    %608 = vmatprep.subr.mxu0 0.0
    %609 = vmatpush1.msra.mxu0 0.0
    %610 = vmatprep.subr.mxu0 0.0
    %611 = vmatpush1.msra.mxu0 0.0
    %612 = vmatprep.subr.mxu0 0.0
    %613 = vmatpush1.msra.mxu0 0.0
    %614 = vmatprep.mubr.f32.mxu0 0.0
    %615 = vmatmul.mubr.f32.gmra.mrb[0].mxu0 %v477
    %v616 = vpop.f32.mrb[0].mxu0
    %v617 = vadd.f32 %v154, %v616
    %v618 = vpop.f32.mrb[0].mxu0
    %v619 = vadd.f32 %v158, %v618
    %620 = vdwg.mxu0
    %621 = vmatprep.subr.mxu0 %v74
    %622 = vmatpush1.msra.mxu0 %v73
    %623 = vmatprep.subr.mxu0 %v78
    %624 = vmatpush1.msra.mxu0 %v77
    %625 = vmatprep.subr.mxu0 %v82
    %626 = vmatpush1.msra.mxu0 %v81
    %627 = vmatprep.subr.mxu0 %v86
    %628 = vmatpush1.msra.mxu0 %v85
    %629 = vmatprep.subr.mxu0 %v90
    %630 = vmatpush1.msra.mxu0 %v89
    %631 = vmatprep.subr.mxu0 %v94
    %632 = vmatpush1.msra.mxu0 %v93
    %633 = vmatprep.subr.mxu0 %v98
    %634 = vmatpush1.msra.mxu0 %v97
    %635 = vmatprep.subr.mxu0 %v102
    %636 = vmatpush1.msra.mxu0 %v101
    %637 = vmatprep.subr.mxu0 %v106
    %638 = vmatpush1.msra.mxu0 %v105
    %639 = vmatprep.subr.mxu0 %v110
    %640 = vmatpush1.msra.mxu0 %v109
    %641 = vmatprep.subr.mxu0 %v114
    %642 = vmatpush1.msra.mxu0 %v113
    %643 = vmatprep.subr.mxu0 %v118
    %644 = vmatpush1.msra.mxu0 %v117
    %645 = vmatprep.subr.mxu0 %v122
    %646 = vmatpush1.msra.mxu0 %v121
    %647 = vmatprep.subr.mxu0 %v126
    %648 = vmatpush1.msra.mxu0 %v125
    %649 = vmatprep.subr.mxu0 %v130
    %650 = vmatpush1.msra.mxu0 %v129
    %651 = vmatprep.subr.mxu0 %v134
    %652 = vmatpush1.msra.mxu0 %v133
    %653 = vmatprep.subr.mxu0 0.0
    %654 = vmatpush1.msra.mxu0 0.0
    %655 = vmatprep.subr.mxu0 0.0
    %656 = vmatpush1.msra.mxu0 0.0
    %657 = vmatprep.subr.mxu0 0.0
    %658 = vmatpush1.msra.mxu0 0.0
    %659 = vmatprep.subr.mxu0 0.0
    %660 = vmatpush1.msra.mxu0 0.0
    %661 = vmatprep.subr.mxu0 0.0
    %662 = vmatpush1.msra.mxu0 0.0
    %663 = vmatprep.subr.mxu0 0.0
    %664 = vmatpush1.msra.mxu0 0.0
    %665 = vmatprep.subr.mxu0 0.0
    %666 = vmatpush1.msra.mxu0 0.0
    %667 = vmatprep.subr.mxu0 0.0
    %668 = vmatpush1.msra.mxu0 0.0
    %669 = vmatprep.subr.mxu0 0.0
    %670 = vmatpush1.msra.mxu0 0.0
    %671 = vmatprep.subr.mxu0 0.0
    %672 = vmatpush1.msra.mxu0 0.0
    %673 = vmatprep.subr.mxu0 0.0
    %674 = vmatpush1.msra.mxu0 0.0
    %675 = vmatprep.subr.mxu0 0.0
    %676 = vmatpush1.msra.mxu0 0.0
    %677 = vmatprep.subr.mxu0 0.0
    %678 = vmatpush1.msra.mxu0 0.0
    %679 = vmatprep.subr.mxu0 0.0
    %680 = vmatpush1.msra.mxu0 0.0
    %681 = vmatprep.subr.mxu0 0.0
    %682 = vmatpush1.msra.mxu0 0.0
    %683 = vmatprep.subr.mxu0 0.0
    %684 = vmatpush1.msra.mxu0 0.0
    %685 = vmatprep.mubr.f32.mxu0 0.0
    %686 = vmatmul.mubr.f32.gmra.mrb[0].mxu0 %v472
    %v687 = vpop.f32.mrb[0].mxu0
    %v688 = vadd.f32 0.0, %v687
    %v689 = vpop.f32.mrb[0].mxu0
    %v690 = vadd.f32 0.0, %v689
    %691 = vdwg.mxu0
    %692 = vmatprep.subr.mxu0 %v76
    %693 = vmatpush1.msra.mxu0 %v75
    %694 = vmatprep.subr.mxu0 %v80
    %695 = vmatpush1.msra.mxu0 %v79
    %696 = vmatprep.subr.mxu0 %v84
    %697 = vmatpush1.msra.mxu0 %v83
    %698 = vmatprep.subr.mxu0 %v88
    %699 = vmatpush1.msra.mxu0 %v87
    %700 = vmatprep.subr.mxu0 %v92
    %701 = vmatpush1.msra.mxu0 %v91
    %702 = vmatprep.subr.mxu0 %v96
    %703 = vmatpush1.msra.mxu0 %v95
    %704 = vmatprep.subr.mxu0 %v100
    %705 = vmatpush1.msra.mxu0 %v99
    %706 = vmatprep.subr.mxu0 %v104
    %707 = vmatpush1.msra.mxu0 %v103
    %708 = vmatprep.subr.mxu0 %v108
    %709 = vmatpush1.msra.mxu0 %v107
    %710 = vmatprep.subr.mxu0 %v112
    %711 = vmatpush1.msra.mxu0 %v111
    %712 = vmatprep.subr.mxu0 %v116
    %713 = vmatpush1.msra.mxu0 %v115
    %714 = vmatprep.subr.mxu0 %v120
    %715 = vmatpush1.msra.mxu0 %v119
    %716 = vmatprep.subr.mxu0 %v124
    %717 = vmatpush1.msra.mxu0 %v123
    %718 = vmatprep.subr.mxu0 %v128
    %719 = vmatpush1.msra.mxu0 %v127
    %720 = vmatprep.subr.mxu0 %v132
    %721 = vmatpush1.msra.mxu0 %v131
    %722 = vmatprep.subr.mxu0 %v136
    %723 = vmatpush1.msra.mxu0 %v135
    %724 = vmatprep.subr.mxu0 0.0
    %725 = vmatpush1.msra.mxu0 0.0
    %726 = vmatprep.subr.mxu0 0.0
    %727 = vmatpush1.msra.mxu0 0.0
    %728 = vmatprep.subr.mxu0 0.0
    %729 = vmatpush1.msra.mxu0 0.0
    %730 = vmatprep.subr.mxu0 0.0
    %731 = vmatpush1.msra.mxu0 0.0
    %732 = vmatprep.subr.mxu0 0.0
    %733 = vmatpush1.msra.mxu0 0.0
    %734 = vmatprep.subr.mxu0 0.0
    %735 = vmatpush1.msra.mxu0 0.0
    %736 = vmatprep.subr.mxu0 0.0
    %737 = vmatpush1.msra.mxu0 0.0
    %738 = vmatprep.subr.mxu0 0.0
    %739 = vmatpush1.msra.mxu0 0.0
    %740 = vmatprep.subr.mxu0 0.0
    %741 = vmatpush1.msra.mxu0 0.0
    %742 = vmatprep.subr.mxu0 0.0
    %743 = vmatpush1.msra.mxu0 0.0
    %744 = vmatprep.subr.mxu0 0.0
    %745 = vmatpush1.msra.mxu0 0.0
    %746 = vmatprep.subr.mxu0 0.0
    %747 = vmatpush1.msra.mxu0 0.0
    %748 = vmatprep.subr.mxu0 0.0
    %749 = vmatpush1.msra.mxu0 0.0
    %750 = vmatprep.subr.mxu0 0.0
    %751 = vmatpush1.msra.mxu0 0.0
    %752 = vmatprep.subr.mxu0 0.0
    %753 = vmatpush1.msra.mxu0 0.0
    %754 = vmatprep.subr.mxu0 0.0
    %755 = vmatpush1.msra.mxu0 0.0
    %756 = vmatprep.mubr.f32.mxu0 0.0
    %757 = vmatmul.mubr.f32.gmra.mrb[0].mxu0 %v472
    %v758 = vpop.f32.mrb[0].mxu0
    %v759 = vadd.f32 0.0, %v758
    %v760 = vpop.f32.mrb[0].mxu0
    %v761 = vadd.f32 0.0, %v760
    %762 = vdwg.mxu0
    %v763 = vadd.f32 %v546, %v688
    %v764 = vadd.f32 %v548, %v690
    %v765 = vadd.f32 %v617, %v759
    %v766 = vadd.f32 %v619, %v761
    %v767 = vmul.f32 %v763, 0.5
    %v768 = vtanh.pop %v767
    %v769 = vmul.f32 %v768, 0.5
    %v770 = vadd.f32 %v769, 0.5
    %v771 = vmul.f32 %v764, 0.5
    %v772 = vtanh.pop %v771
    %v773 = vmul.f32 %v772, 0.5
    %v774 = vadd.f32 %v773, 0.5
    %v775 = vtanh.pop %v765
    %v776 = vmul.f32 %v766, 0.5
    %v777 = vtanh.pop %v776
    %v778 = vmul.f32 %v777, 0.5
    %v779 = vadd.f32 %v778, 0.5
    %v780 = vmul.f32 %v774, %v470
    %v781 = vmul.f32 %v770, %v775
    %v782 = vadd.f32 %v780, %v781
    %v783 = vtanh.pop %v782
    %v784 = vmul.f32 %v779, %v783
    %v785 = vadd.f32 %v473, %v784
    %s786 = scalar_lea.vmem [#allocation5], 16
    %v787 = vld [vmem:[%s786] sm:$0xff]
    %v789 = vsel %vm163, %v787, 0
    %791 = vmatprep.subr.mxu0 %v66
    %792 = vmatpush1.msra.mxu0 %v65
    %793 = vmatprep.subr.mxu0 %v70
    %794 = vmatpush1.msra.mxu0 %v69
    %795 = vmatprep.subr.mxu0 0.0
    %796 = vmatpush1.msra.mxu0 0.0
    %797 = vmatprep.subr.mxu0 0.0
    %798 = vmatpush1.msra.mxu0 0.0
    %799 = vmatprep.subr.mxu0 0.0
    %800 = vmatpush1.msra.mxu0 0.0
    %801 = vmatprep.subr.mxu0 0.0
    %802 = vmatpush1.msra.mxu0 0.0
    %803 = vmatprep.subr.mxu0 0.0
    %804 = vmatpush1.msra.mxu0 0.0
    %805 = vmatprep.subr.mxu0 0.0
    %806 = vmatpush1.msra.mxu0 0.0
    %807 = vmatprep.subr.mxu0 0.0
    %808 = vmatpush1.msra.mxu0 0.0
    %809 = vmatprep.subr.mxu0 0.0
    %810 = vmatpush1.msra.mxu0 0.0
    %811 = vmatprep.subr.mxu0 0.0
    %812 = vmatpush1.msra.mxu0 0.0
    %813 = vmatprep.subr.mxu0 0.0
    %814 = vmatpush1.msra.mxu0 0.0
    %815 = vmatprep.subr.mxu0 0.0
    %816 = vmatpush1.msra.mxu0 0.0
    %817 = vmatprep.subr.mxu0 0.0
    %818 = vmatpush1.msra.mxu0 0.0
    %819 = vmatprep.subr.mxu0 0.0
    %820 = vmatpush1.msra.mxu0 0.0
    %821 = vmatprep.subr.mxu0 0.0
    %822 = vmatpush1.msra.mxu0 0.0
    %823 = vmatprep.subr.mxu0 0.0
    %824 = vmatpush1.msra.mxu0 0.0
    %825 = vmatprep.subr.mxu0 0.0
    %826 = vmatpush1.msra.mxu0 0.0
    %827 = vmatprep.subr.mxu0 0.0
    %828 = vmatpush1.msra.mxu0 0.0
    %829 = vmatprep.subr.mxu0 0.0
    %830 = vmatpush1.msra.mxu0 0.0
    %831 = vmatprep.subr.mxu0 0.0
    %832 = vmatpush1.msra.mxu0 0.0
    %833 = vmatprep.subr.mxu0 0.0
    %834 = vmatpush1.msra.mxu0 0.0
    %835 = vmatprep.subr.mxu0 0.0
    %836 = vmatpush1.msra.mxu0 0.0
    %837 = vmatprep.subr.mxu0 0.0
    %838 = vmatpush1.msra.mxu0 0.0
    %839 = vmatprep.subr.mxu0 0.0
    %840 = vmatpush1.msra.mxu0 0.0
    %841 = vmatprep.subr.mxu0 0.0
    %842 = vmatpush1.msra.mxu0 0.0
    %843 = vmatprep.subr.mxu0 0.0
    %844 = vmatpush1.msra.mxu0 0.0
    %845 = vmatprep.subr.mxu0 0.0
    %846 = vmatpush1.msra.mxu0 0.0
    %847 = vmatprep.subr.mxu0 0.0
    %848 = vmatpush1.msra.mxu0 0.0
    %849 = vmatprep.subr.mxu0 0.0
    %850 = vmatpush1.msra.mxu0 0.0
    %851 = vmatprep.subr.mxu0 0.0
    %852 = vmatpush1.msra.mxu0 0.0
    %853 = vmatprep.subr.mxu0 0.0
    %854 = vmatpush1.msra.mxu0 0.0
    %855 = vmatprep.mubr.f32.mxu0 0.0
    %856 = vmatmul.mubr.f32.gmra.mrb[0].mxu0 %v789
    %v857 = vpop.f32.mrb[0].mxu0
    %v858 = vadd.f32 %v146, %v857
    %v859 = vpop.f32.mrb[0].mxu0
    %v860 = vadd.f32 %v150, %v859
    %861 = vdwg.mxu0
    %862 = vmatprep.subr.mxu0 %v68
    %863 = vmatpush1.msra.mxu0 %v67
    %864 = vmatprep.subr.mxu0 %v72
    %865 = vmatpush1.msra.mxu0 %v71
    %866 = vmatprep.subr.mxu0 0.0
    %867 = vmatpush1.msra.mxu0 0.0
    %868 = vmatprep.subr.mxu0 0.0
    %869 = vmatpush1.msra.mxu0 0.0
    %870 = vmatprep.subr.mxu0 0.0
    %871 = vmatpush1.msra.mxu0 0.0
    %872 = vmatprep.subr.mxu0 0.0
    %873 = vmatpush1.msra.mxu0 0.0
    %874 = vmatprep.subr.mxu0 0.0
    %875 = vmatpush1.msra.mxu0 0.0
    %876 = vmatprep.subr.mxu0 0.0
    %877 = vmatpush1.msra.mxu0 0.0
    %878 = vmatprep.subr.mxu0 0.0
    %879 = vmatpush1.msra.mxu0 0.0
    %880 = vmatprep.subr.mxu0 0.0
    %881 = vmatpush1.msra.mxu0 0.0
    %882 = vmatprep.subr.mxu0 0.0
    %883 = vmatpush1.msra.mxu0 0.0
    %884 = vmatprep.subr.mxu0 0.0
    %885 = vmatpush1.msra.mxu0 0.0
    %886 = vmatprep.subr.mxu0 0.0
    %887 = vmatpush1.msra.mxu0 0.0
    %888 = vmatprep.subr.mxu0 0.0
    %889 = vmatpush1.msra.mxu0 0.0
    %890 = vmatprep.subr.mxu0 0.0
    %891 = vmatpush1.msra.mxu0 0.0
    %892 = vmatprep.subr.mxu0 0.0
    %893 = vmatpush1.msra.mxu0 0.0
    %894 = vmatprep.subr.mxu0 0.0
    %895 = vmatpush1.msra.mxu0 0.0
    %896 = vmatprep.subr.mxu0 0.0
    %897 = vmatpush1.msra.mxu0 0.0
    %898 = vmatprep.subr.mxu0 0.0
    %899 = vmatpush1.msra.mxu0 0.0
    %900 = vmatprep.subr.mxu0 0.0
    %901 = vmatpush1.msra.mxu0 0.0
    %902 = vmatprep.subr.mxu0 0.0
    %903 = vmatpush1.msra.mxu0 0.0
    %904 = vmatprep.subr.mxu0 0.0
    %905 = vmatpush1.msra.mxu0 0.0
    %906 = vmatprep.subr.mxu0 0.0
    %907 = vmatpush1.msra.mxu0 0.0
    %908 = vmatprep.subr.mxu0 0.0
    %909 = vmatpush1.msra.mxu0 0.0
    %910 = vmatprep.subr.mxu0 0.0
    %911 = vmatpush1.msra.mxu0 0.0
    %912 = vmatprep.subr.mxu0 0.0
    %913 = vmatpush1.msra.mxu0 0.0
    %914 = vmatprep.subr.mxu0 0.0
    %915 = vmatpush1.msra.mxu0 0.0
    %916 = vmatprep.subr.mxu0 0.0
    %917 = vmatpush1.msra.mxu0 0.0
    %918 = vmatprep.subr.mxu0 0.0
    %919 = vmatpush1.msra.mxu0 0.0
    %920 = vmatprep.subr.mxu0 0.0
    %921 = vmatpush1.msra.mxu0 0.0
    %922 = vmatprep.subr.mxu0 0.0
    %923 = vmatpush1.msra.mxu0 0.0
    %924 = vmatprep.subr.mxu0 0.0
    %925 = vmatpush1.msra.mxu0 0.0
    %926 = vmatprep.mubr.f32.mxu0 0.0
    %927 = vmatmul.mubr.f32.gmra.mrb[0].mxu0 %v789
    %v928 = vpop.f32.mrb[0].mxu0
    %v929 = vadd.f32 %v154, %v928
    %v930 = vpop.f32.mrb[0].mxu0
    %v931 = vadd.f32 %v158, %v930
    %932 = vdwg.mxu0
    %933 = vmatprep.subr.mxu0 %v74
    %934 = vmatpush1.msra.mxu0 %v73
    %935 = vmatprep.subr.mxu0 %v78
    %936 = vmatpush1.msra.mxu0 %v77
    %937 = vmatprep.subr.mxu0 %v82
    %938 = vmatpush1.msra.mxu0 %v81
    %939 = vmatprep.subr.mxu0 %v86
    %940 = vmatpush1.msra.mxu0 %v85
    %941 = vmatprep.subr.mxu0 %v90
    %942 = vmatpush1.msra.mxu0 %v89
    %943 = vmatprep.subr.mxu0 %v94
    %944 = vmatpush1.msra.mxu0 %v93
    %945 = vmatprep.subr.mxu0 %v98
    %946 = vmatpush1.msra.mxu0 %v97
    %947 = vmatprep.subr.mxu0 %v102
    %948 = vmatpush1.msra.mxu0 %v101
    %949 = vmatprep.subr.mxu0 %v106
    %950 = vmatpush1.msra.mxu0 %v105
    %951 = vmatprep.subr.mxu0 %v110
    %952 = vmatpush1.msra.mxu0 %v109
    %953 = vmatprep.subr.mxu0 %v114
    %954 = vmatpush1.msra.mxu0 %v113
    %955 = vmatprep.subr.mxu0 %v118
    %956 = vmatpush1.msra.mxu0 %v117
    %957 = vmatprep.subr.mxu0 %v122
    %958 = vmatpush1.msra.mxu0 %v121
    %959 = vmatprep.subr.mxu0 %v126
    %960 = vmatpush1.msra.mxu0 %v125
    %961 = vmatprep.subr.mxu0 %v130
    %962 = vmatpush1.msra.mxu0 %v129
    %963 = vmatprep.subr.mxu0 %v134
    %964 = vmatpush1.msra.mxu0 %v133
    %965 = vmatprep.subr.mxu0 0.0
    %966 = vmatpush1.msra.mxu0 0.0
    %967 = vmatprep.subr.mxu0 0.0
    %968 = vmatpush1.msra.mxu0 0.0
    %969 = vmatprep.subr.mxu0 0.0
    %970 = vmatpush1.msra.mxu0 0.0
    %971 = vmatprep.subr.mxu0 0.0
    %972 = vmatpush1.msra.mxu0 0.0
    %973 = vmatprep.subr.mxu0 0.0
    %974 = vmatpush1.msra.mxu0 0.0
    %975 = vmatprep.subr.mxu0 0.0
    %976 = vmatpush1.msra.mxu0 0.0
    %977 = vmatprep.subr.mxu0 0.0
    %978 = vmatpush1.msra.mxu0 0.0
    %979 = vmatprep.subr.mxu0 0.0
    %980 = vmatpush1.msra.mxu0 0.0
    %981 = vmatprep.subr.mxu0 0.0
    %982 = vmatpush1.msra.mxu0 0.0
    %983 = vmatprep.subr.mxu0 0.0
    %984 = vmatpush1.msra.mxu0 0.0
    %985 = vmatprep.subr.mxu0 0.0
    %986 = vmatpush1.msra.mxu0 0.0
    %987 = vmatprep.subr.mxu0 0.0
    %988 = vmatpush1.msra.mxu0 0.0
    %989 = vmatprep.subr.mxu0 0.0
    %990 = vmatpush1.msra.mxu0 0.0
    %991 = vmatprep.subr.mxu0 0.0
    %992 = vmatpush1.msra.mxu0 0.0
    %993 = vmatprep.subr.mxu0 0.0
    %994 = vmatpush1.msra.mxu0 0.0
    %995 = vmatprep.subr.mxu0 0.0
    %996 = vmatpush1.msra.mxu0 0.0
    %997 = vmatprep.mubr.f32.mxu0 0.0
    %998 = vmatmul.mubr.f32.gmra.mrb[0].mxu0 %v784
    %v999 = vpop.f32.mrb[0].mxu0
    %v1000 = vadd.f32 0.0, %v999
    %v1001 = vpop.f32.mrb[0].mxu0
    %v1002 = vadd.f32 0.0, %v1001
    %1003 = vdwg.mxu0
    %1004 = vmatprep.subr.mxu0 %v76
    %1005 = vmatpush1.msra.mxu0 %v75
    %1006 = vmatprep.subr.mxu0 %v80
    %1007 = vmatpush1.msra.mxu0 %v79
    %1008 = vmatprep.subr.mxu0 %v84
    %1009 = vmatpush1.msra.mxu0 %v83
    %1010 = vmatprep.subr.mxu0 %v88
    %1011 = vmatpush1.msra.mxu0 %v87
    %1012 = vmatprep.subr.mxu0 %v92
    %1013 = vmatpush1.msra.mxu0 %v91
    %1014 = vmatprep.subr.mxu0 %v96
    %1015 = vmatpush1.msra.mxu0 %v95
    %1016 = vmatprep.subr.mxu0 %v100
    %1017 = vmatpush1.msra.mxu0 %v99
    %1018 = vmatprep.subr.mxu0 %v104
    %1019 = vmatpush1.msra.mxu0 %v103
    %1020 = vmatprep.subr.mxu0 %v108
    %1021 = vmatpush1.msra.mxu0 %v107
    %1022 = vmatprep.subr.mxu0 %v112
    %1023 = vmatpush1.msra.mxu0 %v111
    %1024 = vmatprep.subr.mxu0 %v116
    %1025 = vmatpush1.msra.mxu0 %v115
    %1026 = vmatprep.subr.mxu0 %v120
    %1027 = vmatpush1.msra.mxu0 %v119
    %1028 = vmatprep.subr.mxu0 %v124
    %1029 = vmatpush1.msra.mxu0 %v123
    %1030 = vmatprep.subr.mxu0 %v128
    %1031 = vmatpush1.msra.mxu0 %v127
    %1032 = vmatprep.subr.mxu0 %v132
    %1033 = vmatpush1.msra.mxu0 %v131
    %1034 = vmatprep.subr.mxu0 %v136
    %1035 = vmatpush1.msra.mxu0 %v135
    %1036 = vmatprep.subr.mxu0 0.0
    %1037 = vmatpush1.msra.mxu0 0.0
    %1038 = vmatprep.subr.mxu0 0.0
    %1039 = vmatpush1.msra.mxu0 0.0
    %1040 = vmatprep.subr.mxu0 0.0
    %1041 = vmatpush1.msra.mxu0 0.0
    %1042 = vmatprep.subr.mxu0 0.0
    %1043 = vmatpush1.msra.mxu0 0.0
    %1044 = vmatprep.subr.mxu0 0.0
    %1045 = vmatpush1.msra.mxu0 0.0
    %1046 = vmatprep.subr.mxu0 0.0
    %1047 = vmatpush1.msra.mxu0 0.0
    %1048 = vmatprep.subr.mxu0 0.0
    %1049 = vmatpush1.msra.mxu0 0.0
    %1050 = vmatprep.subr.mxu0 0.0
    %1051 = vmatpush1.msra.mxu0 0.0
    %1052 = vmatprep.subr.mxu0 0.0
    %1053 = vmatpush1.msra.mxu0 0.0
    %1054 = vmatprep.subr.mxu0 0.0
    %1055 = vmatpush1.msra.mxu0 0.0
    %1056 = vmatprep.subr.mxu0 0.0
    %1057 = vmatpush1.msra.mxu0 0.0
    %1058 = vmatprep.subr.mxu0 0.0
    %1059 = vmatpush1.msra.mxu0 0.0
    %1060 = vmatprep.subr.mxu0 0.0
    %1061 = vmatpush1.msra.mxu0 0.0
    %1062 = vmatprep.subr.mxu0 0.0
    %1063 = vmatpush1.msra.mxu0 0.0
    %1064 = vmatprep.subr.mxu0 0.0
    %1065 = vmatpush1.msra.mxu0 0.0
    %1066 = vmatprep.subr.mxu0 0.0
    %1067 = vmatpush1.msra.mxu0 0.0
    %1068 = vmatprep.mubr.f32.mxu0 0.0
    %1069 = vmatmul.mubr.f32.gmra.mrb[0].mxu0 %v784
    %v1070 = vpop.f32.mrb[0].mxu0
    %v1071 = vadd.f32 0.0, %v1070
    %v1072 = vpop.f32.mrb[0].mxu0
    %v1073 = vadd.f32 0.0, %v1072
    %1074 = vdwg.mxu0
    %v1075 = vadd.f32 %v858, %v1000
    %v1076 = vadd.f32 %v860, %v1002
    %v1077 = vadd.f32 %v929, %v1071
    %v1078 = vadd.f32 %v931, %v1073
    %v1079 = vmul.f32 %v1075, 0.5
    %v1080 = vtanh.pop %v1079
    %v1081 = vmul.f32 %v1080, 0.5
    %v1082 = vadd.f32 %v1081, 0.5
    %v1083 = vmul.f32 %v1076, 0.5
    %v1084 = vtanh.pop %v1083
    %v1085 = vmul.f32 %v1084, 0.5
    %v1086 = vadd.f32 %v1085, 0.5
    %v1087 = vtanh.pop %v1077
    %v1088 = vmul.f32 %v1078, 0.5
    %v1089 = vtanh.pop %v1088
    %v1090 = vmul.f32 %v1089, 0.5
    %v1091 = vadd.f32 %v1090, 0.5
    %v1092 = vmul.f32 %v1086, %v782
    %v1093 = vmul.f32 %v1082, %v1087
    %v1094 = vadd.f32 %v1092, %v1093
    %v1095 = vtanh.pop %v1094
    %v1096 = vmul.f32 %v1091, %v1095
    %v1097 = vadd.f32 %v785, %v1096
    %s1098 = scalar_lea.vmem [#allocation5], 24
    %v1099 = vld [vmem:[%s1098] sm:$0xff]
    %v1101 = vsel %vm163, %v1099, 0
    %1103 = vmatprep.subr.mxu0 %v66
    %1104 = vmatpush1.msra.mxu0 %v65
    %1105 = vmatprep.subr.mxu0 %v70
    %1106 = vmatpush1.msra.mxu0 %v69
    %1107 = vmatprep.subr.mxu0 0.0
    %1108 = vmatpush1.msra.mxu0 0.0
    %1109 = vmatprep.subr.mxu0 0.0
    %1110 = vmatpush1.msra.mxu0 0.0
    %1111 = vmatprep.subr.mxu0 0.0
    %1112 = vmatpush1.msra.mxu0 0.0
    %1113 = vmatprep.subr.mxu0 0.0
    %1114 = vmatpush1.msra.mxu0 0.0
    %1115 = vmatprep.subr.mxu0 0.0
    %1116 = vmatpush1.msra.mxu0 0.0
    %1117 = vmatprep.subr.mxu0 0.0
    %1118 = vmatpush1.msra.mxu0 0.0
    %1119 = vmatprep.subr.mxu0 0.0
    %1120 = vmatpush1.msra.mxu0 0.0
    %1121 = vmatprep.subr.mxu0 0.0
    %1122 = vmatpush1.msra.mxu0 0.0
    %1123 = vmatprep.subr.mxu0 0.0
    %1124 = vmatpush1.msra.mxu0 0.0
    %1125 = vmatprep.subr.mxu0 0.0
    %1126 = vmatpush1.msra.mxu0 0.0
    %1127 = vmatprep.subr.mxu0 0.0
    %1128 = vmatpush1.msra.mxu0 0.0
    %1129 = vmatprep.subr.mxu0 0.0
    %1130 = vmatpush1.msra.mxu0 0.0
    %1131 = vmatprep.subr.mxu0 0.0
    %1132 = vmatpush1.msra.mxu0 0.0
    %1133 = vmatprep.subr.mxu0 0.0
    %1134 = vmatpush1.msra.mxu0 0.0
    %1135 = vmatprep.subr.mxu0 0.0
    %1136 = vmatpush1.msra.mxu0 0.0
    %1137 = vmatprep.subr.mxu0 0.0
    %1138 = vmatpush1.msra.mxu0 0.0
    %1139 = vmatprep.subr.mxu0 0.0
    %1140 = vmatpush1.msra.mxu0 0.0
    %1141 = vmatprep.subr.mxu0 0.0
    %1142 = vmatpush1.msra.mxu0 0.0
    %1143 = vmatprep.subr.mxu0 0.0
    %1144 = vmatpush1.msra.mxu0 0.0
    %1145 = vmatprep.subr.mxu0 0.0
    %1146 = vmatpush1.msra.mxu0 0.0
    %1147 = vmatprep.subr.mxu0 0.0
    %1148 = vmatpush1.msra.mxu0 0.0
    %1149 = vmatprep.subr.mxu0 0.0
    %1150 = vmatpush1.msra.mxu0 0.0
    %1151 = vmatprep.subr.mxu0 0.0
    %1152 = vmatpush1.msra.mxu0 0.0
    %1153 = vmatprep.subr.mxu0 0.0
    %1154 = vmatpush1.msra.mxu0 0.0
    %1155 = vmatprep.subr.mxu0 0.0
    %1156 = vmatpush1.msra.mxu0 0.0
    %1157 = vmatprep.subr.mxu0 0.0
    %1158 = vmatpush1.msra.mxu0 0.0
    %1159 = vmatprep.subr.mxu0 0.0
    %1160 = vmatpush1.msra.mxu0 0.0
    %1161 = vmatprep.subr.mxu0 0.0
    %1162 = vmatpush1.msra.mxu0 0.0
    %1163 = vmatprep.subr.mxu0 0.0
    %1164 = vmatpush1.msra.mxu0 0.0
    %1165 = vmatprep.subr.mxu0 0.0
    %1166 = vmatpush1.msra.mxu0 0.0
    %1167 = vmatprep.mubr.f32.mxu0 0.0
    %1168 = vmatmul.mubr.f32.gmra.mrb[0].mxu0 %v1101
    %v1169 = vpop.f32.mrb[0].mxu0
    %v1170 = vadd.f32 %v146, %v1169
    %v1171 = vpop.f32.mrb[0].mxu0
    %v1172 = vadd.f32 %v150, %v1171
    %1173 = vdwg.mxu0
    %1174 = vmatprep.subr.mxu0 %v68
    %1175 = vmatpush1.msra.mxu0 %v67
    %1176 = vmatprep.subr.mxu0 %v72
    %1177 = vmatpush1.msra.mxu0 %v71
    %1178 = vmatprep.subr.mxu0 0.0
    %1179 = vmatpush1.msra.mxu0 0.0
    %1180 = vmatprep.subr.mxu0 0.0
    %1181 = vmatpush1.msra.mxu0 0.0
    %1182 = vmatprep.subr.mxu0 0.0
    %1183 = vmatpush1.msra.mxu0 0.0
    %1184 = vmatprep.subr.mxu0 0.0
    %1185 = vmatpush1.msra.mxu0 0.0
    %1186 = vmatprep.subr.mxu0 0.0
    %1187 = vmatpush1.msra.mxu0 0.0
    %1188 = vmatprep.subr.mxu0 0.0
    %1189 = vmatpush1.msra.mxu0 0.0
    %1190 = vmatprep.subr.mxu0 0.0
    %1191 = vmatpush1.msra.mxu0 0.0
    %1192 = vmatprep.subr.mxu0 0.0
    %1193 = vmatpush1.msra.mxu0 0.0
    %1194 = vmatprep.subr.mxu0 0.0
    %1195 = vmatpush1.msra.mxu0 0.0
    %1196 = vmatprep.subr.mxu0 0.0
    %1197 = vmatpush1.msra.mxu0 0.0
    %1198 = vmatprep.subr.mxu0 0.0
    %1199 = vmatpush1.msra.mxu0 0.0
    %1200 = vmatprep.subr.mxu0 0.0
    %1201 = vmatpush1.msra.mxu0 0.0
    %1202 = vmatprep.subr.mxu0 0.0
    %1203 = vmatpush1.msra.mxu0 0.0
    %1204 = vmatprep.subr.mxu0 0.0
    %1205 = vmatpush1.msra.mxu0 0.0
    %1206 = vmatprep.subr.mxu0 0.0
    %1207 = vmatpush1.msra.mxu0 0.0
    %1208 = vmatprep.subr.mxu0 0.0
    %1209 = vmatpush1.msra.mxu0 0.0
    %1210 = vmatprep.subr.mxu0 0.0
    %1211 = vmatpush1.msra.mxu0 0.0
    %1212 = vmatprep.subr.mxu0 0.0
    %1213 = vmatpush1.msra.mxu0 0.0
    %1214 = vmatprep.subr.mxu0 0.0
    %1215 = vmatpush1.msra.mxu0 0.0
    %1216 = vmatprep.subr.mxu0 0.0
    %1217 = vmatpush1.msra.mxu0 0.0
    %1218 = vmatprep.subr.mxu0 0.0
    %1219 = vmatpush1.msra.mxu0 0.0
    %1220 = vmatprep.subr.mxu0 0.0
    %1221 = vmatpush1.msra.mxu0 0.0
    %1222 = vmatprep.subr.mxu0 0.0
    %1223 = vmatpush1.msra.mxu0 0.0
    %1224 = vmatprep.subr.mxu0 0.0
    %1225 = vmatpush1.msra.mxu0 0.0
    %1226 = vmatprep.subr.mxu0 0.0
    %1227 = vmatpush1.msra.mxu0 0.0
    %1228 = vmatprep.subr.mxu0 0.0
    %1229 = vmatpush1.msra.mxu0 0.0
    %1230 = vmatprep.subr.mxu0 0.0
    %1231 = vmatpush1.msra.mxu0 0.0
    %1232 = vmatprep.subr.mxu0 0.0
    %1233 = vmatpush1.msra.mxu0 0.0
    %1234 = vmatprep.subr.mxu0 0.0
    %1235 = vmatpush1.msra.mxu0 0.0
    %1236 = vmatprep.subr.mxu0 0.0
    %1237 = vmatpush1.msra.mxu0 0.0
    %1238 = vmatprep.mubr.f32.mxu0 0.0
    %1239 = vmatmul.mubr.f32.gmra.mrb[0].mxu0 %v1101
    %v1240 = vpop.f32.mrb[0].mxu0
    %v1241 = vadd.f32 %v154, %v1240
    %v1242 = vpop.f32.mrb[0].mxu0
    %v1243 = vadd.f32 %v158, %v1242
    %1244 = vdwg.mxu0
    %1245 = vmatprep.subr.mxu0 %v74
    %1246 = vmatpush1.msra.mxu0 %v73
    %1247 = vmatprep.subr.mxu0 %v78
    %1248 = vmatpush1.msra.mxu0 %v77
    %1249 = vmatprep.subr.mxu0 %v82
    %1250 = vmatpush1.msra.mxu0 %v81
    %1251 = vmatprep.subr.mxu0 %v86
    %1252 = vmatpush1.msra.mxu0 %v85
    %1253 = vmatprep.subr.mxu0 %v90
    %1254 = vmatpush1.msra.mxu0 %v89
    %1255 = vmatprep.subr.mxu0 %v94
    %1256 = vmatpush1.msra.mxu0 %v93
    %1257 = vmatprep.subr.mxu0 %v98
    %1258 = vmatpush1.msra.mxu0 %v97
    %1259 = vmatprep.subr.mxu0 %v102
    %1260 = vmatpush1.msra.mxu0 %v101
    %1261 = vmatprep.subr.mxu0 %v106
    %1262 = vmatpush1.msra.mxu0 %v105
    %1263 = vmatprep.subr.mxu0 %v110
    %1264 = vmatpush1.msra.mxu0 %v109
    %1265 = vmatprep.subr.mxu0 %v114
    %1266 = vmatpush1.msra.mxu0 %v113
    %1267 = vmatprep.subr.mxu0 %v118
    %1268 = vmatpush1.msra.mxu0 %v117
    %1269 = vmatprep.subr.mxu0 %v122
    %1270 = vmatpush1.msra.mxu0 %v121
    %1271 = vmatprep.subr.mxu0 %v126
    %1272 = vmatpush1.msra.mxu0 %v125
    %1273 = vmatprep.subr.mxu0 %v130
    %1274 = vmatpush1.msra.mxu0 %v129
    %1275 = vmatprep.subr.mxu0 %v134
    %1276 = vmatpush1.msra.mxu0 %v133
    %1277 = vmatprep.subr.mxu0 0.0
    %1278 = vmatpush1.msra.mxu0 0.0
    %1279 = vmatprep.subr.mxu0 0.0
    %1280 = vmatpush1.msra.mxu0 0.0
    %1281 = vmatprep.subr.mxu0 0.0
    %1282 = vmatpush1.msra.mxu0 0.0
    %1283 = vmatprep.subr.mxu0 0.0
    %1284 = vmatpush1.msra.mxu0 0.0
    %1285 = vmatprep.subr.mxu0 0.0
    %1286 = vmatpush1.msra.mxu0 0.0
    %1287 = vmatprep.subr.mxu0 0.0
    %1288 = vmatpush1.msra.mxu0 0.0
    %1289 = vmatprep.subr.mxu0 0.0
    %1290 = vmatpush1.msra.mxu0 0.0
    %1291 = vmatprep.subr.mxu0 0.0
    %1292 = vmatpush1.msra.mxu0 0.0
    %1293 = vmatprep.subr.mxu0 0.0
    %1294 = vmatpush1.msra.mxu0 0.0
    %1295 = vmatprep.subr.mxu0 0.0
    %1296 = vmatpush1.msra.mxu0 0.0
    %1297 = vmatprep.subr.mxu0 0.0
    %1298 = vmatpush1.msra.mxu0 0.0
    %1299 = vmatprep.subr.mxu0 0.0
    %1300 = vmatpush1.msra.mxu0 0.0
    %1301 = vmatprep.subr.mxu0 0.0
    %1302 = vmatpush1.msra.mxu0 0.0
    %1303 = vmatprep.subr.mxu0 0.0
    %1304 = vmatpush1.msra.mxu0 0.0
    %1305 = vmatprep.subr.mxu0 0.0
    %1306 = vmatpush1.msra.mxu0 0.0
    %1307 = vmatprep.subr.mxu0 0.0
    %1308 = vmatpush1.msra.mxu0 0.0
    %1309 = vmatprep.mubr.f32.mxu0 0.0
    %1310 = vmatmul.mubr.f32.gmra.mrb[0].mxu0 %v1096
    %v1311 = vpop.f32.mrb[0].mxu0
    %v1312 = vadd.f32 0.0, %v1311
    %v1313 = vpop.f32.mrb[0].mxu0
    %v1314 = vadd.f32 0.0, %v1313
    %1315 = vdwg.mxu0
    %1316 = vmatprep.subr.mxu0 %v76
    %1317 = vmatpush1.msra.mxu0 %v75
    %1318 = vmatprep.subr.mxu0 %v80
    %1319 = vmatpush1.msra.mxu0 %v79
    %1320 = vmatprep.subr.mxu0 %v84
    %1321 = vmatpush1.msra.mxu0 %v83
    %1322 = vmatprep.subr.mxu0 %v88
    %1323 = vmatpush1.msra.mxu0 %v87
    %1324 = vmatprep.subr.mxu0 %v92
    %1325 = vmatpush1.msra.mxu0 %v91
    %1326 = vmatprep.subr.mxu0 %v96
    %1327 = vmatpush1.msra.mxu0 %v95
    %1328 = vmatprep.subr.mxu0 %v100
    %1329 = vmatpush1.msra.mxu0 %v99
    %1330 = vmatprep.subr.mxu0 %v104
    %1331 = vmatpush1.msra.mxu0 %v103
    %1332 = vmatprep.subr.mxu0 %v108
    %1333 = vmatpush1.msra.mxu0 %v107
    %1334 = vmatprep.subr.mxu0 %v112
    %1335 = vmatpush1.msra.mxu0 %v111
    %1336 = vmatprep.subr.mxu0 %v116
    %1337 = vmatpush1.msra.mxu0 %v115
    %1338 = vmatprep.subr.mxu0 %v120
    %1339 = vmatpush1.msra.mxu0 %v119
    %1340 = vmatprep.subr.mxu0 %v124
    %1341 = vmatpush1.msra.mxu0 %v123
    %1342 = vmatprep.subr.mxu0 %v128
    %1343 = vmatpush1.msra.mxu0 %v127
    %1344 = vmatprep.subr.mxu0 %v132
    %1345 = vmatpush1.msra.mxu0 %v131
    %1346 = vmatprep.subr.mxu0 %v136
    %1347 = vmatpush1.msra.mxu0 %v135
    %1348 = vmatprep.subr.mxu0 0.0
    %1349 = vmatpush1.msra.mxu0 0.0
    %1350 = vmatprep.subr.mxu0 0.0
    %1351 = vmatpush1.msra.mxu0 0.0
    %1352 = vmatprep.subr.mxu0 0.0
    %1353 = vmatpush1.msra.mxu0 0.0
    %1354 = vmatprep.subr.mxu0 0.0
    %1355 = vmatpush1.msra.mxu0 0.0
    %1356 = vmatprep.subr.mxu0 0.0
    %1357 = vmatpush1.msra.mxu0 0.0
    %1358 = vmatprep.subr.mxu0 0.0
    %1359 = vmatpush1.msra.mxu0 0.0
    %1360 = vmatprep.subr.mxu0 0.0
    %1361 = vmatpush1.msra.mxu0 0.0
    %1362 = vmatprep.subr.mxu0 0.0
    %1363 = vmatpush1.msra.mxu0 0.0
    %1364 = vmatprep.subr.mxu0 0.0
    %1365 = vmatpush1.msra.mxu0 0.0
    %1366 = vmatprep.subr.mxu0 0.0
    %1367 = vmatpush1.msra.mxu0 0.0
    %1368 = vmatprep.subr.mxu0 0.0
    %1369 = vmatpush1.msra.mxu0 0.0
    %1370 = vmatprep.subr.mxu0 0.0
    %1371 = vmatpush1.msra.mxu0 0.0
    %1372 = vmatprep.subr.mxu0 0.0
    %1373 = vmatpush1.msra.mxu0 0.0
    %1374 = vmatprep.subr.mxu0 0.0
    %1375 = vmatpush1.msra.mxu0 0.0
    %1376 = vmatprep.subr.mxu0 0.0
    %1377 = vmatpush1.msra.mxu0 0.0
    %1378 = vmatprep.subr.mxu0 0.0
    %1379 = vmatpush1.msra.mxu0 0.0
    %1380 = vmatprep.mubr.f32.mxu0 0.0
    %1381 = vmatmul.mubr.f32.gmra.mrb[0].mxu0 %v1096
    %v1382 = vpop.f32.mrb[0].mxu0
    %v1383 = vadd.f32 0.0, %v1382
    %v1384 = vpop.f32.mrb[0].mxu0
    %v1385 = vadd.f32 0.0, %v1384
    %1386 = vdwg.mxu0
    %v1387 = vadd.f32 %v1170, %v1312
    %v1388 = vadd.f32 %v1172, %v1314
    %v1389 = vadd.f32 %v1241, %v1383
    %v1390 = vadd.f32 %v1243, %v1385
    %v1391 = vmul.f32 %v1387, 0.5
    %v1392 = vtanh.pop %v1391
    %v1393 = vmul.f32 %v1392, 0.5
    %v1394 = vadd.f32 %v1393, 0.5
    %v1395 = vmul.f32 %v1388, 0.5
    %v1396 = vtanh.pop %v1395
    %v1397 = vmul.f32 %v1396, 0.5
    %v1398 = vadd.f32 %v1397, 0.5
    %v1399 = vtanh.pop %v1389
    %v1400 = vmul.f32 %v1390, 0.5
    %v1401 = vtanh.pop %v1400
    %v1402 = vmul.f32 %v1401, 0.5
    %v1403 = vadd.f32 %v1402, 0.5
    %v1404 = vmul.f32 %v1398, %v1094
    %v1405 = vmul.f32 %v1394, %v1399
    %v1406 = vadd.f32 %v1404, %v1405
    %v1407 = vtanh.pop %v1406
    %v1408 = vmul.f32 %v1403, %v1407
    %v1409 = vadd.f32 %v1097, %v1408
    %s1410 = scalar_lea.vmem [#allocation5], 32
    %v1411 = vld [vmem:[%s1410] sm:$0xff]
    %v1413 = vsel %vm163, %v1411, 0
    %1415 = vmatprep.subr.mxu0 %v66
    %1416 = vmatpush1.msra.mxu0 %v65
    %1417 = vmatprep.subr.mxu0 %v70
    %1418 = vmatpush1.msra.mxu0 %v69
    %1419 = vmatprep.subr.mxu0 0.0
    %1420 = vmatpush1.msra.mxu0 0.0
    %1421 = vmatprep.subr.mxu0 0.0
    %1422 = vmatpush1.msra.mxu0 0.0
    %1423 = vmatprep.subr.mxu0 0.0
    %1424 = vmatpush1.msra.mxu0 0.0
    %1425 = vmatprep.subr.mxu0 0.0
    %1426 = vmatpush1.msra.mxu0 0.0
    %1427 = vmatprep.subr.mxu0 0.0
    %1428 = vmatpush1.msra.mxu0 0.0
    %1429 = vmatprep.subr.mxu0 0.0
    %1430 = vmatpush1.msra.mxu0 0.0
    %1431 = vmatprep.subr.mxu0 0.0
    %1432 = vmatpush1.msra.mxu0 0.0
    %1433 = vmatprep.subr.mxu0 0.0
    %1434 = vmatpush1.msra.mxu0 0.0
    %1435 = vmatprep.subr.mxu0 0.0
    %1436 = vmatpush1.msra.mxu0 0.0
    %1437 = vmatprep.subr.mxu0 0.0
    %1438 = vmatpush1.msra.mxu0 0.0
    %1439 = vmatprep.subr.mxu0 0.0
    %1440 = vmatpush1.msra.mxu0 0.0
    %1441 = vmatprep.subr.mxu0 0.0
    %1442 = vmatpush1.msra.mxu0 0.0
    %1443 = vmatprep.subr.mxu0 0.0
    %1444 = vmatpush1.msra.mxu0 0.0
    %1445 = vmatprep.subr.mxu0 0.0
    %1446 = vmatpush1.msra.mxu0 0.0
    %1447 = vmatprep.subr.mxu0 0.0
    %1448 = vmatpush1.msra.mxu0 0.0
    %1449 = vmatprep.subr.mxu0 0.0
    %1450 = vmatpush1.msra.mxu0 0.0
    %1451 = vmatprep.subr.mxu0 0.0
    %1452 = vmatpush1.msra.mxu0 0.0
    %1453 = vmatprep.subr.mxu0 0.0
    %1454 = vmatpush1.msra.mxu0 0.0
    %1455 = vmatprep.subr.mxu0 0.0
    %1456 = vmatpush1.msra.mxu0 0.0
    %1457 = vmatprep.subr.mxu0 0.0
    %1458 = vmatpush1.msra.mxu0 0.0
    %1459 = vmatprep.subr.mxu0 0.0
    %1460 = vmatpush1.msra.mxu0 0.0
    %1461 = vmatprep.subr.mxu0 0.0
    %1462 = vmatpush1.msra.mxu0 0.0
    %1463 = vmatprep.subr.mxu0 0.0
    %1464 = vmatpush1.msra.mxu0 0.0
    %1465 = vmatprep.subr.mxu0 0.0
    %1466 = vmatpush1.msra.mxu0 0.0
    %1467 = vmatprep.subr.mxu0 0.0
    %1468 = vmatpush1.msra.mxu0 0.0
    %1469 = vmatprep.subr.mxu0 0.0
    %1470 = vmatpush1.msra.mxu0 0.0
    %1471 = vmatprep.subr.mxu0 0.0
    %1472 = vmatpush1.msra.mxu0 0.0
    %1473 = vmatprep.subr.mxu0 0.0
    %1474 = vmatpush1.msra.mxu0 0.0
    %1475 = vmatprep.subr.mxu0 0.0
    %1476 = vmatpush1.msra.mxu0 0.0
    %1477 = vmatprep.subr.mxu0 0.0
    %1478 = vmatpush1.msra.mxu0 0.0
    %1479 = vmatprep.mubr.f32.mxu0 0.0
    %1480 = vmatmul.mubr.f32.gmra.mrb[0].mxu0 %v1413
    %v1481 = vpop.f32.mrb[0].mxu0
    %v1482 = vadd.f32 %v146, %v1481
    %v1483 = vpop.f32.mrb[0].mxu0
    %v1484 = vadd.f32 %v150, %v1483
    %1485 = vdwg.mxu0
    %1486 = vmatprep.subr.mxu0 %v68
    %1487 = vmatpush1.msra.mxu0 %v67
    %1488 = vmatprep.subr.mxu0 %v72
    %1489 = vmatpush1.msra.mxu0 %v71
    %1490 = vmatprep.subr.mxu0 0.0
    %1491 = vmatpush1.msra.mxu0 0.0
    %1492 = vmatprep.subr.mxu0 0.0
    %1493 = vmatpush1.msra.mxu0 0.0
    %1494 = vmatprep.subr.mxu0 0.0
    %1495 = vmatpush1.msra.mxu0 0.0
    %1496 = vmatprep.subr.mxu0 0.0
    %1497 = vmatpush1.msra.mxu0 0.0
    %1498 = vmatprep.subr.mxu0 0.0
    %1499 = vmatpush1.msra.mxu0 0.0
    %1500 = vmatprep.subr.mxu0 0.0
    %1501 = vmatpush1.msra.mxu0 0.0
    %1502 = vmatprep.subr.mxu0 0.0
    %1503 = vmatpush1.msra.mxu0 0.0
    %1504 = vmatprep.subr.mxu0 0.0
    %1505 = vmatpush1.msra.mxu0 0.0
    %1506 = vmatprep.subr.mxu0 0.0
    %1507 = vmatpush1.msra.mxu0 0.0
    %1508 = vmatprep.subr.mxu0 0.0
    %1509 = vmatpush1.msra.mxu0 0.0
    %1510 = vmatprep.subr.mxu0 0.0
    %1511 = vmatpush1.msra.mxu0 0.0
    %1512 = vmatprep.subr.mxu0 0.0
    %1513 = vmatpush1.msra.mxu0 0.0
    %1514 = vmatprep.subr.mxu0 0.0
    %1515 = vmatpush1.msra.mxu0 0.0
    %1516 = vmatprep.subr.mxu0 0.0
    %1517 = vmatpush1.msra.mxu0 0.0
    %1518 = vmatprep.subr.mxu0 0.0
    %1519 = vmatpush1.msra.mxu0 0.0
    %1520 = vmatprep.subr.mxu0 0.0
    %1521 = vmatpush1.msra.mxu0 0.0
    %1522 = vmatprep.subr.mxu0 0.0
    %1523 = vmatpush1.msra.mxu0 0.0
    %1524 = vmatprep.subr.mxu0 0.0
    %1525 = vmatpush1.msra.mxu0 0.0
    %1526 = vmatprep.subr.mxu0 0.0
    %1527 = vmatpush1.msra.mxu0 0.0
    %1528 = vmatprep.subr.mxu0 0.0
    %1529 = vmatpush1.msra.mxu0 0.0
    %1530 = vmatprep.subr.mxu0 0.0
    %1531 = vmatpush1.msra.mxu0 0.0
    %1532 = vmatprep.subr.mxu0 0.0
    %1533 = vmatpush1.msra.mxu0 0.0
    %1534 = vmatprep.subr.mxu0 0.0
    %1535 = vmatpush1.msra.mxu0 0.0
    %1536 = vmatprep.subr.mxu0 0.0
    %1537 = vmatpush1.msra.mxu0 0.0
    %1538 = vmatprep.subr.mxu0 0.0
    %1539 = vmatpush1.msra.mxu0 0.0
    %1540 = vmatprep.subr.mxu0 0.0
    %1541 = vmatpush1.msra.mxu0 0.0
    %1542 = vmatprep.subr.mxu0 0.0
    %1543 = vmatpush1.msra.mxu0 0.0
    %1544 = vmatprep.subr.mxu0 0.0
    %1545 = vmatpush1.msra.mxu0 0.0
    %1546 = vmatprep.subr.mxu0 0.0
    %1547 = vmatpush1.msra.mxu0 0.0
    %1548 = vmatprep.subr.mxu0 0.0
    %1549 = vmatpush1.msra.mxu0 0.0
    %1550 = vmatprep.mubr.f32.mxu0 0.0
    %1551 = vmatmul.mubr.f32.gmra.mrb[0].mxu0 %v1413
    %v1552 = vpop.f32.mrb[0].mxu0
    %v1553 = vadd.f32 %v154, %v1552
    %v1554 = vpop.f32.mrb[0].mxu0
    %v1555 = vadd.f32 %v158, %v1554
    %1556 = vdwg.mxu0
    %1557 = vmatprep.subr.mxu0 %v74
    %1558 = vmatpush1.msra.mxu0 %v73
    %1559 = vmatprep.subr.mxu0 %v78
    %1560 = vmatpush1.msra.mxu0 %v77
    %1561 = vmatprep.subr.mxu0 %v82
    %1562 = vmatpush1.msra.mxu0 %v81
    %1563 = vmatprep.subr.mxu0 %v86
    %1564 = vmatpush1.msra.mxu0 %v85
    %1565 = vmatprep.subr.mxu0 %v90
    %1566 = vmatpush1.msra.mxu0 %v89
    %1567 = vmatprep.subr.mxu0 %v94
    %1568 = vmatpush1.msra.mxu0 %v93
    %1569 = vmatprep.subr.mxu0 %v98
    %1570 = vmatpush1.msra.mxu0 %v97
    %1571 = vmatprep.subr.mxu0 %v102
    %1572 = vmatpush1.msra.mxu0 %v101
    %1573 = vmatprep.subr.mxu0 %v106
    %1574 = vmatpush1.msra.mxu0 %v105
    %1575 = vmatprep.subr.mxu0 %v110
    %1576 = vmatpush1.msra.mxu0 %v109
    %1577 = vmatprep.subr.mxu0 %v114
    %1578 = vmatpush1.msra.mxu0 %v113
    %1579 = vmatprep.subr.mxu0 %v118
    %1580 = vmatpush1.msra.mxu0 %v117
    %1581 = vmatprep.subr.mxu0 %v122
    %1582 = vmatpush1.msra.mxu0 %v121
    %1583 = vmatprep.subr.mxu0 %v126
    %1584 = vmatpush1.msra.mxu0 %v125
    %1585 = vmatprep.subr.mxu0 %v130
    %1586 = vmatpush1.msra.mxu0 %v129
    %1587 = vmatprep.subr.mxu0 %v134
    %1588 = vmatpush1.msra.mxu0 %v133
    %1589 = vmatprep.subr.mxu0 0.0
    %1590 = vmatpush1.msra.mxu0 0.0
    %1591 = vmatprep.subr.mxu0 0.0
    %1592 = vmatpush1.msra.mxu0 0.0
    %1593 = vmatprep.subr.mxu0 0.0
    %1594 = vmatpush1.msra.mxu0 0.0
    %1595 = vmatprep.subr.mxu0 0.0
    %1596 = vmatpush1.msra.mxu0 0.0
    %1597 = vmatprep.subr.mxu0 0.0
    %1598 = vmatpush1.msra.mxu0 0.0
    %1599 = vmatprep.subr.mxu0 0.0
    %1600 = vmatpush1.msra.mxu0 0.0
    %1601 = vmatprep.subr.mxu0 0.0
    %1602 = vmatpush1.msra.mxu0 0.0
    %1603 = vmatprep.subr.mxu0 0.0
    %1604 = vmatpush1.msra.mxu0 0.0
    %1605 = vmatprep.subr.mxu0 0.0
    %1606 = vmatpush1.msra.mxu0 0.0
    %1607 = vmatprep.subr.mxu0 0.0
    %1608 = vmatpush1.msra.mxu0 0.0
    %1609 = vmatprep.subr.mxu0 0.0
    %1610 = vmatpush1.msra.mxu0 0.0
    %1611 = vmatprep.subr.mxu0 0.0
    %1612 = vmatpush1.msra.mxu0 0.0
    %1613 = vmatprep.subr.mxu0 0.0
    %1614 = vmatpush1.msra.mxu0 0.0
    %1615 = vmatprep.subr.mxu0 0.0
    %1616 = vmatpush1.msra.mxu0 0.0
    %1617 = vmatprep.subr.mxu0 0.0
    %1618 = vmatpush1.msra.mxu0 0.0
    %1619 = vmatprep.subr.mxu0 0.0
    %1620 = vmatpush1.msra.mxu0 0.0
    %1621 = vmatprep.mubr.f32.mxu0 0.0
    %1622 = vmatmul.mubr.f32.gmra.mrb[0].mxu0 %v1408
    %v1623 = vpop.f32.mrb[0].mxu0
    %v1624 = vadd.f32 0.0, %v1623
    %v1625 = vpop.f32.mrb[0].mxu0
    %v1626 = vadd.f32 0.0, %v1625
    %1627 = vdwg.mxu0
    %1628 = vmatprep.subr.mxu0 %v76
    %1629 = vmatpush1.msra.mxu0 %v75
    %1630 = vmatprep.subr.mxu0 %v80
    %1631 = vmatpush1.msra.mxu0 %v79
    %1632 = vmatprep.subr.mxu0 %v84
    %1633 = vmatpush1.msra.mxu0 %v83
    %1634 = vmatprep.subr.mxu0 %v88
    %1635 = vmatpush1.msra.mxu0 %v87
    %1636 = vmatprep.subr.mxu0 %v92
    %1637 = vmatpush1.msra.mxu0 %v91
    %1638 = vmatprep.subr.mxu0 %v96
    %1639 = vmatpush1.msra.mxu0 %v95
    %1640 = vmatprep.subr.mxu0 %v100
    %1641 = vmatpush1.msra.mxu0 %v99
    %1642 = vmatprep.subr.mxu0 %v104
    %1643 = vmatpush1.msra.mxu0 %v103
    %1644 = vmatprep.subr.mxu0 %v108
    %1645 = vmatpush1.msra.mxu0 %v107
    %1646 = vmatprep.subr.mxu0 %v112
    %1647 = vmatpush1.msra.mxu0 %v111
    %1648 = vmatprep.subr.mxu0 %v116
    %1649 = vmatpush1.msra.mxu0 %v115
    %1650 = vmatprep.subr.mxu0 %v120
    %1651 = vmatpush1.msra.mxu0 %v119
    %1652 = vmatprep.subr.mxu0 %v124
    %1653 = vmatpush1.msra.mxu0 %v123
    %1654 = vmatprep.subr.mxu0 %v128
    %1655 = vmatpush1.msra.mxu0 %v127
    %1656 = vmatprep.subr.mxu0 %v132
    %1657 = vmatpush1.msra.mxu0 %v131
    %1658 = vmatprep.subr.mxu0 %v136
    %1659 = vmatpush1.msra.mxu0 %v135
    %1660 = vmatprep.subr.mxu0 0.0
    %1661 = vmatpush1.msra.mxu0 0.0
    %1662 = vmatprep.subr.mxu0 0.0
    %1663 = vmatpush1.msra.mxu0 0.0
    %1664 = vmatprep.subr.mxu0 0.0
    %1665 = vmatpush1.msra.mxu0 0.0
    %1666 = vmatprep.subr.mxu0 0.0
    %1667 = vmatpush1.msra.mxu0 0.0
    %1668 = vmatprep.subr.mxu0 0.0
    %1669 = vmatpush1.msra.mxu0 0.0
    %1670 = vmatprep.subr.mxu0 0.0
    %1671 = vmatpush1.msra.mxu0 0.0
    %1672 = vmatprep.subr.mxu0 0.0
    %1673 = vmatpush1.msra.mxu0 0.0
    %1674 = vmatprep.subr.mxu0 0.0
    %1675 = vmatpush1.msra.mxu0 0.0
    %1676 = vmatprep.subr.mxu0 0.0
    %1677 = vmatpush1.msra.mxu0 0.0
    %1678 = vmatprep.subr.mxu0 0.0
    %1679 = vmatpush1.msra.mxu0 0.0
    %1680 = vmatprep.subr.mxu0 0.0
    %1681 = vmatpush1.msra.mxu0 0.0
    %1682 = vmatprep.subr.mxu0 0.0
    %1683 = vmatpush1.msra.mxu0 0.0
    %1684 = vmatprep.subr.mxu0 0.0
    %1685 = vmatpush1.msra.mxu0 0.0
    %1686 = vmatprep.subr.mxu0 0.0
    %1687 = vmatpush1.msra.mxu0 0.0
    %1688 = vmatprep.subr.mxu0 0.0
    %1689 = vmatpush1.msra.mxu0 0.0
    %1690 = vmatprep.subr.mxu0 0.0
    %1691 = vmatpush1.msra.mxu0 0.0
    %1692 = vmatprep.mubr.f32.mxu0 0.0
    %1693 = vmatmul.mubr.f32.gmra.mrb[0].mxu0 %v1408
    %v1694 = vpop.f32.mrb[0].mxu0
    %v1695 = vadd.f32 0.0, %v1694
    %v1696 = vpop.f32.mrb[0].mxu0
    %v1697 = vadd.f32 0.0, %v1696
    %1698 = vdwg.mxu0
    %v1699 = vadd.f32 %v1482, %v1624
    %v1700 = vadd.f32 %v1484, %v1626
    %v1701 = vadd.f32 %v1553, %v1695
    %v1702 = vadd.f32 %v1555, %v1697
    %v1703 = vmul.f32 %v1699, 0.5
    %v1704 = vtanh.pop %v1703
    %v1705 = vmul.f32 %v1704, 0.5
    %v1706 = vadd.f32 %v1705, 0.5
    %v1707 = vmul.f32 %v1700, 0.5
    %v1708 = vtanh.pop %v1707
    %v1709 = vmul.f32 %v1708, 0.5
    %v1710 = vadd.f32 %v1709, 0.5
    %v1711 = vtanh.pop %v1701
    %v1712 = vmul.f32 %v1702, 0.5
    %v1713 = vtanh.pop %v1712
    %v1714 = vmul.f32 %v1713, 0.5
    %v1715 = vadd.f32 %v1714, 0.5
    %v1716 = vmul.f32 %v1710, %v1406
    %v1717 = vmul.f32 %v1706, %v1711
    %v1718 = vadd.f32 %v1716, %v1717
    %v1719 = vtanh.pop %v1718
    %v1720 = vmul.f32 %v1715, %v1719
    %v1721 = vadd.f32 %v1409, %v1720
    %s1722 = scalar_lea.vmem [#allocation5], 40
    %v1723 = vld [vmem:[%s1722] sm:$0xff]
    %v1725 = vsel %vm163, %v1723, 0
    %1727 = vmatprep.subr.mxu0 %v66
    %1728 = vmatpush1.msra.mxu0 %v65
    %1729 = vmatprep.subr.mxu0 %v70
    %1730 = vmatpush1.msra.mxu0 %v69
    %1731 = vmatprep.subr.mxu0 0.0
    %1732 = vmatpush1.msra.mxu0 0.0
    %1733 = vmatprep.subr.mxu0 0.0
    %1734 = vmatpush1.msra.mxu0 0.0
    %1735 = vmatprep.subr.mxu0 0.0
    %1736 = vmatpush1.msra.mxu0 0.0
    %1737 = vmatprep.subr.mxu0 0.0
    %1738 = vmatpush1.msra.mxu0 0.0
    %1739 = vmatprep.subr.mxu0 0.0
    %1740 = vmatpush1.msra.mxu0 0.0
    %1741 = vmatprep.subr.mxu0 0.0
    %1742 = vmatpush1.msra.mxu0 0.0
    %1743 = vmatprep.subr.mxu0 0.0
    %1744 = vmatpush1.msra.mxu0 0.0
    %1745 = vmatprep.subr.mxu0 0.0
    %1746 = vmatpush1.msra.mxu0 0.0
    %1747 = vmatprep.subr.mxu0 0.0
    %1748 = vmatpush1.msra.mxu0 0.0
    %1749 = vmatprep.subr.mxu0 0.0
    %1750 = vmatpush1.msra.mxu0 0.0
    %1751 = vmatprep.subr.mxu0 0.0
    %1752 = vmatpush1.msra.mxu0 0.0
    %1753 = vmatprep.subr.mxu0 0.0
    %1754 = vmatpush1.msra.mxu0 0.0
    %1755 = vmatprep.subr.mxu0 0.0
    %1756 = vmatpush1.msra.mxu0 0.0
    %1757 = vmatprep.subr.mxu0 0.0
    %1758 = vmatpush1.msra.mxu0 0.0
    %1759 = vmatprep.subr.mxu0 0.0
    %1760 = vmatpush1.msra.mxu0 0.0
    %1761 = vmatprep.subr.mxu0 0.0
    %1762 = vmatpush1.msra.mxu0 0.0
    %1763 = vmatprep.subr.mxu0 0.0
    %1764 = vmatpush1.msra.mxu0 0.0
    %1765 = vmatprep.subr.mxu0 0.0
    %1766 = vmatpush1.msra.mxu0 0.0
    %1767 = vmatprep.subr.mxu0 0.0
    %1768 = vmatpush1.msra.mxu0 0.0
    %1769 = vmatprep.subr.mxu0 0.0
    %1770 = vmatpush1.msra.mxu0 0.0
    %1771 = vmatprep.subr.mxu0 0.0
    %1772 = vmatpush1.msra.mxu0 0.0
    %1773 = vmatprep.subr.mxu0 0.0
    %1774 = vmatpush1.msra.mxu0 0.0
    %1775 = vmatprep.subr.mxu0 0.0
    %1776 = vmatpush1.msra.mxu0 0.0
    %1777 = vmatprep.subr.mxu0 0.0
    %1778 = vmatpush1.msra.mxu0 0.0
    %1779 = vmatprep.subr.mxu0 0.0
    %1780 = vmatpush1.msra.mxu0 0.0
    %1781 = vmatprep.subr.mxu0 0.0
    %1782 = vmatpush1.msra.mxu0 0.0
    %1783 = vmatprep.subr.mxu0 0.0
    %1784 = vmatpush1.msra.mxu0 0.0
    %1785 = vmatprep.subr.mxu0 0.0
    %1786 = vmatpush1.msra.mxu0 0.0
    %1787 = vmatprep.subr.mxu0 0.0
    %1788 = vmatpush1.msra.mxu0 0.0
    %1789 = vmatprep.subr.mxu0 0.0
    %1790 = vmatpush1.msra.mxu0 0.0
    %1791 = vmatprep.mubr.f32.mxu0 0.0
    %1792 = vmatmul.mubr.f32.gmra.mrb[0].mxu0 %v1725
    %v1793 = vpop.f32.mrb[0].mxu0
    %v1794 = vadd.f32 %v146, %v1793
    %v1795 = vpop.f32.mrb[0].mxu0
    %v1796 = vadd.f32 %v150, %v1795
    %1797 = vdwg.mxu0
    %1798 = vmatprep.subr.mxu0 %v68
    %1799 = vmatpush1.msra.mxu0 %v67
    %1800 = vmatprep.subr.mxu0 %v72
    %1801 = vmatpush1.msra.mxu0 %v71
    %1802 = vmatprep.subr.mxu0 0.0
    %1803 = vmatpush1.msra.mxu0 0.0
    %1804 = vmatprep.subr.mxu0 0.0
    %1805 = vmatpush1.msra.mxu0 0.0
    %1806 = vmatprep.subr.mxu0 0.0
    %1807 = vmatpush1.msra.mxu0 0.0
    %1808 = vmatprep.subr.mxu0 0.0
    %1809 = vmatpush1.msra.mxu0 0.0
    %1810 = vmatprep.subr.mxu0 0.0
    %1811 = vmatpush1.msra.mxu0 0.0
    %1812 = vmatprep.subr.mxu0 0.0
    %1813 = vmatpush1.msra.mxu0 0.0
    %1814 = vmatprep.subr.mxu0 0.0
    %1815 = vmatpush1.msra.mxu0 0.0
    %1816 = vmatprep.subr.mxu0 0.0
    %1817 = vmatpush1.msra.mxu0 0.0
    %1818 = vmatprep.subr.mxu0 0.0
    %1819 = vmatpush1.msra.mxu0 0.0
    %1820 = vmatprep.subr.mxu0 0.0
    %1821 = vmatpush1.msra.mxu0 0.0
    %1822 = vmatprep.subr.mxu0 0.0
    %1823 = vmatpush1.msra.mxu0 0.0
    %1824 = vmatprep.subr.mxu0 0.0
    %1825 = vmatpush1.msra.mxu0 0.0
    %1826 = vmatprep.subr.mxu0 0.0
    %1827 = vmatpush1.msra.mxu0 0.0
    %1828 = vmatprep.subr.mxu0 0.0
    %1829 = vmatpush1.msra.mxu0 0.0
    %1830 = vmatprep.subr.mxu0 0.0
    %1831 = vmatpush1.msra.mxu0 0.0
    %1832 = vmatprep.subr.mxu0 0.0
    %1833 = vmatpush1.msra.mxu0 0.0
    %1834 = vmatprep.subr.mxu0 0.0
    %1835 = vmatpush1.msra.mxu0 0.0
    %1836 = vmatprep.subr.mxu0 0.0
    %1837 = vmatpush1.msra.mxu0 0.0
    %1838 = vmatprep.subr.mxu0 0.0
    %1839 = vmatpush1.msra.mxu0 0.0
    %1840 = vmatprep.subr.mxu0 0.0
    %1841 = vmatpush1.msra.mxu0 0.0
    %1842 = vmatprep.subr.mxu0 0.0
    %1843 = vmatpush1.msra.mxu0 0.0
    %1844 = vmatprep.subr.mxu0 0.0
    %1845 = vmatpush1.msra.mxu0 0.0
    %1846 = vmatprep.subr.mxu0 0.0
    %1847 = vmatpush1.msra.mxu0 0.0
    %1848 = vmatprep.subr.mxu0 0.0
    %1849 = vmatpush1.msra.mxu0 0.0
    %1850 = vmatprep.subr.mxu0 0.0
    %1851 = vmatpush1.msra.mxu0 0.0
    %1852 = vmatprep.subr.mxu0 0.0
    %1853 = vmatpush1.msra.mxu0 0.0
    %1854 = vmatprep.subr.mxu0 0.0
    %1855 = vmatpush1.msra.mxu0 0.0
    %1856 = vmatprep.subr.mxu0 0.0
    %1857 = vmatpush1.msra.mxu0 0.0
    %1858 = vmatprep.subr.mxu0 0.0
    %1859 = vmatpush1.msra.mxu0 0.0
    %1860 = vmatprep.subr.mxu0 0.0
    %1861 = vmatpush1.msra.mxu0 0.0
    %1862 = vmatprep.mubr.f32.mxu0 0.0
    %1863 = vmatmul.mubr.f32.gmra.mrb[0].mxu0 %v1725
    %v1864 = vpop.f32.mrb[0].mxu0
    %v1865 = vadd.f32 %v154, %v1864
    %v1866 = vpop.f32.mrb[0].mxu0
    %v1867 = vadd.f32 %v158, %v1866
    %1868 = vdwg.mxu0
    %1869 = vmatprep.subr.mxu0 %v74
    %1870 = vmatpush1.msra.mxu0 %v73
    %1871 = vmatprep.subr.mxu0 %v78
    %1872 = vmatpush1.msra.mxu0 %v77
    %1873 = vmatprep.subr.mxu0 %v82
    %1874 = vmatpush1.msra.mxu0 %v81
    %1875 = vmatprep.subr.mxu0 %v86
    %1876 = vmatpush1.msra.mxu0 %v85
    %1877 = vmatprep.subr.mxu0 %v90
    %1878 = vmatpush1.msra.mxu0 %v89
    %1879 = vmatprep.subr.mxu0 %v94
    %1880 = vmatpush1.msra.mxu0 %v93
    %1881 = vmatprep.subr.mxu0 %v98
    %1882 = vmatpush1.msra.mxu0 %v97
    %1883 = vmatprep.subr.mxu0 %v102
    %1884 = vmatpush1.msra.mxu0 %v101
    %1885 = vmatprep.subr.mxu0 %v106
    %1886 = vmatpush1.msra.mxu0 %v105
    %1887 = vmatprep.subr.mxu0 %v110
    %1888 = vmatpush1.msra.mxu0 %v109
    %1889 = vmatprep.subr.mxu0 %v114
    %1890 = vmatpush1.msra.mxu0 %v113
    %1891 = vmatprep.subr.mxu0 %v118
    %1892 = vmatpush1.msra.mxu0 %v117
    %1893 = vmatprep.subr.mxu0 %v122
    %1894 = vmatpush1.msra.mxu0 %v121
    %1895 = vmatprep.subr.mxu0 %v126
    %1896 = vmatpush1.msra.mxu0 %v125
    %1897 = vmatprep.subr.mxu0 %v130
    %1898 = vmatpush1.msra.mxu0 %v129
    %1899 = vmatprep.subr.mxu0 %v134
    %1900 = vmatpush1.msra.mxu0 %v133
    %1901 = vmatprep.subr.mxu0 0.0
    %1902 = vmatpush1.msra.mxu0 0.0
    %1903 = vmatprep.subr.mxu0 0.0
    %1904 = vmatpush1.msra.mxu0 0.0
    %1905 = vmatprep.subr.mxu0 0.0
    %1906 = vmatpush1.msra.mxu0 0.0
    %1907 = vmatprep.subr.mxu0 0.0
    %1908 = vmatpush1.msra.mxu0 0.0
    %1909 = vmatprep.subr.mxu0 0.0
    %1910 = vmatpush1.msra.mxu0 0.0
    %1911 = vmatprep.subr.mxu0 0.0
    %1912 = vmatpush1.msra.mxu0 0.0
    %1913 = vmatprep.subr.mxu0 0.0
    %1914 = vmatpush1.msra.mxu0 0.0
    %1915 = vmatprep.subr.mxu0 0.0
    %1916 = vmatpush1.msra.mxu0 0.0
    %1917 = vmatprep.subr.mxu0 0.0
    %1918 = vmatpush1.msra.mxu0 0.0
    %1919 = vmatprep.subr.mxu0 0.0
    %1920 = vmatpush1.msra.mxu0 0.0
    %1921 = vmatprep.subr.mxu0 0.0
    %1922 = vmatpush1.msra.mxu0 0.0
    %1923 = vmatprep.subr.mxu0 0.0
    %1924 = vmatpush1.msra.mxu0 0.0
    %1925 = vmatprep.subr.mxu0 0.0
    %1926 = vmatpush1.msra.mxu0 0.0
    %1927 = vmatprep.subr.mxu0 0.0
    %1928 = vmatpush1.msra.mxu0 0.0
    %1929 = vmatprep.subr.mxu0 0.0
    %1930 = vmatpush1.msra.mxu0 0.0
    %1931 = vmatprep.subr.mxu0 0.0
    %1932 = vmatpush1.msra.mxu0 0.0
    %1933 = vmatprep.mubr.f32.mxu0 0.0
    %1934 = vmatmul.mubr.f32.gmra.mrb[0].mxu0 %v1720
    %v1935 = vpop.f32.mrb[0].mxu0
    %v1936 = vadd.f32 0.0, %v1935
    %v1937 = vpop.f32.mrb[0].mxu0
    %v1938 = vadd.f32 0.0, %v1937
    %1939 = vdwg.mxu0
    %1940 = vmatprep.subr.mxu0 %v76
    %1941 = vmatpush1.msra.mxu0 %v75
    %1942 = vmatprep.subr.mxu0 %v80
    %1943 = vmatpush1.msra.mxu0 %v79
    %1944 = vmatprep.subr.mxu0 %v84
    %1945 = vmatpush1.msra.mxu0 %v83
    %1946 = vmatprep.subr.mxu0 %v88
    %1947 = vmatpush1.msra.mxu0 %v87
    %1948 = vmatprep.subr.mxu0 %v92
    %1949 = vmatpush1.msra.mxu0 %v91
    %1950 = vmatprep.subr.mxu0 %v96
    %1951 = vmatpush1.msra.mxu0 %v95
    %1952 = vmatprep.subr.mxu0 %v100
    %1953 = vmatpush1.msra.mxu0 %v99
    %1954 = vmatprep.subr.mxu0 %v104
    %1955 = vmatpush1.msra.mxu0 %v103
    %1956 = vmatprep.subr.mxu0 %v108
    %1957 = vmatpush1.msra.mxu0 %v107
    %1958 = vmatprep.subr.mxu0 %v112
    %1959 = vmatpush1.msra.mxu0 %v111
    %1960 = vmatprep.subr.mxu0 %v116
    %1961 = vmatpush1.msra.mxu0 %v115
    %1962 = vmatprep.subr.mxu0 %v120
    %1963 = vmatpush1.msra.mxu0 %v119
    %1964 = vmatprep.subr.mxu0 %v124
    %1965 = vmatpush1.msra.mxu0 %v123
    %1966 = vmatprep.subr.mxu0 %v128
    %1967 = vmatpush1.msra.mxu0 %v127
    %1968 = vmatprep.subr.mxu0 %v132
    %1969 = vmatpush1.msra.mxu0 %v131
    %1970 = vmatprep.subr.mxu0 %v136
    %1971 = vmatpush1.msra.mxu0 %v135
    %1972 = vmatprep.subr.mxu0 0.0
    %1973 = vmatpush1.msra.mxu0 0.0
    %1974 = vmatprep.subr.mxu0 0.0
    %1975 = vmatpush1.msra.mxu0 0.0
    %1976 = vmatprep.subr.mxu0 0.0
    %1977 = vmatpush1.msra.mxu0 0.0
    %1978 = vmatprep.subr.mxu0 0.0
    %1979 = vmatpush1.msra.mxu0 0.0
    %1980 = vmatprep.subr.mxu0 0.0
    %1981 = vmatpush1.msra.mxu0 0.0
    %1982 = vmatprep.subr.mxu0 0.0
    %1983 = vmatpush1.msra.mxu0 0.0
    %1984 = vmatprep.subr.mxu0 0.0
    %1985 = vmatpush1.msra.mxu0 0.0
    %1986 = vmatprep.subr.mxu0 0.0
    %1987 = vmatpush1.msra.mxu0 0.0
    %1988 = vmatprep.subr.mxu0 0.0
    %1989 = vmatpush1.msra.mxu0 0.0
    %1990 = vmatprep.subr.mxu0 0.0
    %1991 = vmatpush1.msra.mxu0 0.0
    %1992 = vmatprep.subr.mxu0 0.0
    %1993 = vmatpush1.msra.mxu0 0.0
    %1994 = vmatprep.subr.mxu0 0.0
    %1995 = vmatpush1.msra.mxu0 0.0
    %1996 = vmatprep.subr.mxu0 0.0
    %1997 = vmatpush1.msra.mxu0 0.0
    %1998 = vmatprep.subr.mxu0 0.0
    %1999 = vmatpush1.msra.mxu0 0.0
    %2000 = vmatprep.subr.mxu0 0.0
    %2001 = vmatpush1.msra.mxu0 0.0
    %2002 = vmatprep.subr.mxu0 0.0
    %2003 = vmatpush1.msra.mxu0 0.0
    %2004 = vmatprep.mubr.f32.mxu0 0.0
    %2005 = vmatmul.mubr.f32.gmra.mrb[0].mxu0 %v1720
    %v2006 = vpop.f32.mrb[0].mxu0
    %v2007 = vadd.f32 0.0, %v2006
    %v2008 = vpop.f32.mrb[0].mxu0
    %v2009 = vadd.f32 0.0, %v2008
    %2010 = vdwg.mxu0
    %v2011 = vadd.f32 %v1794, %v1936
    %v2012 = vadd.f32 %v1796, %v1938
    %v2013 = vadd.f32 %v1865, %v2007
    %v2014 = vadd.f32 %v1867, %v2009
    %v2015 = vmul.f32 %v2011, 0.5
    %v2016 = vtanh.pop %v2015
    %v2017 = vmul.f32 %v2016, 0.5
    %v2018 = vadd.f32 %v2017, 0.5
    %v2019 = vmul.f32 %v2012, 0.5
    %v2020 = vtanh.pop %v2019
    %v2021 = vmul.f32 %v2020, 0.5
    %v2022 = vadd.f32 %v2021, 0.5
    %v2023 = vtanh.pop %v2013
    %v2024 = vmul.f32 %v2014, 0.5
    %v2025 = vtanh.pop %v2024
    %v2026 = vmul.f32 %v2025, 0.5
    %v2027 = vadd.f32 %v2026, 0.5
    %v2028 = vmul.f32 %v2022, %v1718
    %v2029 = vmul.f32 %v2018, %v2023
    %v2030 = vadd.f32 %v2028, %v2029
    %v2031 = vtanh.pop %v2030
    %v2032 = vmul.f32 %v2027, %v2031
    %v2033 = vadd.f32 %v1721, %v2032
    %s2034 = scalar_lea.vmem [#allocation5], 48
    %v2035 = vld [vmem:[%s2034] sm:$0xff]
    %v2037 = vsel %vm163, %v2035, 0
    %2039 = vmatprep.subr.mxu0 %v66
    %2040 = vmatpush1.msra.mxu0 %v65
    %2041 = vmatprep.subr.mxu0 %v70
    %2042 = vmatpush1.msra.mxu0 %v69
    %2043 = vmatprep.subr.mxu0 0.0
    %2044 = vmatpush1.msra.mxu0 0.0
    %2045 = vmatprep.subr.mxu0 0.0
    %2046 = vmatpush1.msra.mxu0 0.0
    %2047 = vmatprep.subr.mxu0 0.0
    %2048 = vmatpush1.msra.mxu0 0.0
    %2049 = vmatprep.subr.mxu0 0.0
    %2050 = vmatpush1.msra.mxu0 0.0
    %2051 = vmatprep.subr.mxu0 0.0
    %2052 = vmatpush1.msra.mxu0 0.0
    %2053 = vmatprep.subr.mxu0 0.0
    %2054 = vmatpush1.msra.mxu0 0.0
    %2055 = vmatprep.subr.mxu0 0.0
    %2056 = vmatpush1.msra.mxu0 0.0
    %2057 = vmatprep.subr.mxu0 0.0
    %2058 = vmatpush1.msra.mxu0 0.0
    %2059 = vmatprep.subr.mxu0 0.0
    %2060 = vmatpush1.msra.mxu0 0.0
    %2061 = vmatprep.subr.mxu0 0.0
    %2062 = vmatpush1.msra.mxu0 0.0
    %2063 = vmatprep.subr.mxu0 0.0
    %2064 = vmatpush1.msra.mxu0 0.0
    %2065 = vmatprep.subr.mxu0 0.0
    %2066 = vmatpush1.msra.mxu0 0.0
    %2067 = vmatprep.subr.mxu0 0.0
    %2068 = vmatpush1.msra.mxu0 0.0
    %2069 = vmatprep.subr.mxu0 0.0
    %2070 = vmatpush1.msra.mxu0 0.0
    %2071 = vmatprep.subr.mxu0 0.0
    %2072 = vmatpush1.msra.mxu0 0.0
    %2073 = vmatprep.subr.mxu0 0.0
    %2074 = vmatpush1.msra.mxu0 0.0
    %2075 = vmatprep.subr.mxu0 0.0
    %2076 = vmatpush1.msra.mxu0 0.0
    %2077 = vmatprep.subr.mxu0 0.0
    %2078 = vmatpush1.msra.mxu0 0.0
    %2079 = vmatprep.subr.mxu0 0.0
    %2080 = vmatpush1.msra.mxu0 0.0
    %2081 = vmatprep.subr.mxu0 0.0
    %2082 = vmatpush1.msra.mxu0 0.0
    %2083 = vmatprep.subr.mxu0 0.0
    %2084 = vmatpush1.msra.mxu0 0.0
    %2085 = vmatprep.subr.mxu0 0.0
    %2086 = vmatpush1.msra.mxu0 0.0
    %2087 = vmatprep.subr.mxu0 0.0
    %2088 = vmatpush1.msra.mxu0 0.0
    %2089 = vmatprep.subr.mxu0 0.0
    %2090 = vmatpush1.msra.mxu0 0.0
    %2091 = vmatprep.subr.mxu0 0.0
    %2092 = vmatpush1.msra.mxu0 0.0
    %2093 = vmatprep.subr.mxu0 0.0
    %2094 = vmatpush1.msra.mxu0 0.0
    %2095 = vmatprep.subr.mxu0 0.0
    %2096 = vmatpush1.msra.mxu0 0.0
    %2097 = vmatprep.subr.mxu0 0.0
    %2098 = vmatpush1.msra.mxu0 0.0
    %2099 = vmatprep.subr.mxu0 0.0
    %2100 = vmatpush1.msra.mxu0 0.0
    %2101 = vmatprep.subr.mxu0 0.0
    %2102 = vmatpush1.msra.mxu0 0.0
    %2103 = vmatprep.mubr.f32.mxu0 0.0
    %2104 = vmatmul.mubr.f32.gmra.mrb[0].mxu0 %v2037
    %v2105 = vpop.f32.mrb[0].mxu0
    %v2106 = vadd.f32 %v146, %v2105
    %v2107 = vpop.f32.mrb[0].mxu0
    %v2108 = vadd.f32 %v150, %v2107
    %2109 = vdwg.mxu0
    %2110 = vmatprep.subr.mxu0 %v68
    %2111 = vmatpush1.msra.mxu0 %v67
    %2112 = vmatprep.subr.mxu0 %v72
    %2113 = vmatpush1.msra.mxu0 %v71
    %2114 = vmatprep.subr.mxu0 0.0
    %2115 = vmatpush1.msra.mxu0 0.0
    %2116 = vmatprep.subr.mxu0 0.0
    %2117 = vmatpush1.msra.mxu0 0.0
    %2118 = vmatprep.subr.mxu0 0.0
    %2119 = vmatpush1.msra.mxu0 0.0
    %2120 = vmatprep.subr.mxu0 0.0
    %2121 = vmatpush1.msra.mxu0 0.0
    %2122 = vmatprep.subr.mxu0 0.0
    %2123 = vmatpush1.msra.mxu0 0.0
    %2124 = vmatprep.subr.mxu0 0.0
    %2125 = vmatpush1.msra.mxu0 0.0
    %2126 = vmatprep.subr.mxu0 0.0
    %2127 = vmatpush1.msra.mxu0 0.0
    %2128 = vmatprep.subr.mxu0 0.0
    %2129 = vmatpush1.msra.mxu0 0.0
    %2130 = vmatprep.subr.mxu0 0.0
    %2131 = vmatpush1.msra.mxu0 0.0
    %2132 = vmatprep.subr.mxu0 0.0
    %2133 = vmatpush1.msra.mxu0 0.0
    %2134 = vmatprep.subr.mxu0 0.0
    %2135 = vmatpush1.msra.mxu0 0.0
    %2136 = vmatprep.subr.mxu0 0.0
    %2137 = vmatpush1.msra.mxu0 0.0
    %2138 = vmatprep.subr.mxu0 0.0
    %2139 = vmatpush1.msra.mxu0 0.0
    %2140 = vmatprep.subr.mxu0 0.0
    %2141 = vmatpush1.msra.mxu0 0.0
    %2142 = vmatprep.subr.mxu0 0.0
    %2143 = vmatpush1.msra.mxu0 0.0
    %2144 = vmatprep.subr.mxu0 0.0
    %2145 = vmatpush1.msra.mxu0 0.0
    %2146 = vmatprep.subr.mxu0 0.0
    %2147 = vmatpush1.msra.mxu0 0.0
    %2148 = vmatprep.subr.mxu0 0.0
    %2149 = vmatpush1.msra.mxu0 0.0
    %2150 = vmatprep.subr.mxu0 0.0
    %2151 = vmatpush1.msra.mxu0 0.0
    %2152 = vmatprep.subr.mxu0 0.0
    %2153 = vmatpush1.msra.mxu0 0.0
    %2154 = vmatprep.subr.mxu0 0.0
    %2155 = vmatpush1.msra.mxu0 0.0
    %2156 = vmatprep.subr.mxu0 0.0
    %2157 = vmatpush1.msra.mxu0 0.0
    %2158 = vmatprep.subr.mxu0 0.0
    %2159 = vmatpush1.msra.mxu0 0.0
    %2160 = vmatprep.subr.mxu0 0.0
    %2161 = vmatpush1.msra.mxu0 0.0
    %2162 = vmatprep.subr.mxu0 0.0
    %2163 = vmatpush1.msra.mxu0 0.0
    %2164 = vmatprep.subr.mxu0 0.0
    %2165 = vmatpush1.msra.mxu0 0.0
    %2166 = vmatprep.subr.mxu0 0.0
    %2167 = vmatpush1.msra.mxu0 0.0
    %2168 = vmatprep.subr.mxu0 0.0
    %2169 = vmatpush1.msra.mxu0 0.0
    %2170 = vmatprep.subr.mxu0 0.0
    %2171 = vmatpush1.msra.mxu0 0.0
    %2172 = vmatprep.subr.mxu0 0.0
    %2173 = vmatpush1.msra.mxu0 0.0
    %2174 = vmatprep.mubr.f32.mxu0 0.0
    %2175 = vmatmul.mubr.f32.gmra.mrb[0].mxu0 %v2037
    %v2176 = vpop.f32.mrb[0].mxu0
    %v2177 = vadd.f32 %v154, %v2176
    %v2178 = vpop.f32.mrb[0].mxu0
    %v2179 = vadd.f32 %v158, %v2178
    %2180 = vdwg.mxu0
    %2181 = vmatprep.subr.mxu0 %v74
    %2182 = vmatpush1.msra.mxu0 %v73
    %2183 = vmatprep.subr.mxu0 %v78
    %2184 = vmatpush1.msra.mxu0 %v77
    %2185 = vmatprep.subr.mxu0 %v82
    %2186 = vmatpush1.msra.mxu0 %v81
    %2187 = vmatprep.subr.mxu0 %v86
    %2188 = vmatpush1.msra.mxu0 %v85
    %2189 = vmatprep.subr.mxu0 %v90
    %2190 = vmatpush1.msra.mxu0 %v89
    %2191 = vmatprep.subr.mxu0 %v94
    %2192 = vmatpush1.msra.mxu0 %v93
    %2193 = vmatprep.subr.mxu0 %v98
    %2194 = vmatpush1.msra.mxu0 %v97
    %2195 = vmatprep.subr.mxu0 %v102
    %2196 = vmatpush1.msra.mxu0 %v101
    %2197 = vmatprep.subr.mxu0 %v106
    %2198 = vmatpush1.msra.mxu0 %v105
    %2199 = vmatprep.subr.mxu0 %v110
    %2200 = vmatpush1.msra.mxu0 %v109
    %2201 = vmatprep.subr.mxu0 %v114
    %2202 = vmatpush1.msra.mxu0 %v113
    %2203 = vmatprep.subr.mxu0 %v118
    %2204 = vmatpush1.msra.mxu0 %v117
    %2205 = vmatprep.subr.mxu0 %v122
    %2206 = vmatpush1.msra.mxu0 %v121
    %2207 = vmatprep.subr.mxu0 %v126
    %2208 = vmatpush1.msra.mxu0 %v125
    %2209 = vmatprep.subr.mxu0 %v130
    %2210 = vmatpush1.msra.mxu0 %v129
    %2211 = vmatprep.subr.mxu0 %v134
    %2212 = vmatpush1.msra.mxu0 %v133
    %2213 = vmatprep.subr.mxu0 0.0
    %2214 = vmatpush1.msra.mxu0 0.0
    %2215 = vmatprep.subr.mxu0 0.0
    %2216 = vmatpush1.msra.mxu0 0.0
    %2217 = vmatprep.subr.mxu0 0.0
    %2218 = vmatpush1.msra.mxu0 0.0
    %2219 = vmatprep.subr.mxu0 0.0
    %2220 = vmatpush1.msra.mxu0 0.0
    %2221 = vmatprep.subr.mxu0 0.0
    %2222 = vmatpush1.msra.mxu0 0.0
    %2223 = vmatprep.subr.mxu0 0.0
    %2224 = vmatpush1.msra.mxu0 0.0
    %2225 = vmatprep.subr.mxu0 0.0
    %2226 = vmatpush1.msra.mxu0 0.0
    %2227 = vmatprep.subr.mxu0 0.0
    %2228 = vmatpush1.msra.mxu0 0.0
    %2229 = vmatprep.subr.mxu0 0.0
    %2230 = vmatpush1.msra.mxu0 0.0
    %2231 = vmatprep.subr.mxu0 0.0
    %2232 = vmatpush1.msra.mxu0 0.0
    %2233 = vmatprep.subr.mxu0 0.0
    %2234 = vmatpush1.msra.mxu0 0.0
    %2235 = vmatprep.subr.mxu0 0.0
    %2236 = vmatpush1.msra.mxu0 0.0
    %2237 = vmatprep.subr.mxu0 0.0
    %2238 = vmatpush1.msra.mxu0 0.0
    %2239 = vmatprep.subr.mxu0 0.0
    %2240 = vmatpush1.msra.mxu0 0.0
    %2241 = vmatprep.subr.mxu0 0.0
    %2242 = vmatpush1.msra.mxu0 0.0
    %2243 = vmatprep.subr.mxu0 0.0
    %2244 = vmatpush1.msra.mxu0 0.0
    %2245 = vmatprep.mubr.f32.mxu0 0.0
    %2246 = vmatmul.mubr.f32.gmra.mrb[0].mxu0 %v2032
    %v2247 = vpop.f32.mrb[0].mxu0
    %v2248 = vadd.f32 0.0, %v2247
    %v2249 = vpop.f32.mrb[0].mxu0
    %v2250 = vadd.f32 0.0, %v2249
    %2251 = vdwg.mxu0
    %2252 = vmatprep.subr.mxu0 %v76
    %2253 = vmatpush1.msra.mxu0 %v75
    %2254 = vmatprep.subr.mxu0 %v80
    %2255 = vmatpush1.msra.mxu0 %v79
    %2256 = vmatprep.subr.mxu0 %v84
    %2257 = vmatpush1.msra.mxu0 %v83
    %2258 = vmatprep.subr.mxu0 %v88
    %2259 = vmatpush1.msra.mxu0 %v87
    %2260 = vmatprep.subr.mxu0 %v92
    %2261 = vmatpush1.msra.mxu0 %v91
    %2262 = vmatprep.subr.mxu0 %v96
    %2263 = vmatpush1.msra.mxu0 %v95
    %2264 = vmatprep.subr.mxu0 %v100
    %2265 = vmatpush1.msra.mxu0 %v99
    %2266 = vmatprep.subr.mxu0 %v104
    %2267 = vmatpush1.msra.mxu0 %v103
    %2268 = vmatprep.subr.mxu0 %v108
    %2269 = vmatpush1.msra.mxu0 %v107
    %2270 = vmatprep.subr.mxu0 %v112
    %2271 = vmatpush1.msra.mxu0 %v111
    %2272 = vmatprep.subr.mxu0 %v116
    %2273 = vmatpush1.msra.mxu0 %v115
    %2274 = vmatprep.subr.mxu0 %v120
    %2275 = vmatpush1.msra.mxu0 %v119
    %2276 = vmatprep.subr.mxu0 %v124
    %2277 = vmatpush1.msra.mxu0 %v123
    %2278 = vmatprep.subr.mxu0 %v128
    %2279 = vmatpush1.msra.mxu0 %v127
    %2280 = vmatprep.subr.mxu0 %v132
    %2281 = vmatpush1.msra.mxu0 %v131
    %2282 = vmatprep.subr.mxu0 %v136
    %2283 = vmatpush1.msra.mxu0 %v135
    %2284 = vmatprep.subr.mxu0 0.0
    %2285 = vmatpush1.msra.mxu0 0.0
    %2286 = vmatprep.subr.mxu0 0.0
    %2287 = vmatpush1.msra.mxu0 0.0
    %2288 = vmatprep.subr.mxu0 0.0
    %2289 = vmatpush1.msra.mxu0 0.0
    %2290 = vmatprep.subr.mxu0 0.0
    %2291 = vmatpush1.msra.mxu0 0.0
    %2292 = vmatprep.subr.mxu0 0.0
    %2293 = vmatpush1.msra.mxu0 0.0
    %2294 = vmatprep.subr.mxu0 0.0
    %2295 = vmatpush1.msra.mxu0 0.0
    %2296 = vmatprep.subr.mxu0 0.0
    %2297 = vmatpush1.msra.mxu0 0.0
    %2298 = vmatprep.subr.mxu0 0.0
    %2299 = vmatpush1.msra.mxu0 0.0
    %2300 = vmatprep.subr.mxu0 0.0
    %2301 = vmatpush1.msra.mxu0 0.0
    %2302 = vmatprep.subr.mxu0 0.0
    %2303 = vmatpush1.msra.mxu0 0.0
    %2304 = vmatprep.subr.mxu0 0.0
    %2305 = vmatpush1.msra.mxu0 0.0
    %2306 = vmatprep.subr.mxu0 0.0
    %2307 = vmatpush1.msra.mxu0 0.0
    %2308 = vmatprep.subr.mxu0 0.0
    %2309 = vmatpush1.msra.mxu0 0.0
    %2310 = vmatprep.subr.mxu0 0.0
    %2311 = vmatpush1.msra.mxu0 0.0
    %2312 = vmatprep.subr.mxu0 0.0
    %2313 = vmatpush1.msra.mxu0 0.0
    %2314 = vmatprep.subr.mxu0 0.0
    %2315 = vmatpush1.msra.mxu0 0.0
    %2316 = vmatprep.mubr.f32.mxu0 0.0
    %2317 = vmatmul.mubr.f32.gmra.mrb[0].mxu0 %v2032
    %v2318 = vpop.f32.mrb[0].mxu0
    %v2319 = vadd.f32 0.0, %v2318
    %v2320 = vpop.f32.mrb[0].mxu0
    %v2321 = vadd.f32 0.0, %v2320
    %2322 = vdwg.mxu0
    %v2323 = vadd.f32 %v2106, %v2248
    %v2324 = vadd.f32 %v2108, %v2250
    %v2325 = vadd.f32 %v2177, %v2319
    %v2326 = vadd.f32 %v2179, %v2321
    %v2327 = vmul.f32 %v2323, 0.5
    %v2328 = vtanh.pop %v2327
    %v2329 = vmul.f32 %v2328, 0.5
    %v2330 = vadd.f32 %v2329, 0.5
    %v2331 = vmul.f32 %v2324, 0.5
    %v2332 = vtanh.pop %v2331
    %v2333 = vmul.f32 %v2332, 0.5
    %v2334 = vadd.f32 %v2333, 0.5
    %v2335 = vtanh.pop %v2325
    %v2336 = vmul.f32 %v2326, 0.5
    %v2337 = vtanh.pop %v2336
    %v2338 = vmul.f32 %v2337, 0.5
    %v2339 = vadd.f32 %v2338, 0.5
    %v2340 = vmul.f32 %v2334, %v2030
    %v2341 = vmul.f32 %v2330, %v2335
    %v2342 = vadd.f32 %v2340, %v2341
    %v2343 = vtanh.pop %v2342
    %v2344 = vmul.f32 %v2339, %v2343
    %v2345 = vadd.f32 %v2033, %v2344
    %s2346 = scalar_lea.vmem [#allocation5], 56
    %v2347 = vld [vmem:[%s2346] sm:$0xff]
    %v2349 = vsel %vm163, %v2347, 0
    %2351 = vmatprep.subr.mxu0 %v66
    %2352 = vmatpush1.msra.mxu0 %v65
    %2353 = vmatprep.subr.mxu0 %v70
    %2354 = vmatpush1.msra.mxu0 %v69
    %2355 = vmatprep.subr.mxu0 0.0
    %2356 = vmatpush1.msra.mxu0 0.0
    %2357 = vmatprep.subr.mxu0 0.0
    %2358 = vmatpush1.msra.mxu0 0.0
    %2359 = vmatprep.subr.mxu0 0.0
    %2360 = vmatpush1.msra.mxu0 0.0
    %2361 = vmatprep.subr.mxu0 0.0
    %2362 = vmatpush1.msra.mxu0 0.0
    %2363 = vmatprep.subr.mxu0 0.0
    %2364 = vmatpush1.msra.mxu0 0.0
    %2365 = vmatprep.subr.mxu0 0.0
    %2366 = vmatpush1.msra.mxu0 0.0
    %2367 = vmatprep.subr.mxu0 0.0
    %2368 = vmatpush1.msra.mxu0 0.0
    %2369 = vmatprep.subr.mxu0 0.0
    %2370 = vmatpush1.msra.mxu0 0.0
    %2371 = vmatprep.subr.mxu0 0.0
    %2372 = vmatpush1.msra.mxu0 0.0
    %2373 = vmatprep.subr.mxu0 0.0
    %2374 = vmatpush1.msra.mxu0 0.0
    %2375 = vmatprep.subr.mxu0 0.0
    %2376 = vmatpush1.msra.mxu0 0.0
    %2377 = vmatprep.subr.mxu0 0.0
    %2378 = vmatpush1.msra.mxu0 0.0
    %2379 = vmatprep.subr.mxu0 0.0
    %2380 = vmatpush1.msra.mxu0 0.0
    %2381 = vmatprep.subr.mxu0 0.0
    %2382 = vmatpush1.msra.mxu0 0.0
    %2383 = vmatprep.subr.mxu0 0.0
    %2384 = vmatpush1.msra.mxu0 0.0
    %2385 = vmatprep.subr.mxu0 0.0
    %2386 = vmatpush1.msra.mxu0 0.0
    %2387 = vmatprep.subr.mxu0 0.0
    %2388 = vmatpush1.msra.mxu0 0.0
    %2389 = vmatprep.subr.mxu0 0.0
    %2390 = vmatpush1.msra.mxu0 0.0
    %2391 = vmatprep.subr.mxu0 0.0
    %2392 = vmatpush1.msra.mxu0 0.0
    %2393 = vmatprep.subr.mxu0 0.0
    %2394 = vmatpush1.msra.mxu0 0.0
    %2395 = vmatprep.subr.mxu0 0.0
    %2396 = vmatpush1.msra.mxu0 0.0
    %2397 = vmatprep.subr.mxu0 0.0
    %2398 = vmatpush1.msra.mxu0 0.0
    %2399 = vmatprep.subr.mxu0 0.0
    %2400 = vmatpush1.msra.mxu0 0.0
    %2401 = vmatprep.subr.mxu0 0.0
    %2402 = vmatpush1.msra.mxu0 0.0
    %2403 = vmatprep.subr.mxu0 0.0
    %2404 = vmatpush1.msra.mxu0 0.0
    %2405 = vmatprep.subr.mxu0 0.0
    %2406 = vmatpush1.msra.mxu0 0.0
    %2407 = vmatprep.subr.mxu0 0.0
    %2408 = vmatpush1.msra.mxu0 0.0
    %2409 = vmatprep.subr.mxu0 0.0
    %2410 = vmatpush1.msra.mxu0 0.0
    %2411 = vmatprep.subr.mxu0 0.0
    %2412 = vmatpush1.msra.mxu0 0.0
    %2413 = vmatprep.subr.mxu0 0.0
    %2414 = vmatpush1.msra.mxu0 0.0
    %2415 = vmatprep.mubr.f32.mxu0 0.0
    %2416 = vmatmul.mubr.f32.gmra.mrb[0].mxu0 %v2349
    %v2417 = vpop.f32.mrb[0].mxu0
    %v2418 = vadd.f32 %v146, %v2417
    %v2419 = vpop.f32.mrb[0].mxu0
    %v2420 = vadd.f32 %v150, %v2419
    %2421 = vdwg.mxu0
    %2422 = vmatprep.subr.mxu0 %v68
    %2423 = vmatpush1.msra.mxu0 %v67
    %2424 = vmatprep.subr.mxu0 %v72
    %2425 = vmatpush1.msra.mxu0 %v71
    %2426 = vmatprep.subr.mxu0 0.0
    %2427 = vmatpush1.msra.mxu0 0.0
    %2428 = vmatprep.subr.mxu0 0.0
    %2429 = vmatpush1.msra.mxu0 0.0
    %2430 = vmatprep.subr.mxu0 0.0
    %2431 = vmatpush1.msra.mxu0 0.0
    %2432 = vmatprep.subr.mxu0 0.0
    %2433 = vmatpush1.msra.mxu0 0.0
    %2434 = vmatprep.subr.mxu0 0.0
    %2435 = vmatpush1.msra.mxu0 0.0
    %2436 = vmatprep.subr.mxu0 0.0
    %2437 = vmatpush1.msra.mxu0 0.0
    %2438 = vmatprep.subr.mxu0 0.0
    %2439 = vmatpush1.msra.mxu0 0.0
    %2440 = vmatprep.subr.mxu0 0.0
    %2441 = vmatpush1.msra.mxu0 0.0
    %2442 = vmatprep.subr.mxu0 0.0
    %2443 = vmatpush1.msra.mxu0 0.0
    %2444 = vmatprep.subr.mxu0 0.0
    %2445 = vmatpush1.msra.mxu0 0.0
    %2446 = vmatprep.subr.mxu0 0.0
    %2447 = vmatpush1.msra.mxu0 0.0
    %2448 = vmatprep.subr.mxu0 0.0
    %2449 = vmatpush1.msra.mxu0 0.0
    %2450 = vmatprep.subr.mxu0 0.0
    %2451 = vmatpush1.msra.mxu0 0.0
    %2452 = vmatprep.subr.mxu0 0.0
    %2453 = vmatpush1.msra.mxu0 0.0
    %2454 = vmatprep.subr.mxu0 0.0
    %2455 = vmatpush1.msra.mxu0 0.0
    %2456 = vmatprep.subr.mxu0 0.0
    %2457 = vmatpush1.msra.mxu0 0.0
    %2458 = vmatprep.subr.mxu0 0.0
    %2459 = vmatpush1.msra.mxu0 0.0
    %2460 = vmatprep.subr.mxu0 0.0
    %2461 = vmatpush1.msra.mxu0 0.0
    %2462 = vmatprep.subr.mxu0 0.0
    %2463 = vmatpush1.msra.mxu0 0.0
    %2464 = vmatprep.subr.mxu0 0.0
    %2465 = vmatpush1.msra.mxu0 0.0
    %2466 = vmatprep.subr.mxu0 0.0
    %2467 = vmatpush1.msra.mxu0 0.0
    %2468 = vmatprep.subr.mxu0 0.0
    %2469 = vmatpush1.msra.mxu0 0.0
    %2470 = vmatprep.subr.mxu0 0.0
    %2471 = vmatpush1.msra.mxu0 0.0
    %2472 = vmatprep.subr.mxu0 0.0
    %2473 = vmatpush1.msra.mxu0 0.0
    %2474 = vmatprep.subr.mxu0 0.0
    %2475 = vmatpush1.msra.mxu0 0.0
    %2476 = vmatprep.subr.mxu0 0.0
    %2477 = vmatpush1.msra.mxu0 0.0
    %2478 = vmatprep.subr.mxu0 0.0
    %2479 = vmatpush1.msra.mxu0 0.0
    %2480 = vmatprep.subr.mxu0 0.0
    %2481 = vmatpush1.msra.mxu0 0.0
    %2482 = vmatprep.subr.mxu0 0.0
    %2483 = vmatpush1.msra.mxu0 0.0
    %2484 = vmatprep.subr.mxu0 0.0
    %2485 = vmatpush1.msra.mxu0 0.0
    %2486 = vmatprep.mubr.f32.mxu0 0.0
    %2487 = vmatmul.mubr.f32.gmra.mrb[0].mxu0 %v2349
    %v2488 = vpop.f32.mrb[0].mxu0
    %v2489 = vadd.f32 %v154, %v2488
    %v2490 = vpop.f32.mrb[0].mxu0
    %v2491 = vadd.f32 %v158, %v2490
    %2492 = vdwg.mxu0
    %2493 = vmatprep.subr.mxu0 %v74
    %2494 = vmatpush1.msra.mxu0 %v73
    %2495 = vmatprep.subr.mxu0 %v78
    %2496 = vmatpush1.msra.mxu0 %v77
    %2497 = vmatprep.subr.mxu0 %v82
    %2498 = vmatpush1.msra.mxu0 %v81
    %2499 = vmatprep.subr.mxu0 %v86
    %2500 = vmatpush1.msra.mxu0 %v85
    %2501 = vmatprep.subr.mxu0 %v90
    %2502 = vmatpush1.msra.mxu0 %v89
    %2503 = vmatprep.subr.mxu0 %v94
    %2504 = vmatpush1.msra.mxu0 %v93
    %2505 = vmatprep.subr.mxu0 %v98
    %2506 = vmatpush1.msra.mxu0 %v97
    %2507 = vmatprep.subr.mxu0 %v102
    %2508 = vmatpush1.msra.mxu0 %v101
    %2509 = vmatprep.subr.mxu0 %v106
    %2510 = vmatpush1.msra.mxu0 %v105
    %2511 = vmatprep.subr.mxu0 %v110
    %2512 = vmatpush1.msra.mxu0 %v109
    %2513 = vmatprep.subr.mxu0 %v114
    %2514 = vmatpush1.msra.mxu0 %v113
    %2515 = vmatprep.subr.mxu0 %v118
    %2516 = vmatpush1.msra.mxu0 %v117
    %2517 = vmatprep.subr.mxu0 %v122
    %2518 = vmatpush1.msra.mxu0 %v121
    %2519 = vmatprep.subr.mxu0 %v126
    %2520 = vmatpush1.msra.mxu0 %v125
    %2521 = vmatprep.subr.mxu0 %v130
    %2522 = vmatpush1.msra.mxu0 %v129
    %2523 = vmatprep.subr.mxu0 %v134
    %2524 = vmatpush1.msra.mxu0 %v133
    %2525 = vmatprep.subr.mxu0 0.0
    %2526 = vmatpush1.msra.mxu0 0.0
    %2527 = vmatprep.subr.mxu0 0.0
    %2528 = vmatpush1.msra.mxu0 0.0
    %2529 = vmatprep.subr.mxu0 0.0
    %2530 = vmatpush1.msra.mxu0 0.0
    %2531 = vmatprep.subr.mxu0 0.0
    %2532 = vmatpush1.msra.mxu0 0.0
    %2533 = vmatprep.subr.mxu0 0.0
    %2534 = vmatpush1.msra.mxu0 0.0
    %2535 = vmatprep.subr.mxu0 0.0
    %2536 = vmatpush1.msra.mxu0 0.0
    %2537 = vmatprep.subr.mxu0 0.0
    %2538 = vmatpush1.msra.mxu0 0.0
    %2539 = vmatprep.subr.mxu0 0.0
    %2540 = vmatpush1.msra.mxu0 0.0
    %2541 = vmatprep.subr.mxu0 0.0
    %2542 = vmatpush1.msra.mxu0 0.0
    %2543 = vmatprep.subr.mxu0 0.0
    %2544 = vmatpush1.msra.mxu0 0.0
    %2545 = vmatprep.subr.mxu0 0.0
    %2546 = vmatpush1.msra.mxu0 0.0
    %2547 = vmatprep.subr.mxu0 0.0
    %2548 = vmatpush1.msra.mxu0 0.0
    %2549 = vmatprep.subr.mxu0 0.0
    %2550 = vmatpush1.msra.mxu0 0.0
    %2551 = vmatprep.subr.mxu0 0.0
    %2552 = vmatpush1.msra.mxu0 0.0
    %2553 = vmatprep.subr.mxu0 0.0
    %2554 = vmatpush1.msra.mxu0 0.0
    %2555 = vmatprep.subr.mxu0 0.0
    %2556 = vmatpush1.msra.mxu0 0.0
    %2557 = vmatprep.mubr.f32.mxu0 0.0
    %2558 = vmatmul.mubr.f32.gmra.mrb[0].mxu0 %v2344
    %v2559 = vpop.f32.mrb[0].mxu0
    %v2560 = vadd.f32 0.0, %v2559
    %v2561 = vpop.f32.mrb[0].mxu0
    %v2562 = vadd.f32 0.0, %v2561
    %2563 = vdwg.mxu0
    %2564 = vmatprep.subr.mxu0 %v76
    %2565 = vmatpush1.msra.mxu0 %v75
    %2566 = vmatprep.subr.mxu0 %v80
    %2567 = vmatpush1.msra.mxu0 %v79
    %2568 = vmatprep.subr.mxu0 %v84
    %2569 = vmatpush1.msra.mxu0 %v83
    %2570 = vmatprep.subr.mxu0 %v88
    %2571 = vmatpush1.msra.mxu0 %v87
    %2572 = vmatprep.subr.mxu0 %v92
    %2573 = vmatpush1.msra.mxu0 %v91
    %2574 = vmatprep.subr.mxu0 %v96
    %2575 = vmatpush1.msra.mxu0 %v95
    %2576 = vmatprep.subr.mxu0 %v100
    %2577 = vmatpush1.msra.mxu0 %v99
    %2578 = vmatprep.subr.mxu0 %v104
    %2579 = vmatpush1.msra.mxu0 %v103
    %2580 = vmatprep.subr.mxu0 %v108
    %2581 = vmatpush1.msra.mxu0 %v107
    %2582 = vmatprep.subr.mxu0 %v112
    %2583 = vmatpush1.msra.mxu0 %v111
    %2584 = vmatprep.subr.mxu0 %v116
    %2585 = vmatpush1.msra.mxu0 %v115
    %2586 = vmatprep.subr.mxu0 %v120
    %2587 = vmatpush1.msra.mxu0 %v119
    %2588 = vmatprep.subr.mxu0 %v124
    %2589 = vmatpush1.msra.mxu0 %v123
    %2590 = vmatprep.subr.mxu0 %v128
    %2591 = vmatpush1.msra.mxu0 %v127
    %2592 = vmatprep.subr.mxu0 %v132
    %2593 = vmatpush1.msra.mxu0 %v131
    %2594 = vmatprep.subr.mxu0 %v136
    %2595 = vmatpush1.msra.mxu0 %v135
    %2596 = vmatprep.subr.mxu0 0.0
    %2597 = vmatpush1.msra.mxu0 0.0
    %2598 = vmatprep.subr.mxu0 0.0
    %2599 = vmatpush1.msra.mxu0 0.0
    %2600 = vmatprep.subr.mxu0 0.0
    %2601 = vmatpush1.msra.mxu0 0.0
    %2602 = vmatprep.subr.mxu0 0.0
    %2603 = vmatpush1.msra.mxu0 0.0
    %2604 = vmatprep.subr.mxu0 0.0
    %2605 = vmatpush1.msra.mxu0 0.0
    %2606 = vmatprep.subr.mxu0 0.0
    %2607 = vmatpush1.msra.mxu0 0.0
    %2608 = vmatprep.subr.mxu0 0.0
    %2609 = vmatpush1.msra.mxu0 0.0
    %2610 = vmatprep.subr.mxu0 0.0
    %2611 = vmatpush1.msra.mxu0 0.0
    %2612 = vmatprep.subr.mxu0 0.0
    %2613 = vmatpush1.msra.mxu0 0.0
    %2614 = vmatprep.subr.mxu0 0.0
    %2615 = vmatpush1.msra.mxu0 0.0
    %2616 = vmatprep.subr.mxu0 0.0
    %2617 = vmatpush1.msra.mxu0 0.0
    %2618 = vmatprep.subr.mxu0 0.0
    %2619 = vmatpush1.msra.mxu0 0.0
    %2620 = vmatprep.subr.mxu0 0.0
    %2621 = vmatpush1.msra.mxu0 0.0
    %2622 = vmatprep.subr.mxu0 0.0
    %2623 = vmatpush1.msra.mxu0 0.0
    %2624 = vmatprep.subr.mxu0 0.0
    %2625 = vmatpush1.msra.mxu0 0.0
    %2626 = vmatprep.subr.mxu0 0.0
    %2627 = vmatpush1.msra.mxu0 0.0
    %2628 = vmatprep.mubr.f32.mxu0 0.0
    %2629 = vmatmul.mubr.f32.gmra.mrb[0].mxu0 %v2344
    %v2630 = vpop.f32.mrb[0].mxu0
    %v2631 = vadd.f32 0.0, %v2630
    %v2632 = vpop.f32.mrb[0].mxu0
    %v2633 = vadd.f32 0.0, %v2632
    %2634 = vdwg.mxu0
    %v2635 = vadd.f32 %v2418, %v2560
    %v2636 = vadd.f32 %v2420, %v2562
    %v2637 = vadd.f32 %v2489, %v2631
    %v2638 = vadd.f32 %v2491, %v2633
    %v2639 = vmul.f32 %v2635, 0.5
    %v2640 = vtanh.pop %v2639
    %v2641 = vmul.f32 %v2640, 0.5
    %v2642 = vadd.f32 %v2641, 0.5
    %v2643 = vmul.f32 %v2636, 0.5
    %v2644 = vtanh.pop %v2643
    %v2645 = vmul.f32 %v2644, 0.5
    %v2646 = vadd.f32 %v2645, 0.5
    %v2647 = vtanh.pop %v2637
    %v2648 = vmul.f32 %v2638, 0.5
    %v2649 = vtanh.pop %v2648
    %v2650 = vmul.f32 %v2649, 0.5
    %v2651 = vadd.f32 %v2650, 0.5
    %v2652 = vmul.f32 %v2646, %v2342
    %v2653 = vmul.f32 %v2642, %v2647
    %v2654 = vadd.f32 %v2652, %v2653
    %v2655 = vtanh.pop %v2654
    %v2656 = vmul.f32 %v2651, %v2655
    %v2657 = vadd.f32 %v2345, %v2656
    %2658 = vst [vmem:[#allocation2] sm:$0xff] %v2656
    %2659 = vst [vmem:[#allocation3] sm:$0xff] %v2654
    %2660 = vst [vmem:[#allocation4] sm:$0xff] %v2657
    // Predicated region
    $region34: #{tpu_custom_call.1} parent=1 // pred_check
      %p2661 = pneg %p58
    $region35: #{tpu_custom_call.1} parent=1 // pred_check_branch
      %2663 = sbr.rel (%p2661) target = $region37
    $region36: #{tpu_custom_call.1} parent=1 // pred_region
      %v2664 = vld [vmem:[#allocation4] sm:$0xff]
      %v2665 = vmul.f32 %v2664, 0.125
      %vm2666 = vcmask 7168
      %2667 = vst.msk [vmem:[%s4] sm:$0xff] %vm2666, %v2665
    $region37: #{tpu_custom_call.1} parent=1 // pred_fallthru
      _
    // Predicated region
    $region38: #{tpu_custom_call.1} parent=1 // pred_check
      _
    $region39: #{tpu_custom_call.1} parent=1 // pred_check_branch
      %2669 = sbr.rel (0) target = $region41
    $region40: #{tpu_custom_call.1} parent=1 // pred_region
      _
    $region41: #{tpu_custom_call.1} parent=1 // pred_fallthru
      _
    // Predicated region
    $region42: #{tpu_custom_call.1} parent=1 // pred_check
      _
    $region43: #{tpu_custom_call.1} parent=1 // pred_check_branch
      %2671 = sbr.rel (0) target = $region45
    $region44: #{tpu_custom_call.1} parent=1 // pred_region
      _
    $region45: #{tpu_custom_call.1} parent=1 // pred_fallthru
      _
    %2672 = vsyncpa [#allocation6], 1
    %2673 = vsyncpa [#allocation8], 1

</llo_original>
